<compile_context>
chip_gen: v5e
topology: v5e:2x2
jax: 0.10.0
libtpu: 0.0.40
codegen_flags: <defaults>
</compile_context>

<pallas_src>
import functools
import random

import jax
import jax.numpy as jnp
from jax import lax
from jax.experimental import pallas as pl
from jax.experimental.pallas import tpu as pltpu


_LANE = 128      # lane width: vocab dims padded to this (lane-dense stores)
_SUBLANE = 8     # f32 sublane multiple: batch padded to this
_NEG = -1e30     # baked into b_out's padded lanes (argmax can never pick them)


def _round_up(x, m):
    return ((x + m - 1) // m) * m


def _pad_to(a, shape):
    pads = [(0, t - s) for s, t in zip(a.shape, shape)]
    return jnp.pad(a, pads)


def build_tf_mask(max_len, teacher_forcing_ratio, rng):
    """Host-side teacher-forcing decisions, one random.random() per step,
    exactly mirroring the PyTorch loop.  Index 0 is unused."""
    return [0] + [1 if rng.random() < teacher_forcing_ratio else 0
                  for _ in range(1, max_len)]


# ---------------------------------------------------------------------------
# Fused encoder + step-decoder kernel (single pallas_call, no grid).
# ---------------------------------------------------------------------------
def _seq2seq_kernel(src_oh_ref, trg_oh_ref,
                    enc_proj_ref, b_enc_ref,
                    w_in_cat_ref, b_q_ref,
                    w_out_c_ref, b_out_ref,
                    out_ref, *, tf_mask):
    bp, s_len, in_pad = src_oh_ref.shape          # [B_pad, S, IN_pad]
    max_len, _, v_pad = trg_oh_ref.shape          # [T, B_pad, V_pad]
    hid = w_out_c_ref.shape[0]

    # -------- encoder: one folded one-hot matmul over all Bp*S tokens ------
    src_flat = src_oh_ref[...].reshape(bp * s_len, in_pad)
    enc = jnp.tanh(
        jnp.dot(src_flat, enc_proj_ref[...], preferred_element_type=jnp.float32)
        + b_enc_ref[...]
    ).reshape(bp, s_len, hid)                                        # [B, S, H]

    # -------- batched precompute of every teacher-forced input projection --
    # w_in_cat = [dec_emb @ w_out_e | dec_emb @ w_q]  -> [Vp, Vp + H]
    w_in_cat = w_in_cat_ref[...]
    trg_flat = trg_oh_ref[...].reshape(max_len * bp, v_pad)
    proj_all = jnp.dot(trg_flat, w_in_cat, preferred_element_type=jnp.float32)
    embl_tf = proj_all[:, :v_pad].reshape(max_len, bp, v_pad)        # logits emb-term
    q_tf = jnp.tanh(proj_all[:, v_pad:] + b_q_ref[...]
                    ).reshape(max_len, bp, hid)                      # queries

    # -------- hoisted constants / broadcasts (not re-done per step) --------
    w_oc = w_out_c_ref[...]                                          # [H, Vp]
    b_out_b = jnp.broadcast_to(b_out_ref[...], (bp, v_pad))          # -1e30 pad lanes
    b_q_b = jnp.broadcast_to(b_q_ref[...], (bp, hid))
    lane_ids = lax.broadcasted_iota(jnp.int32, (bp, v_pad), 1)

    # outputs[0] stays zero (reference semantics)
    out_ref[0] = jnp.zeros((bp, v_pad), jnp.float32)

    # input at step 1 is trg[0]
    q, embl = q_tf[0], embl_tf[0]

    # Static decode loop: teacher-forcing decisions are compile-time ints,
    # so forced steps skip the argmax/feedback block entirely.
    for t in range(1, max_len):
        # dot-product attention (VPU multiply + XLU reduce; MXU stays free)
        scores = jnp.sum(q[:, None, :] * enc, axis=-1)               # [B, S]
        scores = scores - jnp.max(scores, axis=1, keepdims=True)
        e = jnp.exp(scores)
        attn = e / jnp.sum(e, axis=1, keepdims=True)                 # exact softmax
        context = jnp.sum(attn[:, :, None] * enc, axis=1)            # [B, H]

        # merged logits: precomputed emb-term + one context matmul + bias
        logits = embl + jnp.dot(context, w_oc,
                                preferred_element_type=jnp.float32) + b_out_b
        out_ref[t] = logits                                          # lane-dense store

        if t + 1 < max_len:
            if tf_mask[t]:
                # teacher-forced: use the precomputed projection of trg[t]
                q, embl = q_tf[t], embl_tf[t]
            else:
                # greedy feedback: first index of the row max (padded lanes
                # already hold ~-1e30 via the baked bias)
                row_max = jnp.max(logits, axis=1, keepdims=True)
                cand = jnp.where(logits >= row_max, lane_ids, v_pad)
                top1 = jnp.min(cand, axis=1, keepdims=True)          # [B, 1]
                top1_oh = (lane_ids == top1).astype(jnp.float32)     # [B, Vp]
                # single merged projection: [emb-term | query-pre] in one matmul
                proj = jnp.dot(top1_oh, w_in_cat,
                               preferred_element_type=jnp.float32)   # [B, Vp+H]
                embl = proj[:, :v_pad]
                q = jnp.tanh(proj[:, v_pad:] + b_q_b)


_VMEM = pl.BlockSpec(memory_space=pltpu.MemorySpace.VMEM)


@functools.partial(jax.jit, static_argnames=("tf_mask", "output_dim"))
def _fused_forward(pp, src, trg, tf_mask, output_dim):
    s_len, batch = src.shape
    max_len = trg.shape[0]
    bp = _round_up(batch, _SUBLANE)
    in_pad = pp["enc_proj"].shape[0]
    v_pad = pp["w_in_cat"].shape[0]

    # pad batch to a sublane multiple; one-hot encode tokens (lane-dense)
    src_p = jnp.zeros((s_len, bp), src.dtype).at[:, :batch].set(src)
    trg_p = jnp.zeros((max_len, bp), trg.dtype).at[:, :batch].set(trg)
    # batch-major source one-hot so enc lands as [B, S, H] without a transpose
    src_oh = jax.nn.one_hot(src_p.T, in_pad, dtype=jnp.float32)   # [Bp, S, INp]
    trg_oh = jax.nn.one_hot(trg_p, v_pad, dtype=jnp.float32)      # [T, Bp, Vp]

    out_p = pl.pallas_call(
        functools.partial(_seq2seq_kernel, tf_mask=tf_mask),
        out_shape=jax.ShapeDtypeStruct((max_len, bp, v_pad), jnp.float32),
        in_specs=[_VMEM] * 8,
        out_specs=_VMEM,
    )(src_oh, trg_oh,
      pp["enc_proj"], pp["b_enc"],
      pp["w_in_cat"], pp["b_q"],
      pp["w_out_c"], pp["b_out"])

    return out_p[:, :batch, :output_dim]


# ---------------------------------------------------------------------------
# Transformer wrapper (mirrors the PyTorch forward)
# ---------------------------------------------------------------------------
class TransformerPallas:
    def __init__(self, params, input_dim, output_dim,
                 emb_dim_enc, emb_dim_dec, hid_dim,
                 src_pad_idx=0, trg_pad_idx=0, trg_sos_idx=1):
        self.input_dim = input_dim
        self.output_dim = output_dim
        self.emb_dim_enc = emb_dim_enc
        self.emb_dim_dec = emb_dim_dec
        self.hid_dim = hid_dim
        self.src_pad_idx = src_pad_idx
        self.trg_pad_idx = trg_pad_idx
        self.trg_sos_idx = trg_sos_idx

        in_pad = _round_up(input_dim, _LANE)
        v_pad = _round_up(output_dim, _LANE)

        # Fold constant weight chains on the host (zero-padded so padded
        # vocab rows/cols contribute nothing; real logits are unchanged).
        enc_emb_p = _pad_to(params["enc_emb"], (in_pad, emb_dim_enc))
        dec_emb_p = _pad_to(params["dec_emb"], (v_pad, emb_dim_dec))
        we_f = dec_emb_p @ _pad_to(params["w_out_e"], (emb_dim_dec, v_pad))  # [Vp, Vp]
        wq_f = dec_emb_p @ params["w_q"]                                     # [Vp, H]
        # bake the vocab-padding mask into the output bias
        b_out_p = _pad_to(params["b_out"], (1, v_pad))
        lane_mask = jnp.where(jnp.arange(v_pad) < output_dim, 0.0, _NEG)[None, :]
        self.padded_params = {
            "enc_proj": enc_emb_p @ params["w_enc"],                 # [INp, H]
            "b_enc":    params["b_enc"],                             # [1, H]
            "w_in_cat": jnp.concatenate([we_f, wq_f], axis=1),       # [Vp, Vp+H]
            "b_q":      params["b_q"],                               # [1, H]
            "w_out_c":  _pad_to(params["w_out_c"], (hid_dim, v_pad)),
            "b_out":    b_out_p + lane_mask,                         # [1, Vp]
        }

    def forward(self, src, trg, teacher_forcing_ratio=0.5, rng=None):
        # Mirrors Transformer.forward: host RNG draws one decision per step.
        # The decisions are static (baked into the kernel), so forced steps
        # skip the argmax feedback entirely; distinct masks recompile.
        if rng is None:
            rng = random.Random(0)
        max_len = trg.shape[0]
        tf_mask = tuple(build_tf_mask(max_len, teacher_forcing_ratio, rng))
        return _fused_forward(self.padded_params, src, trg, tf_mask,
                              output_dim=self.output_dim)


# ---------------------------------------------------------------------------
# Pure-JAX reference (same math, unfolded weights, no Pallas)
# ---------------------------------------------------------------------------
def reference_forward(params, src, trg, tf_mask, feedback_tokens=None):
    """If feedback_tokens is given, it supplies the greedy token used when a
    step is NOT teacher-forced (makes the check robust to float-level argmax
    ties); otherwise the reference computes its own argmax."""
    max_len = trg.shape[0]
    batch = trg.shape[1]
    output_dim = params["b_out"].shape[1]

    emb = jnp.take(params["enc_emb"], src, axis=0)               # [S, B, E]
    enc = jnp.tanh(emb @ params["w_enc"] + params["b_enc"])      # [S, B, H]

    outputs = [jnp.zeros((batch, output_dim), jnp.float32)]
    inp = trg[0, :]
    for t in range(1, max_len):
        de = jnp.take(params["dec_emb"], inp, axis=0)            # [B, E]
        q = jnp.tanh(de @ params["w_q"] + params["b_q"])         # [B, H]
        scores = jnp.einsum("sbh,bh->sb", enc, q)
        scores = scores - jnp.max(scores, axis=0, keepdims=True)
        e = jnp.exp(scores)
        attn = e / jnp.sum(e, axis=0, keepdims=True)
        ctx = jnp.einsum("sb,sbh->bh", attn, enc)
        logits = de @ params["w_out_e"] + ctx @ params["w_out_c"] + params["b_out"]
        outputs.append(logits)
        if feedback_tokens is None:
            top1 = jnp.argmax(logits, axis=1).astype(trg.dtype)
        else:
            top1 = feedback_tokens[t]
        inp = trg[t] if tf_mask[t] else top1
    return jnp.stack(outputs, axis=0)


# ---------------------------------------------------------------------------
if __name__ == "__main__":
    INPUT_DIM = 32      # src vocab
    OUTPUT_DIM = 32     # trg vocab
    EMB_ENC = 16
    EMB_DEC = 16
    HID = 32
    SRC_LEN = 8
    MAX_LEN = 8
    BATCH = 4
    SRC_PAD, TRG_PAD, TRG_SOS = 0, 0, 1

    key = jax.random.PRNGKey(0)
    ks = jax.random.split(key, 10)

    def init(k, shape, scale=0.1):
        return (scale * jax.random.normal(k, shape)).astype(jnp.float32)

    params = {
        "enc_emb":  init(ks[0], (INPUT_DIM, EMB_ENC)),
        "w_enc":    init(ks[1], (EMB_ENC, HID)),
        "b_enc":    init(ks[2], (1, HID)),
        "dec_emb":  init(ks[3], (OUTPUT_DIM, EMB_DEC)),
        "w_q":      init(ks[4], (EMB_DEC, HID)),
        "b_q":      init(ks[5], (1, HID)),
        "w_out_e":  init(ks[6], (EMB_DEC, OUTPUT_DIM)),
        "w_out_c":  init(ks[7], (HID, OUTPUT_DIM)),
        "b_out":    init(ks[8], (1, OUTPUT_DIM)),
    }

    src = jax.random.randint(ks[9], (SRC_LEN, BATCH), 0, INPUT_DIM, dtype=jnp.int32)
    trg = jax.random.randint(jax.random.PRNGKey(1), (MAX_LEN, BATCH), 0, OUTPUT_DIM,
                             dtype=jnp.int32)
    trg = trg.at[0, :].set(TRG_SOS)

    model = TransformerPallas(params, INPUT_DIM, OUTPUT_DIM, EMB_ENC, EMB_DEC, HID,
                              SRC_PAD, TRG_PAD, TRG_SOS)

    # --- Check A: fully teacher-forced (feedback independent of numerics) ---
    out_tf = jax.block_until_ready(
        model.forward(src, trg, teacher_forcing_ratio=1.0, rng=random.Random(0)))
    mask_a = build_tf_mask(MAX_LEN, 1.0, random.Random(0))
    ref_tf = jax.block_until_ready(reference_forward(params, src, trg, mask_a))
    assert out_tf.shape == (MAX_LEN, BATCH, OUTPUT_DIM)
    assert jnp.allclose(out_tf, ref_tf, atol=1e-2, rtol=1e-2)

    # --- Check B: mixed teacher forcing (PyTorch protocol, host RNG) --------
    # The reference consumes the kernel's own greedy tokens for the
    # non-forced steps (robust to float-level argmax ties); any error in the
    # in-kernel argmax feedback would make the per-step logits diverge by O(1).
    out = jax.block_until_ready(
        model.forward(src, trg, teacher_forcing_ratio=0.5, rng=random.Random(0)))
    mask_b = build_tf_mask(MAX_LEN, 0.5, random.Random(0))
    greedy = jnp.argmax(out, axis=-1).astype(trg.dtype)          # [T, B]
    ref = jax.block_until_ready(
        reference_forward(params, src, trg, mask_b, feedback_tokens=greedy))
    assert out.shape == (MAX_LEN, BATCH, OUTPUT_DIM)
    assert jnp.allclose(out, ref, atol=1e-2, rtol=1e-2)

    # TODO(synk): the original lab injects arbitrary encoder/decoder modules;
    # this script uses a representative attention-based single-step decoder.
    print("KERNEL_OK")
</pallas_src>

<mosaic_0001>
module attributes {stable_mosaic.version = 11 : i64} {
  func.func @_seq2seq_kernel(%arg0: memref<8x8x128xf32, #tpu.memory_space<vmem>>, %arg1: memref<8x8x128xf32, #tpu.memory_space<vmem>>, %arg2: memref<128x32xf32, #tpu.memory_space<vmem>>, %arg3: memref<1x32xf32, #tpu.memory_space<vmem>>, %arg4: memref<128x160xf32, #tpu.memory_space<vmem>>, %arg5: memref<1x32xf32, #tpu.memory_space<vmem>>, %arg6: memref<32x128xf32, #tpu.memory_space<vmem>>, %arg7: memref<1x128xf32, #tpu.memory_space<vmem>>, %arg8: memref<8x8x128xf32, #tpu.memory_space<vmem>>) attributes {dimension_semantics = [], scalar_prefetch = 0 : i64, scratch_operands = 0 : i64, tpu.core_type = #tpu.core_type<tc>} {
    %c0 = arith.constant 0 : index
    %c0_0 = arith.constant 0 : index
    %c0_1 = arith.constant 0 : index
    %0 = vector.load %arg0[%c0, %c0_0, %c0_1] : memref<8x8x128xf32, #tpu.memory_space<vmem>>, vector<8x8x128xf32>
    %1 = vector.shape_cast %0 : vector<8x8x128xf32> to vector<64x128xf32>
    %c0_2 = arith.constant 0 : index
    %c0_3 = arith.constant 0 : index
    %2 = vector.load %arg2[%c0_2, %c0_3] : memref<128x32xf32, #tpu.memory_space<vmem>>, vector<128x32xf32>
    %cst = arith.constant dense<0.000000e+00> : vector<64x32xf32>
    %3 = tpu.matmul %1, %2, %cst {dimension_numbers = #tpu.dot_dimension_numbers<[1], [0], [0], [1], [0, 0, 1, 1], [], []>} : vector<64x128xf32>, vector<128x32xf32>, vector<64x32xf32> -> vector<64x32xf32>
    %c0_4 = arith.constant 0 : index
    %c0_5 = arith.constant 0 : index
    %4 = vector.load %arg3[%c0_4, %c0_5] : memref<1x32xf32, #tpu.memory_space<vmem>>, vector<1x32xf32>
    %5 = vector.broadcast %4 : vector<1x32xf32> to vector<64x32xf32>
    %6 = arith.addf %3, %5 : vector<64x32xf32>
    %7 = math.tanh %6 : vector<64x32xf32>
    %8 = vector.shape_cast %7 : vector<64x32xf32> to vector<8x8x32xf32>
    %c0_6 = arith.constant 0 : index
    %c0_7 = arith.constant 0 : index
    %9 = vector.load %arg4[%c0_6, %c0_7] : memref<128x160xf32, #tpu.memory_space<vmem>>, vector<128x160xf32>
    %c0_8 = arith.constant 0 : index
    %c0_9 = arith.constant 0 : index
    %c0_10 = arith.constant 0 : index
    %10 = vector.load %arg1[%c0_8, %c0_9, %c0_10] : memref<8x8x128xf32, #tpu.memory_space<vmem>>, vector<8x8x128xf32>
    %11 = vector.shape_cast %10 : vector<8x8x128xf32> to vector<64x128xf32>
    %cst_11 = arith.constant dense<0.000000e+00> : vector<64x160xf32>
    %12 = tpu.matmul %11, %9, %cst_11 {dimension_numbers = #tpu.dot_dimension_numbers<[1], [0], [0], [1], [0, 0, 1, 1], [], []>} : vector<64x128xf32>, vector<128x160xf32>, vector<64x160xf32> -> vector<64x160xf32>
    %13 = vector.extract_strided_slice %12 {offsets = [0, 0], sizes = [64, 128], strides = [1, 1]} : vector<64x160xf32> to vector<64x128xf32>
    %14 = vector.shape_cast %13 : vector<64x128xf32> to vector<8x8x128xf32>
    %15 = vector.extract_strided_slice %12 {offsets = [0, 128], sizes = [64, 32], strides = [1, 1]} : vector<64x160xf32> to vector<64x32xf32>
    %c0_12 = arith.constant 0 : index
    %c0_13 = arith.constant 0 : index
    %16 = vector.load %arg5[%c0_12, %c0_13] : memref<1x32xf32, #tpu.memory_space<vmem>>, vector<1x32xf32>
    %17 = vector.broadcast %16 : vector<1x32xf32> to vector<64x32xf32>
    %18 = arith.addf %15, %17 : vector<64x32xf32>
    %19 = math.tanh %18 : vector<64x32xf32>
    %20 = vector.shape_cast %19 : vector<64x32xf32> to vector<8x8x32xf32>
    %c0_14 = arith.constant 0 : index
    %c0_15 = arith.constant 0 : index
    %21 = vector.load %arg6[%c0_14, %c0_15] : memref<32x128xf32, #tpu.memory_space<vmem>>, vector<32x128xf32>
    %c0_16 = arith.constant 0 : index
    %c0_17 = arith.constant 0 : index
    %22 = vector.load %arg7[%c0_16, %c0_17] : memref<1x128xf32, #tpu.memory_space<vmem>>, vector<1x128xf32>
    %23 = vector.shape_cast %22 : vector<1x128xf32> to vector<1x128xf32>
    %24 = vector.broadcast %23 : vector<1x128xf32> to vector<8x128xf32>
    %cst_18 = arith.constant 0.000000e+00 : f32
    %25 = vector.broadcast %cst_18 : f32 to vector<8x128xf32>
    %c0_19 = arith.constant 0 : index
    %c0_20 = arith.constant 0 : index
    %c0_21 = arith.constant 0 : index
    %26 = vector.load %arg8[%c0_19, %c0_20, %c0_21] : memref<8x8x128xf32, #tpu.memory_space<vmem>>, vector<1x8x128xf32>
    %27 = vector.shape_cast %26 : vector<1x8x128xf32> to vector<8x128xf32>
    %28 = vector.shape_cast %25 : vector<8x128xf32> to vector<1x8x128xf32>
    tpu.vector_store %arg8[%c0_19, %c0_20, %c0_21], %28 {strides = array<i32>} : memref<8x8x128xf32, #tpu.memory_space<vmem>>, vector<1x8x128xf32>,
    %29 = vector.extract_strided_slice %20 {offsets = [0, 0, 0], sizes = [1, 8, 32], strides = [1, 1, 1]} : vector<8x8x32xf32> to vector<1x8x32xf32>
    %30 = vector.shape_cast %29 : vector<1x8x32xf32> to vector<8x32xf32>
    %31 = vector.extract_strided_slice %14 {offsets = [0, 0, 0], sizes = [1, 8, 128], strides = [1, 1, 1]} : vector<8x8x128xf32> to vector<1x8x128xf32>
    %32 = vector.shape_cast %31 : vector<1x8x128xf32> to vector<8x128xf32>
    %33 = vector.shape_cast %30 : vector<8x32xf32> to vector<8x1x32xf32>
    %34 = vector.broadcast %33 : vector<8x1x32xf32> to vector<8x8x32xf32>
    %35 = arith.mulf %34, %8 : vector<8x8x32xf32>
    %cst_22 = arith.constant dense<0.000000e+00> : vector<8x8xf32>
    %36 = vector.multi_reduction <add>, %35, %cst_22 [2] : vector<8x8x32xf32> to vector<8x8xf32>
    %cst_23 = arith.constant dense<0xFF800000> : vector<8xf32>
    %37 = vector.multi_reduction <maximumf>, %36, %cst_23 [1] : vector<8x8xf32> to vector<8xf32>
    %38 = vector.shape_cast %37 : vector<8xf32> to vector<8x1xf32>
    %39 = vector.broadcast %38 : vector<8x1xf32> to vector<8x8xf32>
    %40 = arith.subf %36, %39 : vector<8x8xf32>
    %41 = math.exp %40 : vector<8x8xf32>
    %cst_24 = arith.constant dense<0.000000e+00> : vector<8xf32>
    %42 = vector.multi_reduction <add>, %41, %cst_24 [1] : vector<8x8xf32> to vector<8xf32>
    %43 = vector.shape_cast %42 : vector<8xf32> to vector<8x1xf32>
    %44 = vector.broadcast %43 : vector<8x1xf32> to vector<8x8xf32>
    %45 = arith.divf %41, %44 : vector<8x8xf32>
    %46 = vector.shape_cast %45 : vector<8x8xf32> to vector<8x8x1xf32>
    %47 = vector.broadcast %46 : vector<8x8x1xf32> to vector<8x8x32xf32>
    %48 = arith.mulf %47, %8 : vector<8x8x32xf32>
    %cst_25 = arith.constant dense<0.000000e+00> : vector<8x32xf32>
    %49 = vector.multi_reduction <add>, %48, %cst_25 [1] : vector<8x8x32xf32> to vector<8x32xf32>
    %cst_26 = arith.constant dense<0.000000e+00> : vector<8x128xf32>
    %50 = tpu.matmul %49, %21, %cst_26 {dimension_numbers = #tpu.dot_dimension_numbers<[1], [0], [0], [1], [0, 0, 1, 1], [], []>} : vector<8x32xf32>, vector<32x128xf32>, vector<8x128xf32> -> vector<8x128xf32>
    %51 = arith.addf %32, %50 : vector<8x128xf32>
    %52 = arith.addf %51, %24 : vector<8x128xf32>
    %c1 = arith.constant 1 : index
    %c0_27 = arith.constant 0 : index
    %c0_28 = arith.constant 0 : index
    %53 = vector.load %arg8[%c1, %c0_27, %c0_28] : memref<8x8x128xf32, #tpu.memory_space<vmem>>, vector<1x8x128xf32>
    %54 = vector.shape_cast %53 : vector<1x8x128xf32> to vector<8x128xf32>
    %55 = vector.shape_cast %52 : vector<8x128xf32> to vector<1x8x128xf32>
    tpu.vector_store %arg8[%c1, %c0_27, %c0_28], %55 {strides = array<i32>} : memref<8x8x128xf32, #tpu.memory_space<vmem>>, vector<1x8x128xf32>,
    %56 = vector.extract_strided_slice %20 {offsets = [1, 0, 0], sizes = [1, 8, 32], strides = [1, 1, 1]} : vector<8x8x32xf32> to vector<1x8x32xf32>
    %57 = vector.shape_cast %56 : vector<1x8x32xf32> to vector<8x32xf32>
    %58 = vector.extract_strided_slice %14 {offsets = [1, 0, 0], sizes = [1, 8, 128], strides = [1, 1, 1]} : vector<8x8x128xf32> to vector<1x8x128xf32>
    %59 = vector.shape_cast %58 : vector<1x8x128xf32> to vector<8x128xf32>
    %60 = vector.shape_cast %57 : vector<8x32xf32> to vector<8x1x32xf32>
    %61 = vector.broadcast %60 : vector<8x1x32xf32> to vector<8x8x32xf32>
    %62 = arith.mulf %61, %8 : vector<8x8x32xf32>
    %cst_29 = arith.constant dense<0.000000e+00> : vector<8x8xf32>
    %63 = vector.multi_reduction <add>, %62, %cst_29 [2] : vector<8x8x32xf32> to vector<8x8xf32>
    %cst_30 = arith.constant dense<0xFF800000> : vector<8xf32>
    %64 = vector.multi_reduction <maximumf>, %63, %cst_30 [1] : vector<8x8xf32> to vector<8xf32>
    %65 = vector.shape_cast %64 : vector<8xf32> to vector<8x1xf32>
    %66 = vector.broadcast %65 : vector<8x1xf32> to vector<8x8xf32>
    %67 = arith.subf %63, %66 : vector<8x8xf32>
    %68 = math.exp %67 : vector<8x8xf32>
    %cst_31 = arith.constant dense<0.000000e+00> : vector<8xf32>
    %69 = vector.multi_reduction <add>, %68, %cst_31 [1] : vector<8x8xf32> to vector<8xf32>
    %70 = vector.shape_cast %69 : vector<8xf32> to vector<8x1xf32>
    %71 = vector.broadcast %70 : vector<8x1xf32> to vector<8x8xf32>
    %72 = arith.divf %68, %71 : vector<8x8xf32>
    %73 = vector.shape_cast %72 : vector<8x8xf32> to vector<8x8x1xf32>
    %74 = vector.broadcast %73 : vector<8x8x1xf32> to vector<8x8x32xf32>
    %75 = arith.mulf %74, %8 : vector<8x8x32xf32>
    %cst_32 = arith.constant dense<0.000000e+00> : vector<8x32xf32>
    %76 = vector.multi_reduction <add>, %75, %cst_32 [1] : vector<8x8x32xf32> to vector<8x32xf32>
    %cst_33 = arith.constant dense<0.000000e+00> : vector<8x128xf32>
    %77 = tpu.matmul %76, %21, %cst_33 {dimension_numbers = #tpu.dot_dimension_numbers<[1], [0], [0], [1], [0, 0, 1, 1], [], []>} : vector<8x32xf32>, vector<32x128xf32>, vector<8x128xf32> -> vector<8x128xf32>
    %78 = arith.addf %59, %77 : vector<8x128xf32>
    %79 = arith.addf %78, %24 : vector<8x128xf32>
    %c2 = arith.constant 2 : index
    %c0_34 = arith.constant 0 : index
    %c0_35 = arith.constant 0 : index
    %80 = vector.load %arg8[%c2, %c0_34, %c0_35] : memref<8x8x128xf32, #tpu.memory_space<vmem>>, vector<1x8x128xf32>
    %81 = vector.shape_cast %80 : vector<1x8x128xf32> to vector<8x128xf32>
    %82 = vector.shape_cast %79 : vector<8x128xf32> to vector<1x8x128xf32>
    tpu.vector_store %arg8[%c2, %c0_34, %c0_35], %82 {strides = array<i32>} : memref<8x8x128xf32, #tpu.memory_space<vmem>>, vector<1x8x128xf32>,
    %83 = vector.extract_strided_slice %20 {offsets = [2, 0, 0], sizes = [1, 8, 32], strides = [1, 1, 1]} : vector<8x8x32xf32> to vector<1x8x32xf32>
    %84 = vector.shape_cast %83 : vector<1x8x32xf32> to vector<8x32xf32>
    %85 = vector.extract_strided_slice %14 {offsets = [2, 0, 0], sizes = [1, 8, 128], strides = [1, 1, 1]} : vector<8x8x128xf32> to vector<1x8x128xf32>
    %86 = vector.shape_cast %85 : vector<1x8x128xf32> to vector<8x128xf32>
    %87 = vector.shape_cast %84 : vector<8x32xf32> to vector<8x1x32xf32>
    %88 = vector.broadcast %87 : vector<8x1x32xf32> to vector<8x8x32xf32>
    %89 = arith.mulf %88, %8 : vector<8x8x32xf32>
    %cst_36 = arith.constant dense<0.000000e+00> : vector<8x8xf32>
    %90 = vector.multi_reduction <add>, %89, %cst_36 [2] : vector<8x8x32xf32> to vector<8x8xf32>
    %cst_37 = arith.constant dense<0xFF800000> : vector<8xf32>
    %91 = vector.multi_reduction <maximumf>, %90, %cst_37 [1] : vector<8x8xf32> to vector<8xf32>
    %92 = vector.shape_cast %91 : vector<8xf32> to vector<8x1xf32>
    %93 = vector.broadcast %92 : vector<8x1xf32> to vector<8x8xf32>
    %94 = arith.subf %90, %93 : vector<8x8xf32>
    %95 = math.exp %94 : vector<8x8xf32>
    %cst_38 = arith.constant dense<0.000000e+00> : vector<8xf32>
    %96 = vector.multi_reduction <add>, %95, %cst_38 [1] : vector<8x8xf32> to vector<8xf32>
    %97 = vector.shape_cast %96 : vector<8xf32> to vector<8x1xf32>
    %98 = vector.broadcast %97 : vector<8x1xf32> to vector<8x8xf32>
    %99 = arith.divf %95, %98 : vector<8x8xf32>
    %100 = vector.shape_cast %99 : vector<8x8xf32> to vector<8x8x1xf32>
    %101 = vector.broadcast %100 : vector<8x8x1xf32> to vector<8x8x32xf32>
    %102 = arith.mulf %101, %8 : vector<8x8x32xf32>
    %cst_39 = arith.constant dense<0.000000e+00> : vector<8x32xf32>
    %103 = vector.multi_reduction <add>, %102, %cst_39 [1] : vector<8x8x32xf32> to vector<8x32xf32>
    %cst_40 = arith.constant dense<0.000000e+00> : vector<8x128xf32>
    %104 = tpu.matmul %103, %21, %cst_40 {dimension_numbers = #tpu.dot_dimension_numbers<[1], [0], [0], [1], [0, 0, 1, 1], [], []>} : vector<8x32xf32>, vector<32x128xf32>, vector<8x128xf32> -> vector<8x128xf32>
    %105 = arith.addf %86, %104 : vector<8x128xf32>
    %106 = arith.addf %105, %24 : vector<8x128xf32>
    %c3 = arith.constant 3 : index
    %c0_41 = arith.constant 0 : index
    %c0_42 = arith.constant 0 : index
    %107 = vector.load %arg8[%c3, %c0_41, %c0_42] : memref<8x8x128xf32, #tpu.memory_space<vmem>>, vector<1x8x128xf32>
    %108 = vector.shape_cast %107 : vector<1x8x128xf32> to vector<8x128xf32>
    %109 = vector.shape_cast %106 : vector<8x128xf32> to vector<1x8x128xf32>
    tpu.vector_store %arg8[%c3, %c0_41, %c0_42], %109 {strides = array<i32>} : memref<8x8x128xf32, #tpu.memory_space<vmem>>, vector<1x8x128xf32>,
    %110 = vector.extract_strided_slice %20 {offsets = [3, 0, 0], sizes = [1, 8, 32], strides = [1, 1, 1]} : vector<8x8x32xf32> to vector<1x8x32xf32>
    %111 = vector.shape_cast %110 : vector<1x8x32xf32> to vector<8x32xf32>
    %112 = vector.extract_strided_slice %14 {offsets = [3, 0, 0], sizes = [1, 8, 128], strides = [1, 1, 1]} : vector<8x8x128xf32> to vector<1x8x128xf32>
    %113 = vector.shape_cast %112 : vector<1x8x128xf32> to vector<8x128xf32>
    %114 = vector.shape_cast %111 : vector<8x32xf32> to vector<8x1x32xf32>
    %115 = vector.broadcast %114 : vector<8x1x32xf32> to vector<8x8x32xf32>
    %116 = arith.mulf %115, %8 : vector<8x8x32xf32>
    %cst_43 = arith.constant dense<0.000000e+00> : vector<8x8xf32>
    %117 = vector.multi_reduction <add>, %116, %cst_43 [2] : vector<8x8x32xf32> to vector<8x8xf32>
    %cst_44 = arith.constant dense<0xFF800000> : vector<8xf32>
    %118 = vector.multi_reduction <maximumf>, %117, %cst_44 [1] : vector<8x8xf32> to vector<8xf32>
    %119 = vector.shape_cast %118 : vector<8xf32> to vector<8x1xf32>
    %120 = vector.broadcast %119 : vector<8x1xf32> to vector<8x8xf32>
    %121 = arith.subf %117, %120 : vector<8x8xf32>
    %122 = math.exp %121 : vector<8x8xf32>
    %cst_45 = arith.constant dense<0.000000e+00> : vector<8xf32>
    %123 = vector.multi_reduction <add>, %122, %cst_45 [1] : vector<8x8xf32> to vector<8xf32>
    %124 = vector.shape_cast %123 : vector<8xf32> to vector<8x1xf32>
    %125 = vector.broadcast %124 : vector<8x1xf32> to vector<8x8xf32>
    %126 = arith.divf %122, %125 : vector<8x8xf32>
    %127 = vector.shape_cast %126 : vector<8x8xf32> to vector<8x8x1xf32>
    %128 = vector.broadcast %127 : vector<8x8x1xf32> to vector<8x8x32xf32>
    %129 = arith.mulf %128, %8 : vector<8x8x32xf32>
    %cst_46 = arith.constant dense<0.000000e+00> : vector<8x32xf32>
    %130 = vector.multi_reduction <add>, %129, %cst_46 [1] : vector<8x8x32xf32> to vector<8x32xf32>
    %cst_47 = arith.constant dense<0.000000e+00> : vector<8x128xf32>
    %131 = tpu.matmul %130, %21, %cst_47 {dimension_numbers = #tpu.dot_dimension_numbers<[1], [0], [0], [1], [0, 0, 1, 1], [], []>} : vector<8x32xf32>, vector<32x128xf32>, vector<8x128xf32> -> vector<8x128xf32>
    %132 = arith.addf %113, %131 : vector<8x128xf32>
    %133 = arith.addf %132, %24 : vector<8x128xf32>
    %c4 = arith.constant 4 : index
    %c0_48 = arith.constant 0 : index
    %c0_49 = arith.constant 0 : index
    %134 = vector.load %arg8[%c4, %c0_48, %c0_49] : memref<8x8x128xf32, #tpu.memory_space<vmem>>, vector<1x8x128xf32>
    %135 = vector.shape_cast %134 : vector<1x8x128xf32> to vector<8x128xf32>
    %136 = vector.shape_cast %133 : vector<8x128xf32> to vector<1x8x128xf32>
    tpu.vector_store %arg8[%c4, %c0_48, %c0_49], %136 {strides = array<i32>} : memref<8x8x128xf32, #tpu.memory_space<vmem>>, vector<1x8x128xf32>,
    %137 = vector.extract_strided_slice %20 {offsets = [4, 0, 0], sizes = [1, 8, 32], strides = [1, 1, 1]} : vector<8x8x32xf32> to vector<1x8x32xf32>
    %138 = vector.shape_cast %137 : vector<1x8x32xf32> to vector<8x32xf32>
    %139 = vector.extract_strided_slice %14 {offsets = [4, 0, 0], sizes = [1, 8, 128], strides = [1, 1, 1]} : vector<8x8x128xf32> to vector<1x8x128xf32>
    %140 = vector.shape_cast %139 : vector<1x8x128xf32> to vector<8x128xf32>
    %141 = vector.shape_cast %138 : vector<8x32xf32> to vector<8x1x32xf32>
    %142 = vector.broadcast %141 : vector<8x1x32xf32> to vector<8x8x32xf32>
    %143 = arith.mulf %142, %8 : vector<8x8x32xf32>
    %cst_50 = arith.constant dense<0.000000e+00> : vector<8x8xf32>
    %144 = vector.multi_reduction <add>, %143, %cst_50 [2] : vector<8x8x32xf32> to vector<8x8xf32>
    %cst_51 = arith.constant dense<0xFF800000> : vector<8xf32>
    %145 = vector.multi_reduction <maximumf>, %144, %cst_51 [1] : vector<8x8xf32> to vector<8xf32>
    %146 = vector.shape_cast %145 : vector<8xf32> to vector<8x1xf32>
    %147 = vector.broadcast %146 : vector<8x1xf32> to vector<8x8xf32>
    %148 = arith.subf %144, %147 : vector<8x8xf32>
    %149 = math.exp %148 : vector<8x8xf32>
    %cst_52 = arith.constant dense<0.000000e+00> : vector<8xf32>
    %150 = vector.multi_reduction <add>, %149, %cst_52 [1] : vector<8x8xf32> to vector<8xf32>
    %151 = vector.shape_cast %150 : vector<8xf32> to vector<8x1xf32>
    %152 = vector.broadcast %151 : vector<8x1xf32> to vector<8x8xf32>
    %153 = arith.divf %149, %152 : vector<8x8xf32>
    %154 = vector.shape_cast %153 : vector<8x8xf32> to vector<8x8x1xf32>
    %155 = vector.broadcast %154 : vector<8x8x1xf32> to vector<8x8x32xf32>
    %156 = arith.mulf %155, %8 : vector<8x8x32xf32>
    %cst_53 = arith.constant dense<0.000000e+00> : vector<8x32xf32>
    %157 = vector.multi_reduction <add>, %156, %cst_53 [1] : vector<8x8x32xf32> to vector<8x32xf32>
    %cst_54 = arith.constant dense<0.000000e+00> : vector<8x128xf32>
    %158 = tpu.matmul %157, %21, %cst_54 {dimension_numbers = #tpu.dot_dimension_numbers<[1], [0], [0], [1], [0, 0, 1, 1], [], []>} : vector<8x32xf32>, vector<32x128xf32>, vector<8x128xf32> -> vector<8x128xf32>
    %159 = arith.addf %140, %158 : vector<8x128xf32>
    %160 = arith.addf %159, %24 : vector<8x128xf32>
    %c5 = arith.constant 5 : index
    %c0_55 = arith.constant 0 : index
    %c0_56 = arith.constant 0 : index
    %161 = vector.load %arg8[%c5, %c0_55, %c0_56] : memref<8x8x128xf32, #tpu.memory_space<vmem>>, vector<1x8x128xf32>
    %162 = vector.shape_cast %161 : vector<1x8x128xf32> to vector<8x128xf32>
    %163 = vector.shape_cast %160 : vector<8x128xf32> to vector<1x8x128xf32>
    tpu.vector_store %arg8[%c5, %c0_55, %c0_56], %163 {strides = array<i32>} : memref<8x8x128xf32, #tpu.memory_space<vmem>>, vector<1x8x128xf32>,
    %164 = vector.extract_strided_slice %20 {offsets = [5, 0, 0], sizes = [1, 8, 32], strides = [1, 1, 1]} : vector<8x8x32xf32> to vector<1x8x32xf32>
    %165 = vector.shape_cast %164 : vector<1x8x32xf32> to vector<8x32xf32>
    %166 = vector.extract_strided_slice %14 {offsets = [5, 0, 0], sizes = [1, 8, 128], strides = [1, 1, 1]} : vector<8x8x128xf32> to vector<1x8x128xf32>
    %167 = vector.shape_cast %166 : vector<1x8x128xf32> to vector<8x128xf32>
    %168 = vector.shape_cast %165 : vector<8x32xf32> to vector<8x1x32xf32>
    %169 = vector.broadcast %168 : vector<8x1x32xf32> to vector<8x8x32xf32>
    %170 = arith.mulf %169, %8 : vector<8x8x32xf32>
    %cst_57 = arith.constant dense<0.000000e+00> : vector<8x8xf32>
    %171 = vector.multi_reduction <add>, %170, %cst_57 [2] : vector<8x8x32xf32> to vector<8x8xf32>
    %cst_58 = arith.constant dense<0xFF800000> : vector<8xf32>
    %172 = vector.multi_reduction <maximumf>, %171, %cst_58 [1] : vector<8x8xf32> to vector<8xf32>
    %173 = vector.shape_cast %172 : vector<8xf32> to vector<8x1xf32>
    %174 = vector.broadcast %173 : vector<8x1xf32> to vector<8x8xf32>
    %175 = arith.subf %171, %174 : vector<8x8xf32>
    %176 = math.exp %175 : vector<8x8xf32>
    %cst_59 = arith.constant dense<0.000000e+00> : vector<8xf32>
    %177 = vector.multi_reduction <add>, %176, %cst_59 [1] : vector<8x8xf32> to vector<8xf32>
    %178 = vector.shape_cast %177 : vector<8xf32> to vector<8x1xf32>
    %179 = vector.broadcast %178 : vector<8x1xf32> to vector<8x8xf32>
    %180 = arith.divf %176, %179 : vector<8x8xf32>
    %181 = vector.shape_cast %180 : vector<8x8xf32> to vector<8x8x1xf32>
    %182 = vector.broadcast %181 : vector<8x8x1xf32> to vector<8x8x32xf32>
    %183 = arith.mulf %182, %8 : vector<8x8x32xf32>
    %cst_60 = arith.constant dense<0.000000e+00> : vector<8x32xf32>
    %184 = vector.multi_reduction <add>, %183, %cst_60 [1] : vector<8x8x32xf32> to vector<8x32xf32>
    %cst_61 = arith.constant dense<0.000000e+00> : vector<8x128xf32>
    %185 = tpu.matmul %184, %21, %cst_61 {dimension_numbers = #tpu.dot_dimension_numbers<[1], [0], [0], [1], [0, 0, 1, 1], [], []>} : vector<8x32xf32>, vector<32x128xf32>, vector<8x128xf32> -> vector<8x128xf32>
    %186 = arith.addf %167, %185 : vector<8x128xf32>
    %187 = arith.addf %186, %24 : vector<8x128xf32>
    %c6 = arith.constant 6 : index
    %c0_62 = arith.constant 0 : index
    %c0_63 = arith.constant 0 : index
    %188 = vector.load %arg8[%c6, %c0_62, %c0_63] : memref<8x8x128xf32, #tpu.memory_space<vmem>>, vector<1x8x128xf32>
    %189 = vector.shape_cast %188 : vector<1x8x128xf32> to vector<8x128xf32>
    %190 = vector.shape_cast %187 : vector<8x128xf32> to vector<1x8x128xf32>
    tpu.vector_store %arg8[%c6, %c0_62, %c0_63], %190 {strides = array<i32>} : memref<8x8x128xf32, #tpu.memory_space<vmem>>, vector<1x8x128xf32>,
    %191 = vector.extract_strided_slice %20 {offsets = [6, 0, 0], sizes = [1, 8, 32], strides = [1, 1, 1]} : vector<8x8x32xf32> to vector<1x8x32xf32>
    %192 = vector.shape_cast %191 : vector<1x8x32xf32> to vector<8x32xf32>
    %193 = vector.extract_strided_slice %14 {offsets = [6, 0, 0], sizes = [1, 8, 128], strides = [1, 1, 1]} : vector<8x8x128xf32> to vector<1x8x128xf32>
    %194 = vector.shape_cast %193 : vector<1x8x128xf32> to vector<8x128xf32>
    %195 = vector.shape_cast %192 : vector<8x32xf32> to vector<8x1x32xf32>
    %196 = vector.broadcast %195 : vector<8x1x32xf32> to vector<8x8x32xf32>
    %197 = arith.mulf %196, %8 : vector<8x8x32xf32>
    %cst_64 = arith.constant dense<0.000000e+00> : vector<8x8xf32>
    %198 = vector.multi_reduction <add>, %197, %cst_64 [2] : vector<8x8x32xf32> to vector<8x8xf32>
    %cst_65 = arith.constant dense<0xFF800000> : vector<8xf32>
    %199 = vector.multi_reduction <maximumf>, %198, %cst_65 [1] : vector<8x8xf32> to vector<8xf32>
    %200 = vector.shape_cast %199 : vector<8xf32> to vector<8x1xf32>
    %201 = vector.broadcast %200 : vector<8x1xf32> to vector<8x8xf32>
    %202 = arith.subf %198, %201 : vector<8x8xf32>
    %203 = math.exp %202 : vector<8x8xf32>
    %cst_66 = arith.constant dense<0.000000e+00> : vector<8xf32>
    %204 = vector.multi_reduction <add>, %203, %cst_66 [1] : vector<8x8xf32> to vector<8xf32>
    %205 = vector.shape_cast %204 : vector<8xf32> to vector<8x1xf32>
    %206 = vector.broadcast %205 : vector<8x1xf32> to vector<8x8xf32>
    %207 = arith.divf %203, %206 : vector<8x8xf32>
    %208 = vector.shape_cast %207 : vector<8x8xf32> to vector<8x8x1xf32>
    %209 = vector.broadcast %208 : vector<8x8x1xf32> to vector<8x8x32xf32>
    %210 = arith.mulf %209, %8 : vector<8x8x32xf32>
    %cst_67 = arith.constant dense<0.000000e+00> : vector<8x32xf32>
    %211 = vector.multi_reduction <add>, %210, %cst_67 [1] : vector<8x8x32xf32> to vector<8x32xf32>
    %cst_68 = arith.constant dense<0.000000e+00> : vector<8x128xf32>
    %212 = tpu.matmul %211, %21, %cst_68 {dimension_numbers = #tpu.dot_dimension_numbers<[1], [0], [0], [1], [0, 0, 1, 1], [], []>} : vector<8x32xf32>, vector<32x128xf32>, vector<8x128xf32> -> vector<8x128xf32>
    %213 = arith.addf %194, %212 : vector<8x128xf32>
    %214 = arith.addf %213, %24 : vector<8x128xf32>
    %c7 = arith.constant 7 : index
    %c0_69 = arith.constant 0 : index
    %c0_70 = arith.constant 0 : index
    %215 = vector.load %arg8[%c7, %c0_69, %c0_70] : memref<8x8x128xf32, #tpu.memory_space<vmem>>, vector<1x8x128xf32>
    %216 = vector.shape_cast %215 : vector<1x8x128xf32> to vector<8x128xf32>
    %217 = vector.shape_cast %214 : vector<8x128xf32> to vector<1x8x128xf32>
    tpu.vector_store %arg8[%c7, %c0_69, %c0_70], %217 {strides = array<i32>} : memref<8x8x128xf32, #tpu.memory_space<vmem>>, vector<1x8x128xf32>,
    return
  }
}

</mosaic_0001>

<llo_original>
// kernel: _fused_forward.1
$region0: #{_fused_forward.1}
  #allocation0 [shape = 'u32[]', space=smem, size = 0x4, offset = 0x4, fixed_abs, tag = 'smem constant byte address 0x4 - core index']
  #allocation1 [shape = 'u32[72,128]{1,0:T(1,128)}', space=vmem, size = 0x9000, scoped, tag = 'internal scratch']
  %s0 = inlined_call_operand.vmem [shape: f32[8,8,128], index: 0, kind: input, shape index: {}]
  %s1 = inlined_call_operand.vmem [shape: f32[8,8,128], index: 1, kind: input, shape index: {}]
  %s2 = inlined_call_operand.vmem [shape: f32[128,32], index: 2, kind: input, shape index: {}]
  %s3 = inlined_call_operand.vmem [shape: f32[1,32], index: 3, kind: input, shape index: {}]
  %s4 = inlined_call_operand.vmem [shape: f32[128,160], index: 4, kind: input, shape index: {}]
  %s5 = inlined_call_operand.vmem [shape: f32[1,32], index: 5, kind: input, shape index: {}]
  %s6 = inlined_call_operand.vmem [shape: f32[32,128], index: 6, kind: input, shape index: {}]
  %s7 = inlined_call_operand.vmem [shape: f32[1,128], index: 7, kind: input, shape index: {}]
  %s8 = inlined_call_operand.vmem [shape: f32[8,8,128], index: 8, kind: output, shape index: {}]
  %s9 = sld [smem:[#allocation0]]
  $region42: #{_fused_forward.1} parent=0
    _
  %s11 = ssub.s32 1, %s9
  %s12 = scalar_select 0, %s11, %s9
  // Predicated region
  $region2: #{_fused_forward.1} parent=0 // pred_check
    _
  $region3: #{_fused_forward.1} parent=0 // pred_check_branch
    %14 = sbr.rel (0) target = $region5
  $region4: #{_fused_forward.1} parent=0 // pred_region
    _
  $region5: #{_fused_forward.1} parent=0 // pred_fallthru
    _
  // Predicated region
  $region6: #{_fused_forward.1} parent=0 // pred_check
    _
  $region7: #{_fused_forward.1} parent=0 // pred_check_branch
    %16 = sbr.rel (0) target = $region9
  $region8: #{_fused_forward.1} parent=0 // pred_region
    _
  $region9: #{_fused_forward.1} parent=0 // pred_fallthru
    _
  // Predicated region
  $region10: #{_fused_forward.1} parent=0 // pred_check
    _
  $region11: #{_fused_forward.1} parent=0 // pred_check_branch
    %18 = sbr.rel (0) target = $region13
  $region12: #{_fused_forward.1} parent=0 // pred_region
    _
  $region13: #{_fused_forward.1} parent=0 // pred_fallthru
    _
  // Predicated region
  $region14: #{_fused_forward.1} parent=0 // pred_check
    _
  $region15: #{_fused_forward.1} parent=0 // pred_check_branch
    %20 = sbr.rel (0) target = $region17
  $region16: #{_fused_forward.1} parent=0 // pred_region
    _
  $region17: #{_fused_forward.1} parent=0 // pred_fallthru
    _
  // Predicated region
  $region18: #{_fused_forward.1} parent=0 // pred_check
    _
  $region19: #{_fused_forward.1} parent=0 // pred_check_branch
    %22 = sbr.rel (0) target = $region21
  $region20: #{_fused_forward.1} parent=0 // pred_region
    _
  $region21: #{_fused_forward.1} parent=0 // pred_fallthru
    _
  // Predicated region
  $region22: #{_fused_forward.1} parent=0 // pred_check
    _
  $region23: #{_fused_forward.1} parent=0 // pred_check_branch
    %24 = sbr.rel (0) target = $region25
  $region24: #{_fused_forward.1} parent=0 // pred_region
    _
  $region25: #{_fused_forward.1} parent=0 // pred_fallthru
    _
  // Predicated region
  $region26: #{_fused_forward.1} parent=0 // pred_check
    _
  $region27: #{_fused_forward.1} parent=0 // pred_check_branch
    %26 = sbr.rel (0) target = $region29
  $region28: #{_fused_forward.1} parent=0 // pred_region
    _
  $region29: #{_fused_forward.1} parent=0 // pred_fallthru
    _
  // Predicated region
  $region30: #{_fused_forward.1} parent=0 // pred_check
    _
  $region31: #{_fused_forward.1} parent=0 // pred_check_branch
    %28 = sbr.rel (0) target = $region33
  $region32: #{_fused_forward.1} parent=0 // pred_region
    _
  $region33: #{_fused_forward.1} parent=0 // pred_fallthru
    _
  %v29 = vld [vmem:[%s0] sm:$0xff]
  %v30 = vld [vmem:[%s0 + $0x8] sm:$0xff]
  %v31 = vld [vmem:[%s0 + $0x10] sm:$0xff]
  %v32 = vld [vmem:[%s0 + $0x18] sm:$0xff]
  %v33 = vld [vmem:[%s0 + $0x20] sm:$0xff]
  %v34 = vld [vmem:[%s0 + $0x28] sm:$0xff]
  %v35 = vld [vmem:[%s0 + $0x30] sm:$0xff]
  %v36 = vld [vmem:[%s0 + $0x38] sm:$0xff]
  %v37 = vld [vmem:[%s2] sm:$0xff]
  %v38 = vld [vmem:[%s2 + $0x8] sm:$0xff]
  %v39 = vld [vmem:[%s2 + $0x10] sm:$0xff]
  %v40 = vld [vmem:[%s2 + $0x18] sm:$0xff]
  %v41 = vld [vmem:[%s2 + $0x20] sm:$0xff]
  %v42 = vld [vmem:[%s2 + $0x28] sm:$0xff]
  %v43 = vld [vmem:[%s2 + $0x30] sm:$0xff]
  %v44 = vld [vmem:[%s2 + $0x38] sm:$0xff]
  %v45 = vld [vmem:[%s2 + $0x40] sm:$0xff]
  %v46 = vld [vmem:[%s2 + $0x48] sm:$0xff]
  %v47 = vld [vmem:[%s2 + $0x50] sm:$0xff]
  %v48 = vld [vmem:[%s2 + $0x58] sm:$0xff]
  %v49 = vld [vmem:[%s2 + $0x60] sm:$0xff]
  %v50 = vld [vmem:[%s2 + $0x68] sm:$0xff]
  %v51 = vld [vmem:[%s2 + $0x70] sm:$0xff]
  %v52 = vld [vmem:[%s2 + $0x78] sm:$0xff]
  %v53 = vld [vmem:[%s3] sm:$0x1]
  %v55 = vperm.slane %v53, 0
  %57 = vmatpush.msra.mxu0 %v52
  %58 = vmatpush.msra.mxu0 %v51
  %59 = vmatpush.msra.mxu0 %v50
  %60 = vmatpush.msra.mxu0 %v49
  %61 = vmatpush.msra.mxu0 %v48
  %62 = vmatpush.msra.mxu0 %v47
  %63 = vmatpush.msra.mxu0 %v46
  %64 = vmatpush.msra.mxu0 %v45
  %65 = vmatpush.msra.mxu0 %v44
  %66 = vmatpush.msra.mxu0 %v43
  %67 = vmatpush.msra.mxu0 %v42
  %68 = vmatpush.msra.mxu0 %v41
  %69 = vmatpush.msra.mxu0 %v40
  %70 = vmatpush.msra.mxu0 %v39
  %71 = vmatpush.msra.mxu0 %v38
  %72 = vmatpush.msra.mxu0 %v37
  %73 = vmatmul.f32.gmra.mxu0 %v29
  %v74 = vpop.f32.mrf.mxu0
  %v75 = vadd.f32 %v55, %v74
  %76 = vmatmul.f32.gmra.mxu0 %v30
  %v77 = vpop.f32.mrf.mxu0
  %v78 = vadd.f32 %v55, %v77
  %79 = vmatmul.f32.gmra.mxu0 %v31
  %v80 = vpop.f32.mrf.mxu0
  %v81 = vadd.f32 %v55, %v80
  %82 = vmatmul.f32.gmra.mxu0 %v32
  %v83 = vpop.f32.mrf.mxu0
  %v84 = vadd.f32 %v55, %v83
  %85 = vmatmul.f32.gmra.mxu0 %v33
  %v86 = vpop.f32.mrf.mxu0
  %v87 = vadd.f32 %v55, %v86
  %88 = vmatmul.f32.gmra.mxu0 %v34
  %v89 = vpop.f32.mrf.mxu0
  %v90 = vadd.f32 %v55, %v89
  %91 = vmatmul.f32.gmra.mxu0 %v35
  %v92 = vpop.f32.mrf.mxu0
  %v93 = vadd.f32 %v55, %v92
  %94 = vmatmul.f32.gmra.mxu0 %v36
  %v95 = vpop.f32.mrf.mxu0
  %v96 = vadd.f32 %v55, %v95
  %97 = vdwg.mxu0
  %v98 = vtanh.pop %v75
  %v99 = vtanh.pop %v78
  %v100 = vtanh.pop %v81
  %v101 = vtanh.pop %v84
  %v102 = vtanh.pop %v87
  %v103 = vtanh.pop %v90
  %v104 = vtanh.pop %v93
  %v105 = vtanh.pop %v96
  %v106 = vld [vmem:[%s4] sm:$0xff]
  %v107 = vld [vmem:[%s4 + $0x8] sm:$0xff]
  %v108 = vld [vmem:[%s4 + $0x10] sm:$0xff]
  %v109 = vld [vmem:[%s4 + $0x18] sm:$0xff]
  %v110 = vld [vmem:[%s4 + $0x20] sm:$0xff]
  %v111 = vld [vmem:[%s4 + $0x28] sm:$0xff]
  %v112 = vld [vmem:[%s4 + $0x30] sm:$0xff]
  %v113 = vld [vmem:[%s4 + $0x38] sm:$0xff]
  %v114 = vld [vmem:[%s4 + $0x40] sm:$0xff]
  %v115 = vld [vmem:[%s4 + $0x48] sm:$0xff]
  %v116 = vld [vmem:[%s4 + $0x50] sm:$0xff]
  %v117 = vld [vmem:[%s4 + $0x58] sm:$0xff]
  %v118 = vld [vmem:[%s4 + $0x60] sm:$0xff]
  %v119 = vld [vmem:[%s4 + $0x68] sm:$0xff]
  %v120 = vld [vmem:[%s4 + $0x70] sm:$0xff]
  %v121 = vld [vmem:[%s4 + $0x78] sm:$0xff]
  %v122 = vld [vmem:[%s4 + $0x80] sm:$0xff]
  %v123 = vld [vmem:[%s4 + $0x88] sm:$0xff]
  %v124 = vld [vmem:[%s4 + $0x90] sm:$0xff]
  %v125 = vld [vmem:[%s4 + $0x98] sm:$0xff]
  %v126 = vld [vmem:[%s4 + $0xa0] sm:$0xff]
  %v127 = vld [vmem:[%s4 + $0xa8] sm:$0xff]
  %v128 = vld [vmem:[%s4 + $0xb0] sm:$0xff]
  %v129 = vld [vmem:[%s4 + $0xb8] sm:$0xff]
  %v130 = vld [vmem:[%s4 + $0xc0] sm:$0xff]
  %v131 = vld [vmem:[%s4 + $0xc8] sm:$0xff]
  %v132 = vld [vmem:[%s4 + $0xd0] sm:$0xff]
  %v133 = vld [vmem:[%s4 + $0xd8] sm:$0xff]
  %v134 = vld [vmem:[%s4 + $0xe0] sm:$0xff]
  %v135 = vld [vmem:[%s4 + $0xe8] sm:$0xff]
  %v136 = vld [vmem:[%s4 + $0xf0] sm:$0xff]
  %v137 = vld [vmem:[%s4 + $0xf8] sm:$0xff]
  %v138 = vld [vmem:[%s1] sm:$0xff]
  %v139 = vld [vmem:[%s1 + $0x8] sm:$0xff]
  %v140 = vld [vmem:[%s1 + $0x10] sm:$0xff]
  %v141 = vld [vmem:[%s1 + $0x18] sm:$0xff]
  %v142 = vld [vmem:[%s1 + $0x20] sm:$0xff]
  %v143 = vld [vmem:[%s1 + $0x28] sm:$0xff]
  %v144 = vld [vmem:[%s1 + $0x30] sm:$0xff]
  %v145 = vld [vmem:[%s1 + $0x38] sm:$0xff]
  %146 = vmatpush.msra.mxu0 %v136
  %147 = vmatpush.msra.mxu0 %v134
  %148 = vmatpush.msra.mxu0 %v132
  %149 = vmatpush.msra.mxu0 %v130
  %150 = vmatpush.msra.mxu0 %v128
  %151 = vmatpush.msra.mxu0 %v126
  %152 = vmatpush.msra.mxu0 %v124
  %153 = vmatpush.msra.mxu0 %v122
  %154 = vmatpush.msra.mxu0 %v120
  %155 = vmatpush.msra.mxu0 %v118
  %156 = vmatpush.msra.mxu0 %v116
  %157 = vmatpush.msra.mxu0 %v114
  %158 = vmatpush.msra.mxu0 %v112
  %159 = vmatpush.msra.mxu0 %v110
  %160 = vmatpush.msra.mxu0 %v108
  %161 = vmatpush.msra.mxu0 %v106
  %162 = vmatmul.f32.gmra.mxu0 %v138
  %v163 = vpop.f32.mrf.mxu0
  %v164 = vadd.f32 0.0, %v163
  %165 = vmatmul.f32.gmra.mxu0 %v139
  %v166 = vpop.f32.mrf.mxu0
  %v167 = vadd.f32 0.0, %v166
  %168 = vmatmul.f32.gmra.mxu0 %v140
  %v169 = vpop.f32.mrf.mxu0
  %v170 = vadd.f32 0.0, %v169
  %171 = vmatmul.f32.gmra.mxu0 %v141
  %v172 = vpop.f32.mrf.mxu0
  %v173 = vadd.f32 0.0, %v172
  %174 = vmatmul.f32.gmra.mxu0 %v142
  %v175 = vpop.f32.mrf.mxu0
  %v176 = vadd.f32 0.0, %v175
  %177 = vmatmul.f32.gmra.mxu0 %v143
  %v178 = vpop.f32.mrf.mxu0
  %v179 = vadd.f32 0.0, %v178
  %180 = vmatmul.f32.gmra.mxu0 %v144
  %v181 = vpop.f32.mrf.mxu0
  %v182 = vadd.f32 0.0, %v181
  %183 = vmatmul.f32.gmra.mxu0 %v145
  %v184 = vpop.f32.mrf.mxu0
  %185 = vdwg.mxu0
  %186 = vmatpush.msra.mxu0 %v137
  %187 = vmatpush.msra.mxu0 %v135
  %188 = vmatpush.msra.mxu0 %v133
  %189 = vmatpush.msra.mxu0 %v131
  %190 = vmatpush.msra.mxu0 %v129
  %191 = vmatpush.msra.mxu0 %v127
  %192 = vmatpush.msra.mxu0 %v125
  %193 = vmatpush.msra.mxu0 %v123
  %194 = vmatpush.msra.mxu0 %v121
  %195 = vmatpush.msra.mxu0 %v119
  %196 = vmatpush.msra.mxu0 %v117
  %197 = vmatpush.msra.mxu0 %v115
  %198 = vmatpush.msra.mxu0 %v113
  %199 = vmatpush.msra.mxu0 %v111
  %200 = vmatpush.msra.mxu0 %v109
  %201 = vmatpush.msra.mxu0 %v107
  %202 = vmatmul.f32.gmra.mxu0 %v138
  %v203 = vpop.f32.mrf.mxu0
  %v204 = vadd.f32 0.0, %v203
  %205 = vmatmul.f32.gmra.mxu0 %v139
  %v206 = vpop.f32.mrf.mxu0
  %v207 = vadd.f32 0.0, %v206
  %208 = vmatmul.f32.gmra.mxu0 %v140
  %v209 = vpop.f32.mrf.mxu0
  %v210 = vadd.f32 0.0, %v209
  %211 = vmatmul.f32.gmra.mxu0 %v141
  %v212 = vpop.f32.mrf.mxu0
  %v213 = vadd.f32 0.0, %v212
  %214 = vmatmul.f32.gmra.mxu0 %v142
  %v215 = vpop.f32.mrf.mxu0
  %v216 = vadd.f32 0.0, %v215
  %217 = vmatmul.f32.gmra.mxu0 %v143
  %v218 = vpop.f32.mrf.mxu0
  %v219 = vadd.f32 0.0, %v218
  %220 = vmatmul.f32.gmra.mxu0 %v144
  %v221 = vpop.f32.mrf.mxu0
  %v222 = vadd.f32 0.0, %v221
  %223 = vmatmul.f32.gmra.mxu0 %v145
  %v224 = vpop.f32.mrf.mxu0
  %225 = vdwg.mxu0
  %v226 = vld [vmem:[%s5] sm:$0x1]
  %v228 = vperm.slane %v226, 0
  %v230 = vadd.f32 %v204, %v228
  %v231 = vadd.f32 %v207, %v228
  %v232 = vadd.f32 %v210, %v228
  %v233 = vadd.f32 %v213, %v228
  %v234 = vadd.f32 %v216, %v228
  %v235 = vadd.f32 %v219, %v228
  %v236 = vadd.f32 %v222, %v228
  %v237 = vtanh.pop %v230
  %v238 = vtanh.pop %v231
  %v239 = vtanh.pop %v232
  %v240 = vtanh.pop %v233
  %v241 = vtanh.pop %v234
  %v242 = vtanh.pop %v235
  %v243 = vtanh.pop %v236
  %v244 = vld [vmem:[%s6] sm:$0xff]
  %v245 = vld [vmem:[%s6 + $0x8] sm:$0xff]
  %v246 = vld [vmem:[%s6 + $0x10] sm:$0xff]
  %v247 = vld [vmem:[%s6 + $0x18] sm:$0xff]
  %v248 = vld [vmem:[%s7] sm:$0x1]
  %v250 = vperm.slane %v248, 0
  %252 = vst [vmem:[%s8] sm:$0xff] 0.0
  %v254 = vrot.slane %v237, 1
  %v255 = vrot.slane %v237, 2
  %v256 = vrot.slane %v237, 3
  %v257 = vrot.slane %v237, 4
  %v258 = vrot.slane %v237, 5
  %v259 = vrot.slane %v237, 6
  %v260 = vrot.slane %v237, 7
  %v261 = vperm.slane %v237, 0
  %v262 = vperm.slane %v254, 0
  %v263 = vperm.slane %v255, 0
  %v264 = vperm.slane %v256, 0
  %v265 = vperm.slane %v257, 0
  %v266 = vperm.slane %v258, 0
  %v267 = vperm.slane %v259, 0
  %v268 = vperm.slane %v260, 0
  %v277 = vmul.f32 %v261, %v98
  %v278 = vmul.f32 %v262, %v99
  %v279 = vmul.f32 %v263, %v100
  %v280 = vmul.f32 %v264, %v101
  %v281 = vmul.f32 %v265, %v102
  %v282 = vmul.f32 %v266, %v103
  %v283 = vmul.f32 %v267, %v104
  %v284 = vmul.f32 %v268, %v105
  %vm285 = vcmask 261120
  %v286 = vsel %vm285, %v277, 0.0
  %287 = vadd.xlane.f32.xlu0 %v286
  %v288 = vpop.xlane.xlu0 %287
  %v289 = vsel %vm285, %v278, 0.0
  %290 = vadd.xlane.f32.xlu0 %v289
  %v291 = vpop.xlane.xlu0 %290
  %v292 = vsel %vm285, %v279, 0.0
  %293 = vadd.xlane.f32.xlu0 %v292
  %v294 = vpop.xlane.xlu0 %293
  %v295 = vsel %vm285, %v280, 0.0
  %296 = vadd.xlane.f32.xlu0 %v295
  %v297 = vpop.xlane.xlu0 %296
  %v298 = vsel %vm285, %v281, 0.0
  %299 = vadd.xlane.f32.xlu0 %v298
  %v300 = vpop.xlane.xlu0 %299
  %v301 = vsel %vm285, %v282, 0.0
  %302 = vadd.xlane.f32.xlu0 %v301
  %v303 = vpop.xlane.xlu0 %302
  %v304 = vsel %vm285, %v283, 0.0
  %305 = vadd.xlane.f32.xlu0 %v304
  %v306 = vpop.xlane.xlu0 %305
  %v307 = vsel %vm285, %v284, 0.0
  %308 = vadd.xlane.f32.xlu0 %v307
  %v309 = vpop.xlane.xlu0 %308
  %v318 = vlaneseq
  %v319 = vand.u32 %v318, 127
  %v320 = vperm.slane %v288, %v319
  %v321 = vperm.slane %v291, %v319
  %v322 = vperm.slane %v294, %v319
  %v323 = vperm.slane %v297, %v319
  %v324 = vperm.slane %v300, %v319
  %v325 = vperm.slane %v303, %v319
  %v326 = vperm.slane %v306, %v319
  %v327 = vperm.slane %v309, %v319
  %vm328 = vcmask 1041409
  %v329 = vsel %vm328, %v321, %v320
  %vm330 = vcmask 1042434
  %v331 = vsel %vm330, %v322, %v329
  %vm332 = vcmask 1043459
  %v333 = vsel %vm332, %v323, %v331
  %vm334 = vcmask 1044484
  %v335 = vsel %vm334, %v324, %v333
  %vm336 = vcmask 1045509
  %v337 = vsel %vm336, %v325, %v335
  %vm338 = vcmask 1046534
  %v339 = vsel %vm338, %v326, %v337
  %vm340 = vcmask 1047559
  %v341 = vsel %vm340, %v327, %v339
  %vm343 = vcmask 64512
  %v344 = vsel %vm343, %v341, -inf
  %345 = vmax.xlane.f32.xlu0 %v344
  %v346 = vpop.xlane.xlu0 %345
  %v348 = vperm.slane %v346, 0
  %v349 = vperm.slane %v346, 1
  %v350 = vperm.slane %v346, 2
  %v351 = vperm.slane %v346, 3
  %v352 = vperm.slane %v346, 4
  %v353 = vperm.slane %v346, 5
  %v354 = vperm.slane %v346, 6
  %v355 = vperm.slane %v346, 7
  %v364 = vsub.f32 %v288, %v348
  %v365 = vsub.f32 %v291, %v349
  %v366 = vsub.f32 %v294, %v350
  %v367 = vsub.f32 %v297, %v351
  %v368 = vsub.f32 %v300, %v352
  %v369 = vsub.f32 %v303, %v353
  %v370 = vsub.f32 %v306, %v354
  %v371 = vsub.f32 %v309, %v355
  %v372 = vmul.f32 %v364, 1.442695
  %v373 = vpow.pop %v372
  %v374 = vmul.f32 %v365, 1.442695
  %v375 = vpow.pop %v374
  %v376 = vmul.f32 %v366, 1.442695
  %v377 = vpow.pop %v376
  %v378 = vmul.f32 %v367, 1.442695
  %v379 = vpow.pop %v378
  %v380 = vmul.f32 %v368, 1.442695
  %v381 = vpow.pop %v380
  %v382 = vmul.f32 %v369, 1.442695
  %v383 = vpow.pop %v382
  %v384 = vmul.f32 %v370, 1.442695
  %v385 = vpow.pop %v384
  %v386 = vmul.f32 %v371, 1.442695
  %v387 = vpow.pop %v386
  %396 = vset.pattern.permute.xlu0 0
  %397 = vperm.xlu0 %396, %v373
  %v398 = vpop.permute.xlu0 %397
  %399 = vset.pattern.permute.xlu0 0
  %400 = vperm.xlu0 %399, %v375
  %v401 = vpop.permute.xlu0 %400
  %402 = vset.pattern.permute.xlu0 0
  %403 = vperm.xlu0 %402, %v377
  %v404 = vpop.permute.xlu0 %403
  %405 = vset.pattern.permute.xlu0 0
  %406 = vperm.xlu0 %405, %v379
  %v407 = vpop.permute.xlu0 %406
  %408 = vset.pattern.permute.xlu0 0
  %409 = vperm.xlu0 %408, %v381
  %v410 = vpop.permute.xlu0 %409
  %411 = vset.pattern.permute.xlu0 0
  %412 = vperm.xlu0 %411, %v383
  %v413 = vpop.permute.xlu0 %412
  %414 = vset.pattern.permute.xlu0 0
  %415 = vperm.xlu0 %414, %v385
  %v416 = vpop.permute.xlu0 %415
  %417 = vset.pattern.permute.xlu0 0
  %418 = vperm.xlu0 %417, %v387
  %v419 = vpop.permute.xlu0 %418
  %v420 = vperm.slane %v398, %v319
  %v421 = vperm.slane %v401, %v319
  %v422 = vperm.slane %v404, %v319
  %v423 = vperm.slane %v407, %v319
  %v424 = vperm.slane %v410, %v319
  %v425 = vperm.slane %v413, %v319
  %v426 = vperm.slane %v416, %v319
  %v427 = vperm.slane %v419, %v319
  %v428 = vsel %vm328, %v421, %v420
  %v429 = vsel %vm330, %v422, %v428
  %v430 = vsel %vm332, %v423, %v429
  %v431 = vsel %vm334, %v424, %v430
  %v432 = vsel %vm336, %v425, %v431
  %v433 = vsel %vm338, %v426, %v432
  %v434 = vsel %vm340, %v427, %v433
  %v436 = vsel %vm343, %v434, 0.0
  %437 = vadd.xlane.f32.xlu0 %v436
  %v438 = vpop.xlane.xlu0 %437
  %v440 = vperm.slane %v438, 0
  %v441 = vperm.slane %v438, 1
  %v442 = vperm.slane %v438, 2
  %v443 = vperm.slane %v438, 3
  %v444 = vperm.slane %v438, 4
  %v445 = vperm.slane %v438, 5
  %v446 = vperm.slane %v438, 6
  %v447 = vperm.slane %v438, 7
  %v456 = vrcp.pop %v440
  %v457 = vmul.f32 %v440, %v456
  %v458 = vsub.f32 1.0, %v457
  %v459 = vmul.f32 %v456, %v458
  %v460 = vadd.f32 %v456, %v459
  %vm461 = vweird.f32 %v440
  %vm462 = vweird.f32 %v456
  %vm463 = vmor %vm461, %vm462
  %v464 = vsel %vm463, %v456, %v460
  %v465 = vand.u32 2147483647, %v440
  %vm466 = vcmp.eq.f32.partialorder %v465, 8.507059e+37
  %v467 = vand.u32 %v440, 2147483648
  %v468 = vor.u32 1.1754944e-38, %v467
  %v469 = vsel %vm466, %v468, %v464
  %v470 = vmul.f32 %v373, %v469
  %v471 = vrcp.pop %v441
  %v472 = vmul.f32 %v441, %v471
  %v473 = vsub.f32 1.0, %v472
  %v474 = vmul.f32 %v471, %v473
  %v475 = vadd.f32 %v471, %v474
  %vm476 = vweird.f32 %v441
  %vm477 = vweird.f32 %v471
  %vm478 = vmor %vm476, %vm477
  %v479 = vsel %vm478, %v471, %v475
  %v480 = vand.u32 2147483647, %v441
  %vm481 = vcmp.eq.f32.partialorder %v480, 8.507059e+37
  %v482 = vand.u32 %v441, 2147483648
  %v483 = vor.u32 1.1754944e-38, %v482
  %v484 = vsel %vm481, %v483, %v479
  %v485 = vmul.f32 %v375, %v484
  %v486 = vrcp.pop %v442
  %v487 = vmul.f32 %v442, %v486
  %v488 = vsub.f32 1.0, %v487
  %v489 = vmul.f32 %v486, %v488
  %v490 = vadd.f32 %v486, %v489
  %vm491 = vweird.f32 %v442
  %vm492 = vweird.f32 %v486
  %vm493 = vmor %vm491, %vm492
  %v494 = vsel %vm493, %v486, %v490
  %v495 = vand.u32 2147483647, %v442
  %vm496 = vcmp.eq.f32.partialorder %v495, 8.507059e+37
  %v497 = vand.u32 %v442, 2147483648
  %v498 = vor.u32 1.1754944e-38, %v497
  %v499 = vsel %vm496, %v498, %v494
  %v500 = vmul.f32 %v377, %v499
  %v501 = vrcp.pop %v443
  %v502 = vmul.f32 %v443, %v501
  %v503 = vsub.f32 1.0, %v502
  %v504 = vmul.f32 %v501, %v503
  %v505 = vadd.f32 %v501, %v504
  %vm506 = vweird.f32 %v443
  %vm507 = vweird.f32 %v501
  %vm508 = vmor %vm506, %vm507
  %v509 = vsel %vm508, %v501, %v505
  %v510 = vand.u32 2147483647, %v443
  %vm511 = vcmp.eq.f32.partialorder %v510, 8.507059e+37
  %v512 = vand.u32 %v443, 2147483648
  %v513 = vor.u32 1.1754944e-38, %v512
  %v514 = vsel %vm511, %v513, %v509
  %v515 = vmul.f32 %v379, %v514
  %v516 = vrcp.pop %v444
  %v517 = vmul.f32 %v444, %v516
  %v518 = vsub.f32 1.0, %v517
  %v519 = vmul.f32 %v516, %v518
  %v520 = vadd.f32 %v516, %v519
  %vm521 = vweird.f32 %v444
  %vm522 = vweird.f32 %v516
  %vm523 = vmor %vm521, %vm522
  %v524 = vsel %vm523, %v516, %v520
  %v525 = vand.u32 2147483647, %v444
  %vm526 = vcmp.eq.f32.partialorder %v525, 8.507059e+37
  %v527 = vand.u32 %v444, 2147483648
  %v528 = vor.u32 1.1754944e-38, %v527
  %v529 = vsel %vm526, %v528, %v524
  %v530 = vmul.f32 %v381, %v529
  %v531 = vrcp.pop %v445
  %v532 = vmul.f32 %v445, %v531
  %v533 = vsub.f32 1.0, %v532
  %v534 = vmul.f32 %v531, %v533
  %v535 = vadd.f32 %v531, %v534
  %vm536 = vweird.f32 %v445
  %vm537 = vweird.f32 %v531
  %vm538 = vmor %vm536, %vm537
  %v539 = vsel %vm538, %v531, %v535
  %v540 = vand.u32 2147483647, %v445
  %vm541 = vcmp.eq.f32.partialorder %v540, 8.507059e+37
  %v542 = vand.u32 %v445, 2147483648
  %v543 = vor.u32 1.1754944e-38, %v542
  %v544 = vsel %vm541, %v543, %v539
  %v545 = vmul.f32 %v383, %v544
  %v546 = vrcp.pop %v446
  %v547 = vmul.f32 %v446, %v546
  %v548 = vsub.f32 1.0, %v547
  %v549 = vmul.f32 %v546, %v548
  %v550 = vadd.f32 %v546, %v549
  %vm551 = vweird.f32 %v446
  %vm552 = vweird.f32 %v546
  %vm553 = vmor %vm551, %vm552
  %v554 = vsel %vm553, %v546, %v550
  %v555 = vand.u32 2147483647, %v446
  %vm556 = vcmp.eq.f32.partialorder %v555, 8.507059e+37
  %v557 = vand.u32 %v446, 2147483648
  %v558 = vor.u32 1.1754944e-38, %v557
  %v559 = vsel %vm556, %v558, %v554
  %v560 = vmul.f32 %v385, %v559
  %v561 = vrcp.pop %v447
  %v562 = vmul.f32 %v447, %v561
  %v563 = vsub.f32 1.0, %v562
  %v564 = vmul.f32 %v561, %v563
  %v565 = vadd.f32 %v561, %v564
  %vm566 = vweird.f32 %v447
  %vm567 = vweird.f32 %v561
  %vm568 = vmor %vm566, %vm567
  %v569 = vsel %vm568, %v561, %v565
  %v570 = vand.u32 2147483647, %v447
  %vm571 = vcmp.eq.f32.partialorder %v570, 8.507059e+37
  %v572 = vand.u32 %v447, 2147483648
  %v573 = vor.u32 1.1754944e-38, %v572
  %v574 = vsel %vm571, %v573, %v569
  %v575 = vmul.f32 %v387, %v574
  %577 = vset.pattern.permute.xlu0 0
  %578 = vperm.xlu0 %577, %v470
  %v579 = vpop.permute.xlu0 %578
  %582 = vset.pattern.permute.xlu0 0
  %583 = vperm.xlu0 %582, %v485
  %v584 = vpop.permute.xlu0 %583
  %587 = vset.pattern.permute.xlu0 0
  %588 = vperm.xlu0 %587, %v500
  %v589 = vpop.permute.xlu0 %588
  %592 = vset.pattern.permute.xlu0 0
  %593 = vperm.xlu0 %592, %v515
  %v594 = vpop.permute.xlu0 %593
  %597 = vset.pattern.permute.xlu0 0
  %598 = vperm.xlu0 %597, %v530
  %v599 = vpop.permute.xlu0 %598
  %602 = vset.pattern.permute.xlu0 0
  %603 = vperm.xlu0 %602, %v545
  %v604 = vpop.permute.xlu0 %603
  %607 = vset.pattern.permute.xlu0 0
  %608 = vperm.xlu0 %607, %v560
  %v609 = vpop.permute.xlu0 %608
  %612 = vset.pattern.permute.xlu0 0
  %613 = vperm.xlu0 %612, %v575
  %v614 = vpop.permute.xlu0 %613
  %v616 = vmul.f32 %v579, %v98
  %v617 = vmul.f32 %v584, %v99
  %v618 = vmul.f32 %v589, %v100
  %v619 = vmul.f32 %v594, %v101
  %v620 = vmul.f32 %v599, %v102
  %v621 = vmul.f32 %v604, %v103
  %v622 = vmul.f32 %v609, %v104
  %v623 = vmul.f32 %v614, %v105
  %v624 = vsel %vm285, %v616, 0.0
  %v625 = vrot.slane %v624, 4
  %v626 = vadd.f32 %v624, %v625
  %v627 = vrot.slane %v626, 2
  %v628 = vadd.f32 %v626, %v627
  %v629 = vrot.slane %v628, 1
  %v630 = vadd.f32 %v628, %v629
  %v631 = vsel %vm285, %v617, 0.0
  %v632 = vrot.slane %v631, 4
  %v633 = vadd.f32 %v631, %v632
  %v634 = vrot.slane %v633, 2
  %v635 = vadd.f32 %v633, %v634
  %v636 = vrot.slane %v635, 1
  %v637 = vadd.f32 %v635, %v636
  %v638 = vsel %vm285, %v618, 0.0
  %v639 = vrot.slane %v638, 4
  %v640 = vadd.f32 %v638, %v639
  %v641 = vrot.slane %v640, 2
  %v642 = vadd.f32 %v640, %v641
  %v643 = vrot.slane %v642, 1
  %v644 = vadd.f32 %v642, %v643
  %v645 = vsel %vm285, %v619, 0.0
  %v646 = vrot.slane %v645, 4
  %v647 = vadd.f32 %v645, %v646
  %v648 = vrot.slane %v647, 2
  %v649 = vadd.f32 %v647, %v648
  %v650 = vrot.slane %v649, 1
  %v651 = vadd.f32 %v649, %v650
  %v652 = vsel %vm285, %v620, 0.0
  %v653 = vrot.slane %v652, 4
  %v654 = vadd.f32 %v652, %v653
  %v655 = vrot.slane %v654, 2
  %v656 = vadd.f32 %v654, %v655
  %v657 = vrot.slane %v656, 1
  %v658 = vadd.f32 %v656, %v657
  %v659 = vsel %vm285, %v621, 0.0
  %v660 = vrot.slane %v659, 4
  %v661 = vadd.f32 %v659, %v660
  %v662 = vrot.slane %v661, 2
  %v663 = vadd.f32 %v661, %v662
  %v664 = vrot.slane %v663, 1
  %v665 = vadd.f32 %v663, %v664
  %v666 = vsel %vm285, %v622, 0.0
  %v667 = vrot.slane %v666, 4
  %v668 = vadd.f32 %v666, %v667
  %v669 = vrot.slane %v668, 2
  %v670 = vadd.f32 %v668, %v669
  %v671 = vrot.slane %v670, 1
  %v672 = vadd.f32 %v670, %v671
  %v673 = vsel %vm285, %v623, 0.0
  %v674 = vrot.slane %v673, 4
  %v675 = vadd.f32 %v673, %v674
  %v676 = vrot.slane %v675, 2
  %v677 = vadd.f32 %v675, %v676
  %v678 = vrot.slane %v677, 1
  %v679 = vadd.f32 %v677, %v678
  %v688 = vsel %vm328, %v637, %v630
  %v689 = vsel %vm330, %v644, %v688
  %v690 = vsel %vm332, %v651, %v689
  %v691 = vsel %vm334, %v658, %v690
  %v692 = vsel %vm336, %v665, %v691
  %v693 = vsel %vm338, %v672, %v692
  %v694 = vsel %vm340, %v679, %v693
  %v695 = vsel %vm285, %v694, 0
  %697 = vmatpush.msra.mxu0 0.0
  %698 = vmatpush.msra.mxu0 0.0
  %699 = vmatpush.msra.mxu0 0.0
  %700 = vmatpush.msra.mxu0 0.0
  %701 = vmatpush.msra.mxu0 0.0
  %702 = vmatpush.msra.mxu0 0.0
  %703 = vmatpush.msra.mxu0 0.0
  %704 = vmatpush.msra.mxu0 0.0
  %705 = vmatpush.msra.mxu0 0.0
  %706 = vmatpush.msra.mxu0 0.0
  %707 = vmatpush.msra.mxu0 0.0
  %708 = vmatpush.msra.mxu0 0.0
  %709 = vmatpush.msra.mxu0 %v247
  %710 = vmatpush.msra.mxu0 %v246
  %711 = vmatpush.msra.mxu0 %v245
  %712 = vmatpush.msra.mxu0 %v244
  %713 = vmatmul.f32.gmra.mxu0 %v695
  %v714 = vpop.f32.mrf.mxu0
  %v715 = vadd.f32 0.0, %v714
  %716 = vdwg.mxu0
  %v717 = vadd.f32 %v164, %v715
  %v718 = vadd.f32 %v717, %v250
  %s719 = scalar_lea.vmem %s8, 8
  %720 = vst [vmem:[%s719] sm:$0xff] %v718
  %v722 = vrot.slane %v238, 1
  %v723 = vrot.slane %v238, 2
  %v724 = vrot.slane %v238, 3
  %v725 = vrot.slane %v238, 4
  %v726 = vrot.slane %v238, 5
  %v727 = vrot.slane %v238, 6
  %v728 = vrot.slane %v238, 7
  %v729 = vperm.slane %v238, 0
  %v730 = vperm.slane %v722, 0
  %v731 = vperm.slane %v723, 0
  %v732 = vperm.slane %v724, 0
  %v733 = vperm.slane %v725, 0
  %v734 = vperm.slane %v726, 0
  %v735 = vperm.slane %v727, 0
  %v736 = vperm.slane %v728, 0
  %v745 = vmul.f32 %v729, %v98
  %v746 = vmul.f32 %v730, %v99
  %v747 = vmul.f32 %v731, %v100
  %v748 = vmul.f32 %v732, %v101
  %v749 = vmul.f32 %v733, %v102
  %v750 = vmul.f32 %v734, %v103
  %v751 = vmul.f32 %v735, %v104
  %v752 = vmul.f32 %v736, %v105
  %v753 = vsel %vm285, %v745, 0.0
  %754 = vadd.xlane.f32.xlu0 %v753
  %v755 = vpop.xlane.xlu0 %754
  %v756 = vsel %vm285, %v746, 0.0
  %757 = vadd.xlane.f32.xlu0 %v756
  %v758 = vpop.xlane.xlu0 %757
  %v759 = vsel %vm285, %v747, 0.0
  %760 = vadd.xlane.f32.xlu0 %v759
  %v761 = vpop.xlane.xlu0 %760
  %v762 = vsel %vm285, %v748, 0.0
  %763 = vadd.xlane.f32.xlu0 %v762
  %v764 = vpop.xlane.xlu0 %763
  %v765 = vsel %vm285, %v749, 0.0
  %766 = vadd.xlane.f32.xlu0 %v765
  %v767 = vpop.xlane.xlu0 %766
  %v768 = vsel %vm285, %v750, 0.0
  %769 = vadd.xlane.f32.xlu0 %v768
  %v770 = vpop.xlane.xlu0 %769
  %v771 = vsel %vm285, %v751, 0.0
  %772 = vadd.xlane.f32.xlu0 %v771
  %v773 = vpop.xlane.xlu0 %772
  %v774 = vsel %vm285, %v752, 0.0
  %775 = vadd.xlane.f32.xlu0 %v774
  %v776 = vpop.xlane.xlu0 %775
  %v785 = vperm.slane %v755, %v319
  %v786 = vperm.slane %v758, %v319
  %v787 = vperm.slane %v761, %v319
  %v788 = vperm.slane %v764, %v319
  %v789 = vperm.slane %v767, %v319
  %v790 = vperm.slane %v770, %v319
  %v791 = vperm.slane %v773, %v319
  %v792 = vperm.slane %v776, %v319
  %v793 = vsel %vm328, %v786, %v785
  %v794 = vsel %vm330, %v787, %v793
  %v795 = vsel %vm332, %v788, %v794
  %v796 = vsel %vm334, %v789, %v795
  %v797 = vsel %vm336, %v790, %v796
  %v798 = vsel %vm338, %v791, %v797
  %v799 = vsel %vm340, %v792, %v798
  %v801 = vsel %vm343, %v799, -inf
  %802 = vmax.xlane.f32.xlu0 %v801
  %v803 = vpop.xlane.xlu0 %802
  %v805 = vperm.slane %v803, 0
  %v806 = vperm.slane %v803, 1
  %v807 = vperm.slane %v803, 2
  %v808 = vperm.slane %v803, 3
  %v809 = vperm.slane %v803, 4
  %v810 = vperm.slane %v803, 5
  %v811 = vperm.slane %v803, 6
  %v812 = vperm.slane %v803, 7
  %v821 = vsub.f32 %v755, %v805
  %v822 = vsub.f32 %v758, %v806
  %v823 = vsub.f32 %v761, %v807
  %v824 = vsub.f32 %v764, %v808
  %v825 = vsub.f32 %v767, %v809
  %v826 = vsub.f32 %v770, %v810
  %v827 = vsub.f32 %v773, %v811
  %v828 = vsub.f32 %v776, %v812
  %v829 = vmul.f32 %v821, 1.442695
  %v830 = vpow.pop %v829
  %v831 = vmul.f32 %v822, 1.442695
  %v832 = vpow.pop %v831
  %v833 = vmul.f32 %v823, 1.442695
  %v834 = vpow.pop %v833
  %v835 = vmul.f32 %v824, 1.442695
  %v836 = vpow.pop %v835
  %v837 = vmul.f32 %v825, 1.442695
  %v838 = vpow.pop %v837
  %v839 = vmul.f32 %v826, 1.442695
  %v840 = vpow.pop %v839
  %v841 = vmul.f32 %v827, 1.442695
  %v842 = vpow.pop %v841
  %v843 = vmul.f32 %v828, 1.442695
  %v844 = vpow.pop %v843
  %853 = vset.pattern.permute.xlu0 0
  %854 = vperm.xlu0 %853, %v830
  %v855 = vpop.permute.xlu0 %854
  %856 = vset.pattern.permute.xlu0 0
  %857 = vperm.xlu0 %856, %v832
  %v858 = vpop.permute.xlu0 %857
  %859 = vset.pattern.permute.xlu0 0
  %860 = vperm.xlu0 %859, %v834
  %v861 = vpop.permute.xlu0 %860
  %862 = vset.pattern.permute.xlu0 0
  %863 = vperm.xlu0 %862, %v836
  %v864 = vpop.permute.xlu0 %863
  %865 = vset.pattern.permute.xlu0 0
  %866 = vperm.xlu0 %865, %v838
  %v867 = vpop.permute.xlu0 %866
  %868 = vset.pattern.permute.xlu0 0
  %869 = vperm.xlu0 %868, %v840
  %v870 = vpop.permute.xlu0 %869
  %871 = vset.pattern.permute.xlu0 0
  %872 = vperm.xlu0 %871, %v842
  %v873 = vpop.permute.xlu0 %872
  %874 = vset.pattern.permute.xlu0 0
  %875 = vperm.xlu0 %874, %v844
  %v876 = vpop.permute.xlu0 %875
  %v877 = vperm.slane %v855, %v319
  %v878 = vperm.slane %v858, %v319
  %v879 = vperm.slane %v861, %v319
  %v880 = vperm.slane %v864, %v319
  %v881 = vperm.slane %v867, %v319
  %v882 = vperm.slane %v870, %v319
  %v883 = vperm.slane %v873, %v319
  %v884 = vperm.slane %v876, %v319
  %v885 = vsel %vm328, %v878, %v877
  %v886 = vsel %vm330, %v879, %v885
  %v887 = vsel %vm332, %v880, %v886
  %v888 = vsel %vm334, %v881, %v887
  %v889 = vsel %vm336, %v882, %v888
  %v890 = vsel %vm338, %v883, %v889
  %v891 = vsel %vm340, %v884, %v890
  %v893 = vsel %vm343, %v891, 0.0
  %894 = vadd.xlane.f32.xlu0 %v893
  %v895 = vpop.xlane.xlu0 %894
  %v897 = vperm.slane %v895, 0
  %v898 = vperm.slane %v895, 1
  %v899 = vperm.slane %v895, 2
  %v900 = vperm.slane %v895, 3
  %v901 = vperm.slane %v895, 4
  %v902 = vperm.slane %v895, 5
  %v903 = vperm.slane %v895, 6
  %v904 = vperm.slane %v895, 7
  %v913 = vrcp.pop %v897
  %v914 = vmul.f32 %v897, %v913
  %v915 = vsub.f32 1.0, %v914
  %v916 = vmul.f32 %v913, %v915
  %v917 = vadd.f32 %v913, %v916
  %vm918 = vweird.f32 %v897
  %vm919 = vweird.f32 %v913
  %vm920 = vmor %vm918, %vm919
  %v921 = vsel %vm920, %v913, %v917
  %v922 = vand.u32 2147483647, %v897
  %vm923 = vcmp.eq.f32.partialorder %v922, 8.507059e+37
  %v924 = vand.u32 %v897, 2147483648
  %v925 = vor.u32 1.1754944e-38, %v924
  %v926 = vsel %vm923, %v925, %v921
  %v927 = vmul.f32 %v830, %v926
  %v928 = vrcp.pop %v898
  %v929 = vmul.f32 %v898, %v928
  %v930 = vsub.f32 1.0, %v929
  %v931 = vmul.f32 %v928, %v930
  %v932 = vadd.f32 %v928, %v931
  %vm933 = vweird.f32 %v898
  %vm934 = vweird.f32 %v928
  %vm935 = vmor %vm933, %vm934
  %v936 = vsel %vm935, %v928, %v932
  %v937 = vand.u32 2147483647, %v898
  %vm938 = vcmp.eq.f32.partialorder %v937, 8.507059e+37
  %v939 = vand.u32 %v898, 2147483648
  %v940 = vor.u32 1.1754944e-38, %v939
  %v941 = vsel %vm938, %v940, %v936
  %v942 = vmul.f32 %v832, %v941
  %v943 = vrcp.pop %v899
  %v944 = vmul.f32 %v899, %v943
  %v945 = vsub.f32 1.0, %v944
  %v946 = vmul.f32 %v943, %v945
  %v947 = vadd.f32 %v943, %v946
  %vm948 = vweird.f32 %v899
  %vm949 = vweird.f32 %v943
  %vm950 = vmor %vm948, %vm949
  %v951 = vsel %vm950, %v943, %v947
  %v952 = vand.u32 2147483647, %v899
  %vm953 = vcmp.eq.f32.partialorder %v952, 8.507059e+37
  %v954 = vand.u32 %v899, 2147483648
  %v955 = vor.u32 1.1754944e-38, %v954
  %v956 = vsel %vm953, %v955, %v951
  %v957 = vmul.f32 %v834, %v956
  %v958 = vrcp.pop %v900
  %v959 = vmul.f32 %v900, %v958
  %v960 = vsub.f32 1.0, %v959
  %v961 = vmul.f32 %v958, %v960
  %v962 = vadd.f32 %v958, %v961
  %vm963 = vweird.f32 %v900
  %vm964 = vweird.f32 %v958
  %vm965 = vmor %vm963, %vm964
  %v966 = vsel %vm965, %v958, %v962
  %v967 = vand.u32 2147483647, %v900
  %vm968 = vcmp.eq.f32.partialorder %v967, 8.507059e+37
  %v969 = vand.u32 %v900, 2147483648
  %v970 = vor.u32 1.1754944e-38, %v969
  %v971 = vsel %vm968, %v970, %v966
  %v972 = vmul.f32 %v836, %v971
  %v973 = vrcp.pop %v901
  %v974 = vmul.f32 %v901, %v973
  %v975 = vsub.f32 1.0, %v974
  %v976 = vmul.f32 %v973, %v975
  %v977 = vadd.f32 %v973, %v976
  %vm978 = vweird.f32 %v901
  %vm979 = vweird.f32 %v973
  %vm980 = vmor %vm978, %vm979
  %v981 = vsel %vm980, %v973, %v977
  %v982 = vand.u32 2147483647, %v901
  %vm983 = vcmp.eq.f32.partialorder %v982, 8.507059e+37
  %v984 = vand.u32 %v901, 2147483648
  %v985 = vor.u32 1.1754944e-38, %v984
  %v986 = vsel %vm983, %v985, %v981
  %v987 = vmul.f32 %v838, %v986
  %v988 = vrcp.pop %v902
  %v989 = vmul.f32 %v902, %v988
  %v990 = vsub.f32 1.0, %v989
  %v991 = vmul.f32 %v988, %v990
  %v992 = vadd.f32 %v988, %v991
  %vm993 = vweird.f32 %v902
  %vm994 = vweird.f32 %v988
  %vm995 = vmor %vm993, %vm994
  %v996 = vsel %vm995, %v988, %v992
  %v997 = vand.u32 2147483647, %v902
  %vm998 = vcmp.eq.f32.partialorder %v997, 8.507059e+37
  %v999 = vand.u32 %v902, 2147483648
  %v1000 = vor.u32 1.1754944e-38, %v999
  %v1001 = vsel %vm998, %v1000, %v996
  %v1002 = vmul.f32 %v840, %v1001
  %v1003 = vrcp.pop %v903
  %v1004 = vmul.f32 %v903, %v1003
  %v1005 = vsub.f32 1.0, %v1004
  %v1006 = vmul.f32 %v1003, %v1005
  %v1007 = vadd.f32 %v1003, %v1006
  %vm1008 = vweird.f32 %v903
  %vm1009 = vweird.f32 %v1003
  %vm1010 = vmor %vm1008, %vm1009
  %v1011 = vsel %vm1010, %v1003, %v1007
  %v1012 = vand.u32 2147483647, %v903
  %vm1013 = vcmp.eq.f32.partialorder %v1012, 8.507059e+37
  %v1014 = vand.u32 %v903, 2147483648
  %v1015 = vor.u32 1.1754944e-38, %v1014
  %v1016 = vsel %vm1013, %v1015, %v1011
  %v1017 = vmul.f32 %v842, %v1016
  %v1018 = vrcp.pop %v904
  %v1019 = vmul.f32 %v904, %v1018
  %v1020 = vsub.f32 1.0, %v1019
  %v1021 = vmul.f32 %v1018, %v1020
  %v1022 = vadd.f32 %v1018, %v1021
  %vm1023 = vweird.f32 %v904
  %vm1024 = vweird.f32 %v1018
  %vm1025 = vmor %vm1023, %vm1024
  %v1026 = vsel %vm1025, %v1018, %v1022
  %v1027 = vand.u32 2147483647, %v904
  %vm1028 = vcmp.eq.f32.partialorder %v1027, 8.507059e+37
  %v1029 = vand.u32 %v904, 2147483648
  %v1030 = vor.u32 1.1754944e-38, %v1029
  %v1031 = vsel %vm1028, %v1030, %v1026
  %v1032 = vmul.f32 %v844, %v1031
  %1034 = vset.pattern.permute.xlu0 0
  %1035 = vperm.xlu0 %1034, %v927
  %v1036 = vpop.permute.xlu0 %1035
  %1039 = vset.pattern.permute.xlu0 0
  %1040 = vperm.xlu0 %1039, %v942
  %v1041 = vpop.permute.xlu0 %1040
  %1044 = vset.pattern.permute.xlu0 0
  %1045 = vperm.xlu0 %1044, %v957
  %v1046 = vpop.permute.xlu0 %1045
  %1049 = vset.pattern.permute.xlu0 0
  %1050 = vperm.xlu0 %1049, %v972
  %v1051 = vpop.permute.xlu0 %1050
  %1054 = vset.pattern.permute.xlu0 0
  %1055 = vperm.xlu0 %1054, %v987
  %v1056 = vpop.permute.xlu0 %1055
  %1059 = vset.pattern.permute.xlu0 0
  %1060 = vperm.xlu0 %1059, %v1002
  %v1061 = vpop.permute.xlu0 %1060
  %1064 = vset.pattern.permute.xlu0 0
  %1065 = vperm.xlu0 %1064, %v1017
  %v1066 = vpop.permute.xlu0 %1065
  %1069 = vset.pattern.permute.xlu0 0
  %1070 = vperm.xlu0 %1069, %v1032
  %v1071 = vpop.permute.xlu0 %1070
  %v1073 = vmul.f32 %v1036, %v98
  %v1074 = vmul.f32 %v1041, %v99
  %v1075 = vmul.f32 %v1046, %v100
  %v1076 = vmul.f32 %v1051, %v101
  %v1077 = vmul.f32 %v1056, %v102
  %v1078 = vmul.f32 %v1061, %v103
  %v1079 = vmul.f32 %v1066, %v104
  %v1080 = vmul.f32 %v1071, %v105
  %v1081 = vsel %vm285, %v1073, 0.0
  %v1082 = vrot.slane %v1081, 4
  %v1083 = vadd.f32 %v1081, %v1082
  %v1084 = vrot.slane %v1083, 2
  %v1085 = vadd.f32 %v1083, %v1084
  %v1086 = vrot.slane %v1085, 1
  %v1087 = vadd.f32 %v1085, %v1086
  %v1088 = vsel %vm285, %v1074, 0.0
  %v1089 = vrot.slane %v1088, 4
  %v1090 = vadd.f32 %v1088, %v1089
  %v1091 = vrot.slane %v1090, 2
  %v1092 = vadd.f32 %v1090, %v1091
  %v1093 = vrot.slane %v1092, 1
  %v1094 = vadd.f32 %v1092, %v1093
  %v1095 = vsel %vm285, %v1075, 0.0
  %v1096 = vrot.slane %v1095, 4
  %v1097 = vadd.f32 %v1095, %v1096
  %v1098 = vrot.slane %v1097, 2
  %v1099 = vadd.f32 %v1097, %v1098
  %v1100 = vrot.slane %v1099, 1
  %v1101 = vadd.f32 %v1099, %v1100
  %v1102 = vsel %vm285, %v1076, 0.0
  %v1103 = vrot.slane %v1102, 4
  %v1104 = vadd.f32 %v1102, %v1103
  %v1105 = vrot.slane %v1104, 2
  %v1106 = vadd.f32 %v1104, %v1105
  %v1107 = vrot.slane %v1106, 1
  %v1108 = vadd.f32 %v1106, %v1107
  %v1109 = vsel %vm285, %v1077, 0.0
  %v1110 = vrot.slane %v1109, 4
  %v1111 = vadd.f32 %v1109, %v1110
  %v1112 = vrot.slane %v1111, 2
  %v1113 = vadd.f32 %v1111, %v1112
  %v1114 = vrot.slane %v1113, 1
  %v1115 = vadd.f32 %v1113, %v1114
  %v1116 = vsel %vm285, %v1078, 0.0
  %v1117 = vrot.slane %v1116, 4
  %v1118 = vadd.f32 %v1116, %v1117
  %v1119 = vrot.slane %v1118, 2
  %v1120 = vadd.f32 %v1118, %v1119
  %v1121 = vrot.slane %v1120, 1
  %v1122 = vadd.f32 %v1120, %v1121
  %v1123 = vsel %vm285, %v1079, 0.0
  %v1124 = vrot.slane %v1123, 4
  %v1125 = vadd.f32 %v1123, %v1124
  %v1126 = vrot.slane %v1125, 2
  %v1127 = vadd.f32 %v1125, %v1126
  %v1128 = vrot.slane %v1127, 1
  %v1129 = vadd.f32 %v1127, %v1128
  %v1130 = vsel %vm285, %v1080, 0.0
  %v1131 = vrot.slane %v1130, 4
  %v1132 = vadd.f32 %v1130, %v1131
  %v1133 = vrot.slane %v1132, 2
  %v1134 = vadd.f32 %v1132, %v1133
  %v1135 = vrot.slane %v1134, 1
  %v1136 = vadd.f32 %v1134, %v1135
  %v1145 = vsel %vm328, %v1094, %v1087
  %v1146 = vsel %vm330, %v1101, %v1145
  %v1147 = vsel %vm332, %v1108, %v1146
  %v1148 = vsel %vm334, %v1115, %v1147
  %v1149 = vsel %vm336, %v1122, %v1148
  %v1150 = vsel %vm338, %v1129, %v1149
  %v1151 = vsel %vm340, %v1136, %v1150
  %v1152 = vsel %vm285, %v1151, 0
  %1154 = vmatpush.msra.mxu0 0.0
  %1155 = vmatpush.msra.mxu0 0.0
  %1156 = vmatpush.msra.mxu0 0.0
  %1157 = vmatpush.msra.mxu0 0.0
  %1158 = vmatpush.msra.mxu0 0.0
  %1159 = vmatpush.msra.mxu0 0.0
  %1160 = vmatpush.msra.mxu0 0.0
  %1161 = vmatpush.msra.mxu0 0.0
  %1162 = vmatpush.msra.mxu0 0.0
  %1163 = vmatpush.msra.mxu0 0.0
  %1164 = vmatpush.msra.mxu0 0.0
  %1165 = vmatpush.msra.mxu0 0.0
  %1166 = vmatpush.msra.mxu0 %v247
  %1167 = vmatpush.msra.mxu0 %v246
  %1168 = vmatpush.msra.mxu0 %v245
  %1169 = vmatpush.msra.mxu0 %v244
  %1170 = vmatmul.f32.gmra.mxu0 %v1152
  %v1171 = vpop.f32.mrf.mxu0
  %v1172 = vadd.f32 0.0, %v1171
  %1173 = vdwg.mxu0
  %v1174 = vadd.f32 %v167, %v1172
  %v1175 = vadd.f32 %v1174, %v250
  %s1176 = scalar_lea.vmem %s8, 16
  %1177 = vst [vmem:[%s1176] sm:$0xff] %v1175
  %v1179 = vrot.slane %v239, 1
  %v1180 = vrot.slane %v239, 2
  %v1181 = vrot.slane %v239, 3
  %v1182 = vrot.slane %v239, 4
  %v1183 = vrot.slane %v239, 5
  %v1184 = vrot.slane %v239, 6
  %v1185 = vrot.slane %v239, 7
  %v1186 = vperm.slane %v239, 0
  %v1187 = vperm.slane %v1179, 0
  %v1188 = vperm.slane %v1180, 0
  %v1189 = vperm.slane %v1181, 0
  %v1190 = vperm.slane %v1182, 0
  %v1191 = vperm.slane %v1183, 0
  %v1192 = vperm.slane %v1184, 0
  %v1193 = vperm.slane %v1185, 0
  %v1202 = vmul.f32 %v1186, %v98
  %v1203 = vmul.f32 %v1187, %v99
  %v1204 = vmul.f32 %v1188, %v100
  %v1205 = vmul.f32 %v1189, %v101
  %v1206 = vmul.f32 %v1190, %v102
  %v1207 = vmul.f32 %v1191, %v103
  %v1208 = vmul.f32 %v1192, %v104
  %v1209 = vmul.f32 %v1193, %v105
  %v1210 = vsel %vm285, %v1202, 0.0
  %1211 = vadd.xlane.f32.xlu0 %v1210
  %v1212 = vpop.xlane.xlu0 %1211
  %v1213 = vsel %vm285, %v1203, 0.0
  %1214 = vadd.xlane.f32.xlu0 %v1213
  %v1215 = vpop.xlane.xlu0 %1214
  %v1216 = vsel %vm285, %v1204, 0.0
  %1217 = vadd.xlane.f32.xlu0 %v1216
  %v1218 = vpop.xlane.xlu0 %1217
  %v1219 = vsel %vm285, %v1205, 0.0
  %1220 = vadd.xlane.f32.xlu0 %v1219
  %v1221 = vpop.xlane.xlu0 %1220
  %v1222 = vsel %vm285, %v1206, 0.0
  %1223 = vadd.xlane.f32.xlu0 %v1222
  %v1224 = vpop.xlane.xlu0 %1223
  %v1225 = vsel %vm285, %v1207, 0.0
  %1226 = vadd.xlane.f32.xlu0 %v1225
  %v1227 = vpop.xlane.xlu0 %1226
  %v1228 = vsel %vm285, %v1208, 0.0
  %1229 = vadd.xlane.f32.xlu0 %v1228
  %v1230 = vpop.xlane.xlu0 %1229
  %v1231 = vsel %vm285, %v1209, 0.0
  %1232 = vadd.xlane.f32.xlu0 %v1231
  %v1233 = vpop.xlane.xlu0 %1232
  %v1242 = vperm.slane %v1212, %v319
  %v1243 = vperm.slane %v1215, %v319
  %v1244 = vperm.slane %v1218, %v319
  %v1245 = vperm.slane %v1221, %v319
  %v1246 = vperm.slane %v1224, %v319
  %v1247 = vperm.slane %v1227, %v319
  %v1248 = vperm.slane %v1230, %v319
  %v1249 = vperm.slane %v1233, %v319
  %v1250 = vsel %vm328, %v1243, %v1242
  %v1251 = vsel %vm330, %v1244, %v1250
  %v1252 = vsel %vm332, %v1245, %v1251
  %v1253 = vsel %vm334, %v1246, %v1252
  %v1254 = vsel %vm336, %v1247, %v1253
  %v1255 = vsel %vm338, %v1248, %v1254
  %v1256 = vsel %vm340, %v1249, %v1255
  %v1258 = vsel %vm343, %v1256, -inf
  %1259 = vmax.xlane.f32.xlu0 %v1258
  %v1260 = vpop.xlane.xlu0 %1259
  %v1262 = vperm.slane %v1260, 0
  %v1263 = vperm.slane %v1260, 1
  %v1264 = vperm.slane %v1260, 2
  %v1265 = vperm.slane %v1260, 3
  %v1266 = vperm.slane %v1260, 4
  %v1267 = vperm.slane %v1260, 5
  %v1268 = vperm.slane %v1260, 6
  %v1269 = vperm.slane %v1260, 7
  %v1278 = vsub.f32 %v1212, %v1262
  %v1279 = vsub.f32 %v1215, %v1263
  %v1280 = vsub.f32 %v1218, %v1264
  %v1281 = vsub.f32 %v1221, %v1265
  %v1282 = vsub.f32 %v1224, %v1266
  %v1283 = vsub.f32 %v1227, %v1267
  %v1284 = vsub.f32 %v1230, %v1268
  %v1285 = vsub.f32 %v1233, %v1269
  %v1286 = vmul.f32 %v1278, 1.442695
  %v1287 = vpow.pop %v1286
  %v1288 = vmul.f32 %v1279, 1.442695
  %v1289 = vpow.pop %v1288
  %v1290 = vmul.f32 %v1280, 1.442695
  %v1291 = vpow.pop %v1290
  %v1292 = vmul.f32 %v1281, 1.442695
  %v1293 = vpow.pop %v1292
  %v1294 = vmul.f32 %v1282, 1.442695
  %v1295 = vpow.pop %v1294
  %v1296 = vmul.f32 %v1283, 1.442695
  %v1297 = vpow.pop %v1296
  %v1298 = vmul.f32 %v1284, 1.442695
  %v1299 = vpow.pop %v1298
  %v1300 = vmul.f32 %v1285, 1.442695
  %v1301 = vpow.pop %v1300
  %1310 = vset.pattern.permute.xlu0 0
  %1311 = vperm.xlu0 %1310, %v1287
  %v1312 = vpop.permute.xlu0 %1311
  %1313 = vset.pattern.permute.xlu0 0
  %1314 = vperm.xlu0 %1313, %v1289
  %v1315 = vpop.permute.xlu0 %1314
  %1316 = vset.pattern.permute.xlu0 0
  %1317 = vperm.xlu0 %1316, %v1291
  %v1318 = vpop.permute.xlu0 %1317
  %1319 = vset.pattern.permute.xlu0 0
  %1320 = vperm.xlu0 %1319, %v1293
  %v1321 = vpop.permute.xlu0 %1320
  %1322 = vset.pattern.permute.xlu0 0
  %1323 = vperm.xlu0 %1322, %v1295
  %v1324 = vpop.permute.xlu0 %1323
  %1325 = vset.pattern.permute.xlu0 0
  %1326 = vperm.xlu0 %1325, %v1297
  %v1327 = vpop.permute.xlu0 %1326
  %1328 = vset.pattern.permute.xlu0 0
  %1329 = vperm.xlu0 %1328, %v1299
  %v1330 = vpop.permute.xlu0 %1329
  %1331 = vset.pattern.permute.xlu0 0
  %1332 = vperm.xlu0 %1331, %v1301
  %v1333 = vpop.permute.xlu0 %1332
  %v1334 = vperm.slane %v1312, %v319
  %v1335 = vperm.slane %v1315, %v319
  %v1336 = vperm.slane %v1318, %v319
  %v1337 = vperm.slane %v1321, %v319
  %v1338 = vperm.slane %v1324, %v319
  %v1339 = vperm.slane %v1327, %v319
  %v1340 = vperm.slane %v1330, %v319
  %v1341 = vperm.slane %v1333, %v319
  %v1342 = vsel %vm328, %v1335, %v1334
  %v1343 = vsel %vm330, %v1336, %v1342
  %v1344 = vsel %vm332, %v1337, %v1343
  %v1345 = vsel %vm334, %v1338, %v1344
  %v1346 = vsel %vm336, %v1339, %v1345
  %v1347 = vsel %vm338, %v1340, %v1346
  %v1348 = vsel %vm340, %v1341, %v1347
  %v1350 = vsel %vm343, %v1348, 0.0
  %1351 = vadd.xlane.f32.xlu0 %v1350
  %v1352 = vpop.xlane.xlu0 %1351
  %v1354 = vperm.slane %v1352, 0
  %v1355 = vperm.slane %v1352, 1
  %v1356 = vperm.slane %v1352, 2
  %v1357 = vperm.slane %v1352, 3
  %v1358 = vperm.slane %v1352, 4
  %v1359 = vperm.slane %v1352, 5
  %v1360 = vperm.slane %v1352, 6
  %v1361 = vperm.slane %v1352, 7
  %v1370 = vrcp.pop %v1354
  %v1371 = vmul.f32 %v1354, %v1370
  %v1372 = vsub.f32 1.0, %v1371
  %v1373 = vmul.f32 %v1370, %v1372
  %v1374 = vadd.f32 %v1370, %v1373
  %vm1375 = vweird.f32 %v1354
  %vm1376 = vweird.f32 %v1370
  %vm1377 = vmor %vm1375, %vm1376
  %v1378 = vsel %vm1377, %v1370, %v1374
  %v1379 = vand.u32 2147483647, %v1354
  %vm1380 = vcmp.eq.f32.partialorder %v1379, 8.507059e+37
  %v1381 = vand.u32 %v1354, 2147483648
  %v1382 = vor.u32 1.1754944e-38, %v1381
  %v1383 = vsel %vm1380, %v1382, %v1378
  %v1384 = vmul.f32 %v1287, %v1383
  %v1385 = vrcp.pop %v1355
  %v1386 = vmul.f32 %v1355, %v1385
  %v1387 = vsub.f32 1.0, %v1386
  %v1388 = vmul.f32 %v1385, %v1387
  %v1389 = vadd.f32 %v1385, %v1388
  %vm1390 = vweird.f32 %v1355
  %vm1391 = vweird.f32 %v1385
  %vm1392 = vmor %vm1390, %vm1391
  %v1393 = vsel %vm1392, %v1385, %v1389
  %v1394 = vand.u32 2147483647, %v1355
  %vm1395 = vcmp.eq.f32.partialorder %v1394, 8.507059e+37
  %v1396 = vand.u32 %v1355, 2147483648
  %v1397 = vor.u32 1.1754944e-38, %v1396
  %v1398 = vsel %vm1395, %v1397, %v1393
  %v1399 = vmul.f32 %v1289, %v1398
  %v1400 = vrcp.pop %v1356
  %v1401 = vmul.f32 %v1356, %v1400
  %v1402 = vsub.f32 1.0, %v1401
  %v1403 = vmul.f32 %v1400, %v1402
  %v1404 = vadd.f32 %v1400, %v1403
  %vm1405 = vweird.f32 %v1356
  %vm1406 = vweird.f32 %v1400
  %vm1407 = vmor %vm1405, %vm1406
  %v1408 = vsel %vm1407, %v1400, %v1404
  %v1409 = vand.u32 2147483647, %v1356
  %vm1410 = vcmp.eq.f32.partialorder %v1409, 8.507059e+37
  %v1411 = vand.u32 %v1356, 2147483648
  %v1412 = vor.u32 1.1754944e-38, %v1411
  %v1413 = vsel %vm1410, %v1412, %v1408
  %v1414 = vmul.f32 %v1291, %v1413
  %v1415 = vrcp.pop %v1357
  %v1416 = vmul.f32 %v1357, %v1415
  %v1417 = vsub.f32 1.0, %v1416
  %v1418 = vmul.f32 %v1415, %v1417
  %v1419 = vadd.f32 %v1415, %v1418
  %vm1420 = vweird.f32 %v1357
  %vm1421 = vweird.f32 %v1415
  %vm1422 = vmor %vm1420, %vm1421
  %v1423 = vsel %vm1422, %v1415, %v1419
  %v1424 = vand.u32 2147483647, %v1357
  %vm1425 = vcmp.eq.f32.partialorder %v1424, 8.507059e+37
  %v1426 = vand.u32 %v1357, 2147483648
  %v1427 = vor.u32 1.1754944e-38, %v1426
  %v1428 = vsel %vm1425, %v1427, %v1423
  %v1429 = vmul.f32 %v1293, %v1428
  %v1430 = vrcp.pop %v1358
  %v1431 = vmul.f32 %v1358, %v1430
  %v1432 = vsub.f32 1.0, %v1431
  %v1433 = vmul.f32 %v1430, %v1432
  %v1434 = vadd.f32 %v1430, %v1433
  %vm1435 = vweird.f32 %v1358
  %vm1436 = vweird.f32 %v1430
  %vm1437 = vmor %vm1435, %vm1436
  %v1438 = vsel %vm1437, %v1430, %v1434
  %v1439 = vand.u32 2147483647, %v1358
  %vm1440 = vcmp.eq.f32.partialorder %v1439, 8.507059e+37
  %v1441 = vand.u32 %v1358, 2147483648
  %v1442 = vor.u32 1.1754944e-38, %v1441
  %v1443 = vsel %vm1440, %v1442, %v1438
  %v1444 = vmul.f32 %v1295, %v1443
  %v1445 = vrcp.pop %v1359
  %v1446 = vmul.f32 %v1359, %v1445
  %v1447 = vsub.f32 1.0, %v1446
  %v1448 = vmul.f32 %v1445, %v1447
  %v1449 = vadd.f32 %v1445, %v1448
  %vm1450 = vweird.f32 %v1359
  %vm1451 = vweird.f32 %v1445
  %vm1452 = vmor %vm1450, %vm1451
  %v1453 = vsel %vm1452, %v1445, %v1449
  %v1454 = vand.u32 2147483647, %v1359
  %vm1455 = vcmp.eq.f32.partialorder %v1454, 8.507059e+37
  %v1456 = vand.u32 %v1359, 2147483648
  %v1457 = vor.u32 1.1754944e-38, %v1456
  %v1458 = vsel %vm1455, %v1457, %v1453
  %v1459 = vmul.f32 %v1297, %v1458
  %v1460 = vrcp.pop %v1360
  %v1461 = vmul.f32 %v1360, %v1460
  %v1462 = vsub.f32 1.0, %v1461
  %v1463 = vmul.f32 %v1460, %v1462
  %v1464 = vadd.f32 %v1460, %v1463
  %vm1465 = vweird.f32 %v1360
  %vm1466 = vweird.f32 %v1460
  %vm1467 = vmor %vm1465, %vm1466
  %v1468 = vsel %vm1467, %v1460, %v1464
  %v1469 = vand.u32 2147483647, %v1360
  %vm1470 = vcmp.eq.f32.partialorder %v1469, 8.507059e+37
  %v1471 = vand.u32 %v1360, 2147483648
  %v1472 = vor.u32 1.1754944e-38, %v1471
  %v1473 = vsel %vm1470, %v1472, %v1468
  %v1474 = vmul.f32 %v1299, %v1473
  %v1475 = vrcp.pop %v1361
  %v1476 = vmul.f32 %v1361, %v1475
  %v1477 = vsub.f32 1.0, %v1476
  %v1478 = vmul.f32 %v1475, %v1477
  %v1479 = vadd.f32 %v1475, %v1478
  %vm1480 = vweird.f32 %v1361
  %vm1481 = vweird.f32 %v1475
  %vm1482 = vmor %vm1480, %vm1481
  %v1483 = vsel %vm1482, %v1475, %v1479
  %v1484 = vand.u32 2147483647, %v1361
  %vm1485 = vcmp.eq.f32.partialorder %v1484, 8.507059e+37
  %v1486 = vand.u32 %v1361, 2147483648
  %v1487 = vor.u32 1.1754944e-38, %v1486
  %v1488 = vsel %vm1485, %v1487, %v1483
  %v1489 = vmul.f32 %v1301, %v1488
  %1491 = vset.pattern.permute.xlu0 0
  %1492 = vperm.xlu0 %1491, %v1384
  %v1493 = vpop.permute.xlu0 %1492
  %1496 = vset.pattern.permute.xlu0 0
  %1497 = vperm.xlu0 %1496, %v1399
  %v1498 = vpop.permute.xlu0 %1497
  %1501 = vset.pattern.permute.xlu0 0
  %1502 = vperm.xlu0 %1501, %v1414
  %v1503 = vpop.permute.xlu0 %1502
  %1506 = vset.pattern.permute.xlu0 0
  %1507 = vperm.xlu0 %1506, %v1429
  %v1508 = vpop.permute.xlu0 %1507
  %1511 = vset.pattern.permute.xlu0 0
  %1512 = vperm.xlu0 %1511, %v1444
  %v1513 = vpop.permute.xlu0 %1512
  %1516 = vset.pattern.permute.xlu0 0
  %1517 = vperm.xlu0 %1516, %v1459
  %v1518 = vpop.permute.xlu0 %1517
  %1521 = vset.pattern.permute.xlu0 0
  %1522 = vperm.xlu0 %1521, %v1474
  %v1523 = vpop.permute.xlu0 %1522
  %1526 = vset.pattern.permute.xlu0 0
  %1527 = vperm.xlu0 %1526, %v1489
  %v1528 = vpop.permute.xlu0 %1527
  %v1530 = vmul.f32 %v1493, %v98
  %v1531 = vmul.f32 %v1498, %v99
  %v1532 = vmul.f32 %v1503, %v100
  %v1533 = vmul.f32 %v1508, %v101
  %v1534 = vmul.f32 %v1513, %v102
  %v1535 = vmul.f32 %v1518, %v103
  %v1536 = vmul.f32 %v1523, %v104
  %v1537 = vmul.f32 %v1528, %v105
  %v1538 = vsel %vm285, %v1530, 0.0
  %v1539 = vrot.slane %v1538, 4
  %v1540 = vadd.f32 %v1538, %v1539
  %v1541 = vrot.slane %v1540, 2
  %v1542 = vadd.f32 %v1540, %v1541
  %v1543 = vrot.slane %v1542, 1
  %v1544 = vadd.f32 %v1542, %v1543
  %v1545 = vsel %vm285, %v1531, 0.0
  %v1546 = vrot.slane %v1545, 4
  %v1547 = vadd.f32 %v1545, %v1546
  %v1548 = vrot.slane %v1547, 2
  %v1549 = vadd.f32 %v1547, %v1548
  %v1550 = vrot.slane %v1549, 1
  %v1551 = vadd.f32 %v1549, %v1550
  %v1552 = vsel %vm285, %v1532, 0.0
  %v1553 = vrot.slane %v1552, 4
  %v1554 = vadd.f32 %v1552, %v1553
  %v1555 = vrot.slane %v1554, 2
  %v1556 = vadd.f32 %v1554, %v1555
  %v1557 = vrot.slane %v1556, 1
  %v1558 = vadd.f32 %v1556, %v1557
  %v1559 = vsel %vm285, %v1533, 0.0
  %v1560 = vrot.slane %v1559, 4
  %v1561 = vadd.f32 %v1559, %v1560
  %v1562 = vrot.slane %v1561, 2
  %v1563 = vadd.f32 %v1561, %v1562
  %v1564 = vrot.slane %v1563, 1
  %v1565 = vadd.f32 %v1563, %v1564
  %v1566 = vsel %vm285, %v1534, 0.0
  %v1567 = vrot.slane %v1566, 4
  %v1568 = vadd.f32 %v1566, %v1567
  %v1569 = vrot.slane %v1568, 2
  %v1570 = vadd.f32 %v1568, %v1569
  %v1571 = vrot.slane %v1570, 1
  %v1572 = vadd.f32 %v1570, %v1571
  %v1573 = vsel %vm285, %v1535, 0.0
  %v1574 = vrot.slane %v1573, 4
  %v1575 = vadd.f32 %v1573, %v1574
  %v1576 = vrot.slane %v1575, 2
  %v1577 = vadd.f32 %v1575, %v1576
  %v1578 = vrot.slane %v1577, 1
  %v1579 = vadd.f32 %v1577, %v1578
  %v1580 = vsel %vm285, %v1536, 0.0
  %v1581 = vrot.slane %v1580, 4
  %v1582 = vadd.f32 %v1580, %v1581
  %v1583 = vrot.slane %v1582, 2
  %v1584 = vadd.f32 %v1582, %v1583
  %v1585 = vrot.slane %v1584, 1
  %v1586 = vadd.f32 %v1584, %v1585
  %v1587 = vsel %vm285, %v1537, 0.0
  %v1588 = vrot.slane %v1587, 4
  %v1589 = vadd.f32 %v1587, %v1588
  %v1590 = vrot.slane %v1589, 2
  %v1591 = vadd.f32 %v1589, %v1590
  %v1592 = vrot.slane %v1591, 1
  %v1593 = vadd.f32 %v1591, %v1592
  %v1602 = vsel %vm328, %v1551, %v1544
  %v1603 = vsel %vm330, %v1558, %v1602
  %v1604 = vsel %vm332, %v1565, %v1603
  %v1605 = vsel %vm334, %v1572, %v1604
  %v1606 = vsel %vm336, %v1579, %v1605
  %v1607 = vsel %vm338, %v1586, %v1606
  %v1608 = vsel %vm340, %v1593, %v1607
  %v1609 = vsel %vm285, %v1608, 0
  %1611 = vmatpush.msra.mxu0 0.0
  %1612 = vmatpush.msra.mxu0 0.0
  %1613 = vmatpush.msra.mxu0 0.0
  %1614 = vmatpush.msra.mxu0 0.0
  %1615 = vmatpush.msra.mxu0 0.0
  %1616 = vmatpush.msra.mxu0 0.0
  %1617 = vmatpush.msra.mxu0 0.0
  %1618 = vmatpush.msra.mxu0 0.0
  %1619 = vmatpush.msra.mxu0 0.0
  %1620 = vmatpush.msra.mxu0 0.0
  %1621 = vmatpush.msra.mxu0 0.0
  %1622 = vmatpush.msra.mxu0 0.0
  %1623 = vmatpush.msra.mxu0 %v247
  %1624 = vmatpush.msra.mxu0 %v246
  %1625 = vmatpush.msra.mxu0 %v245
  %1626 = vmatpush.msra.mxu0 %v244
  %1627 = vmatmul.f32.gmra.mxu0 %v1609
  %v1628 = vpop.f32.mrf.mxu0
  %v1629 = vadd.f32 0.0, %v1628
  %1630 = vdwg.mxu0
  %v1631 = vadd.f32 %v170, %v1629
  %v1632 = vadd.f32 %v1631, %v250
  %s1633 = scalar_lea.vmem %s8, 24
  %1634 = vst [vmem:[%s1633] sm:$0xff] %v1632
  %v1636 = vrot.slane %v240, 1
  %v1637 = vrot.slane %v240, 2
  %v1638 = vrot.slane %v240, 3
  %v1639 = vrot.slane %v240, 4
  %v1640 = vrot.slane %v240, 5
  %v1641 = vrot.slane %v240, 6
  %v1642 = vrot.slane %v240, 7
  %v1643 = vperm.slane %v240, 0
  %v1644 = vperm.slane %v1636, 0
  %v1645 = vperm.slane %v1637, 0
  %v1646 = vperm.slane %v1638, 0
  %v1647 = vperm.slane %v1639, 0
  %v1648 = vperm.slane %v1640, 0
  %v1649 = vperm.slane %v1641, 0
  %v1650 = vperm.slane %v1642, 0
  %v1659 = vmul.f32 %v1643, %v98
  %v1660 = vmul.f32 %v1644, %v99
  %v1661 = vmul.f32 %v1645, %v100
  %v1662 = vmul.f32 %v1646, %v101
  %v1663 = vmul.f32 %v1647, %v102
  %v1664 = vmul.f32 %v1648, %v103
  %v1665 = vmul.f32 %v1649, %v104
  %v1666 = vmul.f32 %v1650, %v105
  %v1667 = vsel %vm285, %v1659, 0.0
  %1668 = vadd.xlane.f32.xlu0 %v1667
  %v1669 = vpop.xlane.xlu0 %1668
  %v1670 = vsel %vm285, %v1660, 0.0
  %1671 = vadd.xlane.f32.xlu0 %v1670
  %v1672 = vpop.xlane.xlu0 %1671
  %v1673 = vsel %vm285, %v1661, 0.0
  %1674 = vadd.xlane.f32.xlu0 %v1673
  %v1675 = vpop.xlane.xlu0 %1674
  %v1676 = vsel %vm285, %v1662, 0.0
  %1677 = vadd.xlane.f32.xlu0 %v1676
  %v1678 = vpop.xlane.xlu0 %1677
  %v1679 = vsel %vm285, %v1663, 0.0
  %1680 = vadd.xlane.f32.xlu0 %v1679
  %v1681 = vpop.xlane.xlu0 %1680
  %v1682 = vsel %vm285, %v1664, 0.0
  %1683 = vadd.xlane.f32.xlu0 %v1682
  %v1684 = vpop.xlane.xlu0 %1683
  %v1685 = vsel %vm285, %v1665, 0.0
  %1686 = vadd.xlane.f32.xlu0 %v1685
  %v1687 = vpop.xlane.xlu0 %1686
  %v1688 = vsel %vm285, %v1666, 0.0
  %1689 = vadd.xlane.f32.xlu0 %v1688
  %v1690 = vpop.xlane.xlu0 %1689
  %v1699 = vperm.slane %v1669, %v319
  %v1700 = vperm.slane %v1672, %v319
  %v1701 = vperm.slane %v1675, %v319
  %v1702 = vperm.slane %v1678, %v319
  %v1703 = vperm.slane %v1681, %v319
  %v1704 = vperm.slane %v1684, %v319
  %v1705 = vperm.slane %v1687, %v319
  %v1706 = vperm.slane %v1690, %v319
  %v1707 = vsel %vm328, %v1700, %v1699
  %v1708 = vsel %vm330, %v1701, %v1707
  %v1709 = vsel %vm332, %v1702, %v1708
  %v1710 = vsel %vm334, %v1703, %v1709
  %v1711 = vsel %vm336, %v1704, %v1710
  %v1712 = vsel %vm338, %v1705, %v1711
  %v1713 = vsel %vm340, %v1706, %v1712
  %v1715 = vsel %vm343, %v1713, -inf
  %1716 = vmax.xlane.f32.xlu0 %v1715
  %v1717 = vpop.xlane.xlu0 %1716
  %v1719 = vperm.slane %v1717, 0
  %v1720 = vperm.slane %v1717, 1
  %v1721 = vperm.slane %v1717, 2
  %v1722 = vperm.slane %v1717, 3
  %v1723 = vperm.slane %v1717, 4
  %v1724 = vperm.slane %v1717, 5
  %v1725 = vperm.slane %v1717, 6
  %v1726 = vperm.slane %v1717, 7
  %v1735 = vsub.f32 %v1669, %v1719
  %v1736 = vsub.f32 %v1672, %v1720
  %v1737 = vsub.f32 %v1675, %v1721
  %v1738 = vsub.f32 %v1678, %v1722
  %v1739 = vsub.f32 %v1681, %v1723
  %v1740 = vsub.f32 %v1684, %v1724
  %v1741 = vsub.f32 %v1687, %v1725
  %v1742 = vsub.f32 %v1690, %v1726
  %v1743 = vmul.f32 %v1735, 1.442695
  %v1744 = vpow.pop %v1743
  %v1745 = vmul.f32 %v1736, 1.442695
  %v1746 = vpow.pop %v1745
  %v1747 = vmul.f32 %v1737, 1.442695
  %v1748 = vpow.pop %v1747
  %v1749 = vmul.f32 %v1738, 1.442695
  %v1750 = vpow.pop %v1749
  %v1751 = vmul.f32 %v1739, 1.442695
  %v1752 = vpow.pop %v1751
  %v1753 = vmul.f32 %v1740, 1.442695
  %v1754 = vpow.pop %v1753
  %v1755 = vmul.f32 %v1741, 1.442695
  %v1756 = vpow.pop %v1755
  %v1757 = vmul.f32 %v1742, 1.442695
  %v1758 = vpow.pop %v1757
  %1767 = vset.pattern.permute.xlu0 0
  %1768 = vperm.xlu0 %1767, %v1744
  %v1769 = vpop.permute.xlu0 %1768
  %1770 = vset.pattern.permute.xlu0 0
  %1771 = vperm.xlu0 %1770, %v1746
  %v1772 = vpop.permute.xlu0 %1771
  %1773 = vset.pattern.permute.xlu0 0
  %1774 = vperm.xlu0 %1773, %v1748
  %v1775 = vpop.permute.xlu0 %1774
  %1776 = vset.pattern.permute.xlu0 0
  %1777 = vperm.xlu0 %1776, %v1750
  %v1778 = vpop.permute.xlu0 %1777
  %1779 = vset.pattern.permute.xlu0 0
  %1780 = vperm.xlu0 %1779, %v1752
  %v1781 = vpop.permute.xlu0 %1780
  %1782 = vset.pattern.permute.xlu0 0
  %1783 = vperm.xlu0 %1782, %v1754
  %v1784 = vpop.permute.xlu0 %1783
  %1785 = vset.pattern.permute.xlu0 0
  %1786 = vperm.xlu0 %1785, %v1756
  %v1787 = vpop.permute.xlu0 %1786
  %1788 = vset.pattern.permute.xlu0 0
  %1789 = vperm.xlu0 %1788, %v1758
  %v1790 = vpop.permute.xlu0 %1789
  %v1791 = vperm.slane %v1769, %v319
  %v1792 = vperm.slane %v1772, %v319
  %v1793 = vperm.slane %v1775, %v319
  %v1794 = vperm.slane %v1778, %v319
  %v1795 = vperm.slane %v1781, %v319
  %v1796 = vperm.slane %v1784, %v319
  %v1797 = vperm.slane %v1787, %v319
  %v1798 = vperm.slane %v1790, %v319
  %v1799 = vsel %vm328, %v1792, %v1791
  %v1800 = vsel %vm330, %v1793, %v1799
  %v1801 = vsel %vm332, %v1794, %v1800
  %v1802 = vsel %vm334, %v1795, %v1801
  %v1803 = vsel %vm336, %v1796, %v1802
  %v1804 = vsel %vm338, %v1797, %v1803
  %v1805 = vsel %vm340, %v1798, %v1804
  %v1807 = vsel %vm343, %v1805, 0.0
  %1808 = vadd.xlane.f32.xlu0 %v1807
  %v1809 = vpop.xlane.xlu0 %1808
  %v1811 = vperm.slane %v1809, 0
  %v1812 = vperm.slane %v1809, 1
  %v1813 = vperm.slane %v1809, 2
  %v1814 = vperm.slane %v1809, 3
  %v1815 = vperm.slane %v1809, 4
  %v1816 = vperm.slane %v1809, 5
  %v1817 = vperm.slane %v1809, 6
  %v1818 = vperm.slane %v1809, 7
  %v1827 = vrcp.pop %v1811
  %v1828 = vmul.f32 %v1811, %v1827
  %v1829 = vsub.f32 1.0, %v1828
  %v1830 = vmul.f32 %v1827, %v1829
  %v1831 = vadd.f32 %v1827, %v1830
  %vm1832 = vweird.f32 %v1811
  %vm1833 = vweird.f32 %v1827
  %vm1834 = vmor %vm1832, %vm1833
  %v1835 = vsel %vm1834, %v1827, %v1831
  %v1836 = vand.u32 2147483647, %v1811
  %vm1837 = vcmp.eq.f32.partialorder %v1836, 8.507059e+37
  %v1838 = vand.u32 %v1811, 2147483648
  %v1839 = vor.u32 1.1754944e-38, %v1838
  %v1840 = vsel %vm1837, %v1839, %v1835
  %v1841 = vmul.f32 %v1744, %v1840
  %v1842 = vrcp.pop %v1812
  %v1843 = vmul.f32 %v1812, %v1842
  %v1844 = vsub.f32 1.0, %v1843
  %v1845 = vmul.f32 %v1842, %v1844
  %v1846 = vadd.f32 %v1842, %v1845
  %vm1847 = vweird.f32 %v1812
  %vm1848 = vweird.f32 %v1842
  %vm1849 = vmor %vm1847, %vm1848
  %v1850 = vsel %vm1849, %v1842, %v1846
  %v1851 = vand.u32 2147483647, %v1812
  %vm1852 = vcmp.eq.f32.partialorder %v1851, 8.507059e+37
  %v1853 = vand.u32 %v1812, 2147483648
  %v1854 = vor.u32 1.1754944e-38, %v1853
  %v1855 = vsel %vm1852, %v1854, %v1850
  %v1856 = vmul.f32 %v1746, %v1855
  %v1857 = vrcp.pop %v1813
  %v1858 = vmul.f32 %v1813, %v1857
  %v1859 = vsub.f32 1.0, %v1858
  %v1860 = vmul.f32 %v1857, %v1859
  %v1861 = vadd.f32 %v1857, %v1860
  %vm1862 = vweird.f32 %v1813
  %vm1863 = vweird.f32 %v1857
  %vm1864 = vmor %vm1862, %vm1863
  %v1865 = vsel %vm1864, %v1857, %v1861
  %v1866 = vand.u32 2147483647, %v1813
  %vm1867 = vcmp.eq.f32.partialorder %v1866, 8.507059e+37
  %v1868 = vand.u32 %v1813, 2147483648
  %v1869 = vor.u32 1.1754944e-38, %v1868
  %v1870 = vsel %vm1867, %v1869, %v1865
  %v1871 = vmul.f32 %v1748, %v1870
  %v1872 = vrcp.pop %v1814
  %v1873 = vmul.f32 %v1814, %v1872
  %v1874 = vsub.f32 1.0, %v1873
  %v1875 = vmul.f32 %v1872, %v1874
  %v1876 = vadd.f32 %v1872, %v1875
  %vm1877 = vweird.f32 %v1814
  %vm1878 = vweird.f32 %v1872
  %vm1879 = vmor %vm1877, %vm1878
  %v1880 = vsel %vm1879, %v1872, %v1876
  %v1881 = vand.u32 2147483647, %v1814
  %vm1882 = vcmp.eq.f32.partialorder %v1881, 8.507059e+37
  %v1883 = vand.u32 %v1814, 2147483648
  %v1884 = vor.u32 1.1754944e-38, %v1883
  %v1885 = vsel %vm1882, %v1884, %v1880
  %v1886 = vmul.f32 %v1750, %v1885
  %v1887 = vrcp.pop %v1815
  %v1888 = vmul.f32 %v1815, %v1887
  %v1889 = vsub.f32 1.0, %v1888
  %v1890 = vmul.f32 %v1887, %v1889
  %v1891 = vadd.f32 %v1887, %v1890
  %vm1892 = vweird.f32 %v1815
  %vm1893 = vweird.f32 %v1887
  %vm1894 = vmor %vm1892, %vm1893
  %v1895 = vsel %vm1894, %v1887, %v1891
  %v1896 = vand.u32 2147483647, %v1815
  %vm1897 = vcmp.eq.f32.partialorder %v1896, 8.507059e+37
  %v1898 = vand.u32 %v1815, 2147483648
  %v1899 = vor.u32 1.1754944e-38, %v1898
  %v1900 = vsel %vm1897, %v1899, %v1895
  %v1901 = vmul.f32 %v1752, %v1900
  %v1902 = vrcp.pop %v1816
  %v1903 = vmul.f32 %v1816, %v1902
  %v1904 = vsub.f32 1.0, %v1903
  %v1905 = vmul.f32 %v1902, %v1904
  %v1906 = vadd.f32 %v1902, %v1905
  %vm1907 = vweird.f32 %v1816
  %vm1908 = vweird.f32 %v1902
  %vm1909 = vmor %vm1907, %vm1908
  %v1910 = vsel %vm1909, %v1902, %v1906
  %v1911 = vand.u32 2147483647, %v1816
  %vm1912 = vcmp.eq.f32.partialorder %v1911, 8.507059e+37
  %v1913 = vand.u32 %v1816, 2147483648
  %v1914 = vor.u32 1.1754944e-38, %v1913
  %v1915 = vsel %vm1912, %v1914, %v1910
  %v1916 = vmul.f32 %v1754, %v1915
  %v1917 = vrcp.pop %v1817
  %v1918 = vmul.f32 %v1817, %v1917
  %v1919 = vsub.f32 1.0, %v1918
  %v1920 = vmul.f32 %v1917, %v1919
  %v1921 = vadd.f32 %v1917, %v1920
  %vm1922 = vweird.f32 %v1817
  %vm1923 = vweird.f32 %v1917
  %vm1924 = vmor %vm1922, %vm1923
  %v1925 = vsel %vm1924, %v1917, %v1921
  %v1926 = vand.u32 2147483647, %v1817
  %vm1927 = vcmp.eq.f32.partialorder %v1926, 8.507059e+37
  %v1928 = vand.u32 %v1817, 2147483648
  %v1929 = vor.u32 1.1754944e-38, %v1928
  %v1930 = vsel %vm1927, %v1929, %v1925
  %v1931 = vmul.f32 %v1756, %v1930
  %v1932 = vrcp.pop %v1818
  %v1933 = vmul.f32 %v1818, %v1932
  %v1934 = vsub.f32 1.0, %v1933
  %v1935 = vmul.f32 %v1932, %v1934
  %v1936 = vadd.f32 %v1932, %v1935
  %vm1937 = vweird.f32 %v1818
  %vm1938 = vweird.f32 %v1932
  %vm1939 = vmor %vm1937, %vm1938
  %v1940 = vsel %vm1939, %v1932, %v1936
  %v1941 = vand.u32 2147483647, %v1818
  %vm1942 = vcmp.eq.f32.partialorder %v1941, 8.507059e+37
  %v1943 = vand.u32 %v1818, 2147483648
  %v1944 = vor.u32 1.1754944e-38, %v1943
  %v1945 = vsel %vm1942, %v1944, %v1940
  %v1946 = vmul.f32 %v1758, %v1945
  %1948 = vset.pattern.permute.xlu0 0
  %1949 = vperm.xlu0 %1948, %v1841
  %v1950 = vpop.permute.xlu0 %1949
  %1953 = vset.pattern.permute.xlu0 0
  %1954 = vperm.xlu0 %1953, %v1856
  %v1955 = vpop.permute.xlu0 %1954
  %1958 = vset.pattern.permute.xlu0 0
  %1959 = vperm.xlu0 %1958, %v1871
  %v1960 = vpop.permute.xlu0 %1959
  %1963 = vset.pattern.permute.xlu0 0
  %1964 = vperm.xlu0 %1963, %v1886
  %v1965 = vpop.permute.xlu0 %1964
  %1968 = vset.pattern.permute.xlu0 0
  %1969 = vperm.xlu0 %1968, %v1901
  %v1970 = vpop.permute.xlu0 %1969
  %1973 = vset.pattern.permute.xlu0 0
  %1974 = vperm.xlu0 %1973, %v1916
  %v1975 = vpop.permute.xlu0 %1974
  %1978 = vset.pattern.permute.xlu0 0
  %1979 = vperm.xlu0 %1978, %v1931
  %v1980 = vpop.permute.xlu0 %1979
  %1983 = vset.pattern.permute.xlu0 0
  %1984 = vperm.xlu0 %1983, %v1946
  %v1985 = vpop.permute.xlu0 %1984
  %v1987 = vmul.f32 %v1950, %v98
  %v1988 = vmul.f32 %v1955, %v99
  %v1989 = vmul.f32 %v1960, %v100
  %v1990 = vmul.f32 %v1965, %v101
  %v1991 = vmul.f32 %v1970, %v102
  %v1992 = vmul.f32 %v1975, %v103
  %v1993 = vmul.f32 %v1980, %v104
  %v1994 = vmul.f32 %v1985, %v105
  %v1995 = vsel %vm285, %v1987, 0.0
  %v1996 = vrot.slane %v1995, 4
  %v1997 = vadd.f32 %v1995, %v1996
  %v1998 = vrot.slane %v1997, 2
  %v1999 = vadd.f32 %v1997, %v1998
  %v2000 = vrot.slane %v1999, 1
  %v2001 = vadd.f32 %v1999, %v2000
  %v2002 = vsel %vm285, %v1988, 0.0
  %v2003 = vrot.slane %v2002, 4
  %v2004 = vadd.f32 %v2002, %v2003
  %v2005 = vrot.slane %v2004, 2
  %v2006 = vadd.f32 %v2004, %v2005
  %v2007 = vrot.slane %v2006, 1
  %v2008 = vadd.f32 %v2006, %v2007
  %v2009 = vsel %vm285, %v1989, 0.0
  %v2010 = vrot.slane %v2009, 4
  %v2011 = vadd.f32 %v2009, %v2010
  %v2012 = vrot.slane %v2011, 2
  %v2013 = vadd.f32 %v2011, %v2012
  %v2014 = vrot.slane %v2013, 1
  %v2015 = vadd.f32 %v2013, %v2014
  %v2016 = vsel %vm285, %v1990, 0.0
  %v2017 = vrot.slane %v2016, 4
  %v2018 = vadd.f32 %v2016, %v2017
  %v2019 = vrot.slane %v2018, 2
  %v2020 = vadd.f32 %v2018, %v2019
  %v2021 = vrot.slane %v2020, 1
  %v2022 = vadd.f32 %v2020, %v2021
  %v2023 = vsel %vm285, %v1991, 0.0
  %v2024 = vrot.slane %v2023, 4
  %v2025 = vadd.f32 %v2023, %v2024
  %v2026 = vrot.slane %v2025, 2
  %v2027 = vadd.f32 %v2025, %v2026
  %v2028 = vrot.slane %v2027, 1
  %v2029 = vadd.f32 %v2027, %v2028
  %v2030 = vsel %vm285, %v1992, 0.0
  %v2031 = vrot.slane %v2030, 4
  %v2032 = vadd.f32 %v2030, %v2031
  %v2033 = vrot.slane %v2032, 2
  %v2034 = vadd.f32 %v2032, %v2033
  %v2035 = vrot.slane %v2034, 1
  %v2036 = vadd.f32 %v2034, %v2035
  %v2037 = vsel %vm285, %v1993, 0.0
  %v2038 = vrot.slane %v2037, 4
  %v2039 = vadd.f32 %v2037, %v2038
  %v2040 = vrot.slane %v2039, 2
  %v2041 = vadd.f32 %v2039, %v2040
  %v2042 = vrot.slane %v2041, 1
  %v2043 = vadd.f32 %v2041, %v2042
  %v2044 = vsel %vm285, %v1994, 0.0
  %v2045 = vrot.slane %v2044, 4
  %v2046 = vadd.f32 %v2044, %v2045
  %v2047 = vrot.slane %v2046, 2
  %v2048 = vadd.f32 %v2046, %v2047
  %v2049 = vrot.slane %v2048, 1
  %v2050 = vadd.f32 %v2048, %v2049
  %v2059 = vsel %vm328, %v2008, %v2001
  %v2060 = vsel %vm330, %v2015, %v2059
  %v2061 = vsel %vm332, %v2022, %v2060
  %v2062 = vsel %vm334, %v2029, %v2061
  %v2063 = vsel %vm336, %v2036, %v2062
  %v2064 = vsel %vm338, %v2043, %v2063
  %v2065 = vsel %vm340, %v2050, %v2064
  %v2066 = vsel %vm285, %v2065, 0
  %2068 = vmatpush.msra.mxu0 0.0
  %2069 = vmatpush.msra.mxu0 0.0
  %2070 = vmatpush.msra.mxu0 0.0
  %2071 = vmatpush.msra.mxu0 0.0
  %2072 = vmatpush.msra.mxu0 0.0
  %2073 = vmatpush.msra.mxu0 0.0
  %2074 = vmatpush.msra.mxu0 0.0
  %2075 = vmatpush.msra.mxu0 0.0
  %2076 = vmatpush.msra.mxu0 0.0
  %2077 = vmatpush.msra.mxu0 0.0
  %2078 = vmatpush.msra.mxu0 0.0
  %2079 = vmatpush.msra.mxu0 0.0
  %2080 = vmatpush.msra.mxu0 %v247
  %2081 = vmatpush.msra.mxu0 %v246
  %2082 = vmatpush.msra.mxu0 %v245
  %2083 = vmatpush.msra.mxu0 %v244
  %2084 = vmatmul.f32.gmra.mxu0 %v2066
  %v2085 = vpop.f32.mrf.mxu0
  %v2086 = vadd.f32 0.0, %v2085
  %2087 = vdwg.mxu0
  %v2088 = vadd.f32 %v173, %v2086
  %v2089 = vadd.f32 %v2088, %v250
  %s2090 = scalar_lea.vmem %s8, 32
  %2091 = vst [vmem:[%s2090] sm:$0xff] %v2089
  %v2093 = vrot.slane %v241, 1
  %v2094 = vrot.slane %v241, 2
  %v2095 = vrot.slane %v241, 3
  %v2096 = vrot.slane %v241, 4
  %v2097 = vrot.slane %v241, 5
  %v2098 = vrot.slane %v241, 6
  %v2099 = vrot.slane %v241, 7
  %v2100 = vperm.slane %v241, 0
  %v2101 = vperm.slane %v2093, 0
  %v2102 = vperm.slane %v2094, 0
  %v2103 = vperm.slane %v2095, 0
  %v2104 = vperm.slane %v2096, 0
  %v2105 = vperm.slane %v2097, 0
  %v2106 = vperm.slane %v2098, 0
  %v2107 = vperm.slane %v2099, 0
  %v2116 = vmul.f32 %v2100, %v98
  %v2117 = vmul.f32 %v2101, %v99
  %v2118 = vmul.f32 %v2102, %v100
  %v2119 = vmul.f32 %v2103, %v101
  %v2120 = vmul.f32 %v2104, %v102
  %v2121 = vmul.f32 %v2105, %v103
  %v2122 = vmul.f32 %v2106, %v104
  %v2123 = vmul.f32 %v2107, %v105
  %v2124 = vsel %vm285, %v2116, 0.0
  %2125 = vadd.xlane.f32.xlu0 %v2124
  %v2126 = vpop.xlane.xlu0 %2125
  %v2127 = vsel %vm285, %v2117, 0.0
  %2128 = vadd.xlane.f32.xlu0 %v2127
  %v2129 = vpop.xlane.xlu0 %2128
  %v2130 = vsel %vm285, %v2118, 0.0
  %2131 = vadd.xlane.f32.xlu0 %v2130
  %v2132 = vpop.xlane.xlu0 %2131
  %v2133 = vsel %vm285, %v2119, 0.0
  %2134 = vadd.xlane.f32.xlu0 %v2133
  %v2135 = vpop.xlane.xlu0 %2134
  %v2136 = vsel %vm285, %v2120, 0.0
  %2137 = vadd.xlane.f32.xlu0 %v2136
  %v2138 = vpop.xlane.xlu0 %2137
  %v2139 = vsel %vm285, %v2121, 0.0
  %2140 = vadd.xlane.f32.xlu0 %v2139
  %v2141 = vpop.xlane.xlu0 %2140
  %v2142 = vsel %vm285, %v2122, 0.0
  %2143 = vadd.xlane.f32.xlu0 %v2142
  %v2144 = vpop.xlane.xlu0 %2143
  %v2145 = vsel %vm285, %v2123, 0.0
  %2146 = vadd.xlane.f32.xlu0 %v2145
  %v2147 = vpop.xlane.xlu0 %2146
  %v2156 = vperm.slane %v2126, %v319
  %v2157 = vperm.slane %v2129, %v319
  %v2158 = vperm.slane %v2132, %v319
  %v2159 = vperm.slane %v2135, %v319
  %v2160 = vperm.slane %v2138, %v319
  %v2161 = vperm.slane %v2141, %v319
  %v2162 = vperm.slane %v2144, %v319
  %v2163 = vperm.slane %v2147, %v319
  %v2164 = vsel %vm328, %v2157, %v2156
  %v2165 = vsel %vm330, %v2158, %v2164
  %v2166 = vsel %vm332, %v2159, %v2165
  %v2167 = vsel %vm334, %v2160, %v2166
  %v2168 = vsel %vm336, %v2161, %v2167
  %v2169 = vsel %vm338, %v2162, %v2168
  %v2170 = vsel %vm340, %v2163, %v2169
  %v2172 = vsel %vm343, %v2170, -inf
  %2173 = vmax.xlane.f32.xlu0 %v2172
  %v2174 = vpop.xlane.xlu0 %2173
  %v2176 = vperm.slane %v2174, 0
  %v2177 = vperm.slane %v2174, 1
  %v2178 = vperm.slane %v2174, 2
  %v2179 = vperm.slane %v2174, 3
  %v2180 = vperm.slane %v2174, 4
  %v2181 = vperm.slane %v2174, 5
  %v2182 = vperm.slane %v2174, 6
  %v2183 = vperm.slane %v2174, 7
  %v2192 = vsub.f32 %v2126, %v2176
  %v2193 = vsub.f32 %v2129, %v2177
  %v2194 = vsub.f32 %v2132, %v2178
  %v2195 = vsub.f32 %v2135, %v2179
  %v2196 = vsub.f32 %v2138, %v2180
  %v2197 = vsub.f32 %v2141, %v2181
  %v2198 = vsub.f32 %v2144, %v2182
  %v2199 = vsub.f32 %v2147, %v2183
  %v2200 = vmul.f32 %v2192, 1.442695
  %v2201 = vpow.pop %v2200
  %v2202 = vmul.f32 %v2193, 1.442695
  %v2203 = vpow.pop %v2202
  %v2204 = vmul.f32 %v2194, 1.442695
  %v2205 = vpow.pop %v2204
  %v2206 = vmul.f32 %v2195, 1.442695
  %v2207 = vpow.pop %v2206
  %v2208 = vmul.f32 %v2196, 1.442695
  %v2209 = vpow.pop %v2208
  %v2210 = vmul.f32 %v2197, 1.442695
  %v2211 = vpow.pop %v2210
  %v2212 = vmul.f32 %v2198, 1.442695
  %v2213 = vpow.pop %v2212
  %v2214 = vmul.f32 %v2199, 1.442695
  %v2215 = vpow.pop %v2214
  %2224 = vset.pattern.permute.xlu0 0
  %2225 = vperm.xlu0 %2224, %v2201
  %v2226 = vpop.permute.xlu0 %2225
  %2227 = vset.pattern.permute.xlu0 0
  %2228 = vperm.xlu0 %2227, %v2203
  %v2229 = vpop.permute.xlu0 %2228
  %2230 = vset.pattern.permute.xlu0 0
  %2231 = vperm.xlu0 %2230, %v2205
  %v2232 = vpop.permute.xlu0 %2231
  %2233 = vset.pattern.permute.xlu0 0
  %2234 = vperm.xlu0 %2233, %v2207
  %v2235 = vpop.permute.xlu0 %2234
  %2236 = vset.pattern.permute.xlu0 0
  %2237 = vperm.xlu0 %2236, %v2209
  %v2238 = vpop.permute.xlu0 %2237
  %2239 = vset.pattern.permute.xlu0 0
  %2240 = vperm.xlu0 %2239, %v2211
  %v2241 = vpop.permute.xlu0 %2240
  %2242 = vset.pattern.permute.xlu0 0
  %2243 = vperm.xlu0 %2242, %v2213
  %v2244 = vpop.permute.xlu0 %2243
  %2245 = vset.pattern.permute.xlu0 0
  %2246 = vperm.xlu0 %2245, %v2215
  %v2247 = vpop.permute.xlu0 %2246
  %v2248 = vperm.slane %v2226, %v319
  %v2249 = vperm.slane %v2229, %v319
  %v2250 = vperm.slane %v2232, %v319
  %v2251 = vperm.slane %v2235, %v319
  %v2252 = vperm.slane %v2238, %v319
  %v2253 = vperm.slane %v2241, %v319
  %v2254 = vperm.slane %v2244, %v319
  %v2255 = vperm.slane %v2247, %v319
  %v2256 = vsel %vm328, %v2249, %v2248
  %v2257 = vsel %vm330, %v2250, %v2256
  %v2258 = vsel %vm332, %v2251, %v2257
  %v2259 = vsel %vm334, %v2252, %v2258
  %v2260 = vsel %vm336, %v2253, %v2259
  %v2261 = vsel %vm338, %v2254, %v2260
  %v2262 = vsel %vm340, %v2255, %v2261
  %v2264 = vsel %vm343, %v2262, 0.0
  %2265 = vadd.xlane.f32.xlu0 %v2264
  %v2266 = vpop.xlane.xlu0 %2265
  %v2268 = vperm.slane %v2266, 0
  %v2269 = vperm.slane %v2266, 1
  %v2270 = vperm.slane %v2266, 2
  %v2271 = vperm.slane %v2266, 3
  %v2272 = vperm.slane %v2266, 4
  %v2273 = vperm.slane %v2266, 5
  %v2274 = vperm.slane %v2266, 6
  %v2275 = vperm.slane %v2266, 7
  %v2284 = vrcp.pop %v2268
  %v2285 = vmul.f32 %v2268, %v2284
  %v2286 = vsub.f32 1.0, %v2285
  %v2287 = vmul.f32 %v2284, %v2286
  %v2288 = vadd.f32 %v2284, %v2287
  %vm2289 = vweird.f32 %v2268
  %vm2290 = vweird.f32 %v2284
  %vm2291 = vmor %vm2289, %vm2290
  %v2292 = vsel %vm2291, %v2284, %v2288
  %v2293 = vand.u32 2147483647, %v2268
  %vm2294 = vcmp.eq.f32.partialorder %v2293, 8.507059e+37
  %v2295 = vand.u32 %v2268, 2147483648
  %v2296 = vor.u32 1.1754944e-38, %v2295
  %v2297 = vsel %vm2294, %v2296, %v2292
  %v2298 = vmul.f32 %v2201, %v2297
  %v2299 = vrcp.pop %v2269
  %v2300 = vmul.f32 %v2269, %v2299
  %v2301 = vsub.f32 1.0, %v2300
  %v2302 = vmul.f32 %v2299, %v2301
  %v2303 = vadd.f32 %v2299, %v2302
  %vm2304 = vweird.f32 %v2269
  %vm2305 = vweird.f32 %v2299
  %vm2306 = vmor %vm2304, %vm2305
  %v2307 = vsel %vm2306, %v2299, %v2303
  %v2308 = vand.u32 2147483647, %v2269
  %vm2309 = vcmp.eq.f32.partialorder %v2308, 8.507059e+37
  %v2310 = vand.u32 %v2269, 2147483648
  %v2311 = vor.u32 1.1754944e-38, %v2310
  %v2312 = vsel %vm2309, %v2311, %v2307
  %v2313 = vmul.f32 %v2203, %v2312
  %v2314 = vrcp.pop %v2270
  %v2315 = vmul.f32 %v2270, %v2314
  %v2316 = vsub.f32 1.0, %v2315
  %v2317 = vmul.f32 %v2314, %v2316
  %v2318 = vadd.f32 %v2314, %v2317
  %vm2319 = vweird.f32 %v2270
  %vm2320 = vweird.f32 %v2314
  %vm2321 = vmor %vm2319, %vm2320
  %v2322 = vsel %vm2321, %v2314, %v2318
  %v2323 = vand.u32 2147483647, %v2270
  %vm2324 = vcmp.eq.f32.partialorder %v2323, 8.507059e+37
  %v2325 = vand.u32 %v2270, 2147483648
  %v2326 = vor.u32 1.1754944e-38, %v2325
  %v2327 = vsel %vm2324, %v2326, %v2322
  %v2328 = vmul.f32 %v2205, %v2327
  %v2329 = vrcp.pop %v2271
  %v2330 = vmul.f32 %v2271, %v2329
  %v2331 = vsub.f32 1.0, %v2330
  %v2332 = vmul.f32 %v2329, %v2331
  %v2333 = vadd.f32 %v2329, %v2332
  %vm2334 = vweird.f32 %v2271
  %vm2335 = vweird.f32 %v2329
  %vm2336 = vmor %vm2334, %vm2335
  %v2337 = vsel %vm2336, %v2329, %v2333
  %v2338 = vand.u32 2147483647, %v2271
  %vm2339 = vcmp.eq.f32.partialorder %v2338, 8.507059e+37
  %v2340 = vand.u32 %v2271, 2147483648
  %v2341 = vor.u32 1.1754944e-38, %v2340
  %v2342 = vsel %vm2339, %v2341, %v2337
  %v2343 = vmul.f32 %v2207, %v2342
  %v2344 = vrcp.pop %v2272
  %v2345 = vmul.f32 %v2272, %v2344
  %v2346 = vsub.f32 1.0, %v2345
  %v2347 = vmul.f32 %v2344, %v2346
  %v2348 = vadd.f32 %v2344, %v2347
  %vm2349 = vweird.f32 %v2272
  %vm2350 = vweird.f32 %v2344
  %vm2351 = vmor %vm2349, %vm2350
  %v2352 = vsel %vm2351, %v2344, %v2348
  %v2353 = vand.u32 2147483647, %v2272
  %vm2354 = vcmp.eq.f32.partialorder %v2353, 8.507059e+37
  %v2355 = vand.u32 %v2272, 2147483648
  %v2356 = vor.u32 1.1754944e-38, %v2355
  %v2357 = vsel %vm2354, %v2356, %v2352
  %v2358 = vmul.f32 %v2209, %v2357
  %v2359 = vrcp.pop %v2273
  %v2360 = vmul.f32 %v2273, %v2359
  %v2361 = vsub.f32 1.0, %v2360
  %v2362 = vmul.f32 %v2359, %v2361
  %v2363 = vadd.f32 %v2359, %v2362
  %vm2364 = vweird.f32 %v2273
  %vm2365 = vweird.f32 %v2359
  %vm2366 = vmor %vm2364, %vm2365
  %v2367 = vsel %vm2366, %v2359, %v2363
  %v2368 = vand.u32 2147483647, %v2273
  %vm2369 = vcmp.eq.f32.partialorder %v2368, 8.507059e+37
  %v2370 = vand.u32 %v2273, 2147483648
  %v2371 = vor.u32 1.1754944e-38, %v2370
  %v2372 = vsel %vm2369, %v2371, %v2367
  %v2373 = vmul.f32 %v2211, %v2372
  %v2374 = vrcp.pop %v2274
  %v2375 = vmul.f32 %v2274, %v2374
  %v2376 = vsub.f32 1.0, %v2375
  %v2377 = vmul.f32 %v2374, %v2376
  %v2378 = vadd.f32 %v2374, %v2377
  %vm2379 = vweird.f32 %v2274
  %vm2380 = vweird.f32 %v2374
  %vm2381 = vmor %vm2379, %vm2380
  %v2382 = vsel %vm2381, %v2374, %v2378
  %v2383 = vand.u32 2147483647, %v2274
  %vm2384 = vcmp.eq.f32.partialorder %v2383, 8.507059e+37
  %v2385 = vand.u32 %v2274, 2147483648
  %v2386 = vor.u32 1.1754944e-38, %v2385
  %v2387 = vsel %vm2384, %v2386, %v2382
  %v2388 = vmul.f32 %v2213, %v2387
  %v2389 = vrcp.pop %v2275
  %v2390 = vmul.f32 %v2275, %v2389
  %v2391 = vsub.f32 1.0, %v2390
  %v2392 = vmul.f32 %v2389, %v2391
  %v2393 = vadd.f32 %v2389, %v2392
  %vm2394 = vweird.f32 %v2275
  %vm2395 = vweird.f32 %v2389
  %vm2396 = vmor %vm2394, %vm2395
  %v2397 = vsel %vm2396, %v2389, %v2393
  %v2398 = vand.u32 2147483647, %v2275
  %vm2399 = vcmp.eq.f32.partialorder %v2398, 8.507059e+37
  %v2400 = vand.u32 %v2275, 2147483648
  %v2401 = vor.u32 1.1754944e-38, %v2400
  %v2402 = vsel %vm2399, %v2401, %v2397
  %v2403 = vmul.f32 %v2215, %v2402
  %2405 = vset.pattern.permute.xlu0 0
  %2406 = vperm.xlu0 %2405, %v2298
  %v2407 = vpop.permute.xlu0 %2406
  %2410 = vset.pattern.permute.xlu0 0
  %2411 = vperm.xlu0 %2410, %v2313
  %v2412 = vpop.permute.xlu0 %2411
  %2415 = vset.pattern.permute.xlu0 0
  %2416 = vperm.xlu0 %2415, %v2328
  %v2417 = vpop.permute.xlu0 %2416
  %2420 = vset.pattern.permute.xlu0 0
  %2421 = vperm.xlu0 %2420, %v2343
  %v2422 = vpop.permute.xlu0 %2421
  %2425 = vset.pattern.permute.xlu0 0
  %2426 = vperm.xlu0 %2425, %v2358
  %v2427 = vpop.permute.xlu0 %2426
  %2430 = vset.pattern.permute.xlu0 0
  %2431 = vperm.xlu0 %2430, %v2373
  %v2432 = vpop.permute.xlu0 %2431
  %2435 = vset.pattern.permute.xlu0 0
  %2436 = vperm.xlu0 %2435, %v2388
  %v2437 = vpop.permute.xlu0 %2436
  %2440 = vset.pattern.permute.xlu0 0
  %2441 = vperm.xlu0 %2440, %v2403
  %v2442 = vpop.permute.xlu0 %2441
  %v2444 = vmul.f32 %v2407, %v98
  %v2445 = vmul.f32 %v2412, %v99
  %v2446 = vmul.f32 %v2417, %v100
  %v2447 = vmul.f32 %v2422, %v101
  %v2448 = vmul.f32 %v2427, %v102
  %v2449 = vmul.f32 %v2432, %v103
  %v2450 = vmul.f32 %v2437, %v104
  %v2451 = vmul.f32 %v2442, %v105
  %v2452 = vsel %vm285, %v2444, 0.0
  %v2453 = vrot.slane %v2452, 4
  %v2454 = vadd.f32 %v2452, %v2453
  %v2455 = vrot.slane %v2454, 2
  %v2456 = vadd.f32 %v2454, %v2455
  %v2457 = vrot.slane %v2456, 1
  %v2458 = vadd.f32 %v2456, %v2457
  %v2459 = vsel %vm285, %v2445, 0.0
  %v2460 = vrot.slane %v2459, 4
  %v2461 = vadd.f32 %v2459, %v2460
  %v2462 = vrot.slane %v2461, 2
  %v2463 = vadd.f32 %v2461, %v2462
  %v2464 = vrot.slane %v2463, 1
  %v2465 = vadd.f32 %v2463, %v2464
  %v2466 = vsel %vm285, %v2446, 0.0
  %v2467 = vrot.slane %v2466, 4
  %v2468 = vadd.f32 %v2466, %v2467
  %v2469 = vrot.slane %v2468, 2
  %v2470 = vadd.f32 %v2468, %v2469
  %v2471 = vrot.slane %v2470, 1
  %v2472 = vadd.f32 %v2470, %v2471
  %v2473 = vsel %vm285, %v2447, 0.0
  %v2474 = vrot.slane %v2473, 4
  %v2475 = vadd.f32 %v2473, %v2474
  %v2476 = vrot.slane %v2475, 2
  %v2477 = vadd.f32 %v2475, %v2476
  %v2478 = vrot.slane %v2477, 1
  %v2479 = vadd.f32 %v2477, %v2478
  %v2480 = vsel %vm285, %v2448, 0.0
  %v2481 = vrot.slane %v2480, 4
  %v2482 = vadd.f32 %v2480, %v2481
  %v2483 = vrot.slane %v2482, 2
  %v2484 = vadd.f32 %v2482, %v2483
  %v2485 = vrot.slane %v2484, 1
  %v2486 = vadd.f32 %v2484, %v2485
  %v2487 = vsel %vm285, %v2449, 0.0
  %v2488 = vrot.slane %v2487, 4
  %v2489 = vadd.f32 %v2487, %v2488
  %v2490 = vrot.slane %v2489, 2
  %v2491 = vadd.f32 %v2489, %v2490
  %v2492 = vrot.slane %v2491, 1
  %v2493 = vadd.f32 %v2491, %v2492
  %v2494 = vsel %vm285, %v2450, 0.0
  %v2495 = vrot.slane %v2494, 4
  %v2496 = vadd.f32 %v2494, %v2495
  %v2497 = vrot.slane %v2496, 2
  %v2498 = vadd.f32 %v2496, %v2497
  %v2499 = vrot.slane %v2498, 1
  %v2500 = vadd.f32 %v2498, %v2499
  %v2501 = vsel %vm285, %v2451, 0.0
  %v2502 = vrot.slane %v2501, 4
  %v2503 = vadd.f32 %v2501, %v2502
  %v2504 = vrot.slane %v2503, 2
  %v2505 = vadd.f32 %v2503, %v2504
  %v2506 = vrot.slane %v2505, 1
  %v2507 = vadd.f32 %v2505, %v2506
  %v2516 = vsel %vm328, %v2465, %v2458
  %v2517 = vsel %vm330, %v2472, %v2516
  %v2518 = vsel %vm332, %v2479, %v2517
  %v2519 = vsel %vm334, %v2486, %v2518
  %v2520 = vsel %vm336, %v2493, %v2519
  %v2521 = vsel %vm338, %v2500, %v2520
  %v2522 = vsel %vm340, %v2507, %v2521
  %v2523 = vsel %vm285, %v2522, 0
  %2525 = vmatpush.msra.mxu0 0.0
  %2526 = vmatpush.msra.mxu0 0.0
  %2527 = vmatpush.msra.mxu0 0.0
  %2528 = vmatpush.msra.mxu0 0.0
  %2529 = vmatpush.msra.mxu0 0.0
  %2530 = vmatpush.msra.mxu0 0.0
  %2531 = vmatpush.msra.mxu0 0.0
  %2532 = vmatpush.msra.mxu0 0.0
  %2533 = vmatpush.msra.mxu0 0.0
  %2534 = vmatpush.msra.mxu0 0.0
  %2535 = vmatpush.msra.mxu0 0.0
  %2536 = vmatpush.msra.mxu0 0.0
  %2537 = vmatpush.msra.mxu0 %v247
  %2538 = vmatpush.msra.mxu0 %v246
  %2539 = vmatpush.msra.mxu0 %v245
  %2540 = vmatpush.msra.mxu0 %v244
  %2541 = vmatmul.f32.gmra.mxu0 %v2523
  %v2542 = vpop.f32.mrf.mxu0
  %v2543 = vadd.f32 0.0, %v2542
  %2544 = vdwg.mxu0
  %v2545 = vadd.f32 %v176, %v2543
  %v2546 = vadd.f32 %v2545, %v250
  %s2547 = scalar_lea.vmem %s8, 40
  %2548 = vst [vmem:[%s2547] sm:$0xff] %v2546
  %v2550 = vrot.slane %v242, 1
  %v2551 = vrot.slane %v242, 2
  %v2552 = vrot.slane %v242, 3
  %v2553 = vrot.slane %v242, 4
  %v2554 = vrot.slane %v242, 5
  %v2555 = vrot.slane %v242, 6
  %v2556 = vrot.slane %v242, 7
  %v2557 = vperm.slane %v242, 0
  %v2558 = vperm.slane %v2550, 0
  %v2559 = vperm.slane %v2551, 0
  %v2560 = vperm.slane %v2552, 0
  %v2561 = vperm.slane %v2553, 0
  %v2562 = vperm.slane %v2554, 0
  %v2563 = vperm.slane %v2555, 0
  %v2564 = vperm.slane %v2556, 0
  %v2573 = vmul.f32 %v2557, %v98
  %v2574 = vmul.f32 %v2558, %v99
  %v2575 = vmul.f32 %v2559, %v100
  %v2576 = vmul.f32 %v2560, %v101
  %v2577 = vmul.f32 %v2561, %v102
  %v2578 = vmul.f32 %v2562, %v103
  %v2579 = vmul.f32 %v2563, %v104
  %v2580 = vmul.f32 %v2564, %v105
  %v2581 = vsel %vm285, %v2573, 0.0
  %2582 = vadd.xlane.f32.xlu0 %v2581
  %v2583 = vpop.xlane.xlu0 %2582
  %v2584 = vsel %vm285, %v2574, 0.0
  %2585 = vadd.xlane.f32.xlu0 %v2584
  %v2586 = vpop.xlane.xlu0 %2585
  %v2587 = vsel %vm285, %v2575, 0.0
  %2588 = vadd.xlane.f32.xlu0 %v2587
  %v2589 = vpop.xlane.xlu0 %2588
  %v2590 = vsel %vm285, %v2576, 0.0
  %2591 = vadd.xlane.f32.xlu0 %v2590
  %v2592 = vpop.xlane.xlu0 %2591
  %v2593 = vsel %vm285, %v2577, 0.0
  %2594 = vadd.xlane.f32.xlu0 %v2593
  %v2595 = vpop.xlane.xlu0 %2594
  %v2596 = vsel %vm285, %v2578, 0.0
  %2597 = vadd.xlane.f32.xlu0 %v2596
  %v2598 = vpop.xlane.xlu0 %2597
  %v2599 = vsel %vm285, %v2579, 0.0
  %2600 = vadd.xlane.f32.xlu0 %v2599
  %v2601 = vpop.xlane.xlu0 %2600
  %v2602 = vsel %vm285, %v2580, 0.0
  %2603 = vadd.xlane.f32.xlu0 %v2602
  %v2604 = vpop.xlane.xlu0 %2603
  %v2613 = vperm.slane %v2583, %v319
  %v2614 = vperm.slane %v2586, %v319
  %v2615 = vperm.slane %v2589, %v319
  %v2616 = vperm.slane %v2592, %v319
  %v2617 = vperm.slane %v2595, %v319
  %v2618 = vperm.slane %v2598, %v319
  %v2619 = vperm.slane %v2601, %v319
  %v2620 = vperm.slane %v2604, %v319
  %v2621 = vsel %vm328, %v2614, %v2613
  %v2622 = vsel %vm330, %v2615, %v2621
  %v2623 = vsel %vm332, %v2616, %v2622
  %v2624 = vsel %vm334, %v2617, %v2623
  %v2625 = vsel %vm336, %v2618, %v2624
  %v2626 = vsel %vm338, %v2619, %v2625
  %v2627 = vsel %vm340, %v2620, %v2626
  %v2629 = vsel %vm343, %v2627, -inf
  %2630 = vmax.xlane.f32.xlu0 %v2629
  %v2631 = vpop.xlane.xlu0 %2630
  %v2633 = vperm.slane %v2631, 0
  %v2634 = vperm.slane %v2631, 1
  %v2635 = vperm.slane %v2631, 2
  %v2636 = vperm.slane %v2631, 3
  %v2637 = vperm.slane %v2631, 4
  %v2638 = vperm.slane %v2631, 5
  %v2639 = vperm.slane %v2631, 6
  %v2640 = vperm.slane %v2631, 7
  %v2649 = vsub.f32 %v2583, %v2633
  %v2650 = vsub.f32 %v2586, %v2634
  %v2651 = vsub.f32 %v2589, %v2635
  %v2652 = vsub.f32 %v2592, %v2636
  %v2653 = vsub.f32 %v2595, %v2637
  %v2654 = vsub.f32 %v2598, %v2638
  %v2655 = vsub.f32 %v2601, %v2639
  %v2656 = vsub.f32 %v2604, %v2640
  %v2657 = vmul.f32 %v2649, 1.442695
  %v2658 = vpow.pop %v2657
  %v2659 = vmul.f32 %v2650, 1.442695
  %v2660 = vpow.pop %v2659
  %v2661 = vmul.f32 %v2651, 1.442695
  %v2662 = vpow.pop %v2661
  %v2663 = vmul.f32 %v2652, 1.442695
  %v2664 = vpow.pop %v2663
  %v2665 = vmul.f32 %v2653, 1.442695
  %v2666 = vpow.pop %v2665
  %v2667 = vmul.f32 %v2654, 1.442695
  %v2668 = vpow.pop %v2667
  %v2669 = vmul.f32 %v2655, 1.442695
  %v2670 = vpow.pop %v2669
  %v2671 = vmul.f32 %v2656, 1.442695
  %v2672 = vpow.pop %v2671
  %2681 = vset.pattern.permute.xlu0 0
  %2682 = vperm.xlu0 %2681, %v2658
  %v2683 = vpop.permute.xlu0 %2682
  %2684 = vset.pattern.permute.xlu0 0
  %2685 = vperm.xlu0 %2684, %v2660
  %v2686 = vpop.permute.xlu0 %2685
  %2687 = vset.pattern.permute.xlu0 0
  %2688 = vperm.xlu0 %2687, %v2662
  %v2689 = vpop.permute.xlu0 %2688
  %2690 = vset.pattern.permute.xlu0 0
  %2691 = vperm.xlu0 %2690, %v2664
  %v2692 = vpop.permute.xlu0 %2691
  %2693 = vset.pattern.permute.xlu0 0
  %2694 = vperm.xlu0 %2693, %v2666
  %v2695 = vpop.permute.xlu0 %2694
  %2696 = vset.pattern.permute.xlu0 0
  %2697 = vperm.xlu0 %2696, %v2668
  %v2698 = vpop.permute.xlu0 %2697
  %2699 = vset.pattern.permute.xlu0 0
  %2700 = vperm.xlu0 %2699, %v2670
  %v2701 = vpop.permute.xlu0 %2700
  %2702 = vset.pattern.permute.xlu0 0
  %2703 = vperm.xlu0 %2702, %v2672
  %v2704 = vpop.permute.xlu0 %2703
  %v2705 = vperm.slane %v2683, %v319
  %v2706 = vperm.slane %v2686, %v319
  %v2707 = vperm.slane %v2689, %v319
  %v2708 = vperm.slane %v2692, %v319
  %v2709 = vperm.slane %v2695, %v319
  %v2710 = vperm.slane %v2698, %v319
  %v2711 = vperm.slane %v2701, %v319
  %v2712 = vperm.slane %v2704, %v319
  %v2713 = vsel %vm328, %v2706, %v2705
  %v2714 = vsel %vm330, %v2707, %v2713
  %v2715 = vsel %vm332, %v2708, %v2714
  %v2716 = vsel %vm334, %v2709, %v2715
  %v2717 = vsel %vm336, %v2710, %v2716
  %v2718 = vsel %vm338, %v2711, %v2717
  %v2719 = vsel %vm340, %v2712, %v2718
  %v2721 = vsel %vm343, %v2719, 0.0
  %2722 = vadd.xlane.f32.xlu0 %v2721
  %v2723 = vpop.xlane.xlu0 %2722
  %v2725 = vperm.slane %v2723, 0
  %v2726 = vperm.slane %v2723, 1
  %v2727 = vperm.slane %v2723, 2
  %v2728 = vperm.slane %v2723, 3
  %v2729 = vperm.slane %v2723, 4
  %v2730 = vperm.slane %v2723, 5
  %v2731 = vperm.slane %v2723, 6
  %v2732 = vperm.slane %v2723, 7
  %v2741 = vrcp.pop %v2725
  %v2742 = vmul.f32 %v2725, %v2741
  %v2743 = vsub.f32 1.0, %v2742
  %v2744 = vmul.f32 %v2741, %v2743
  %v2745 = vadd.f32 %v2741, %v2744
  %vm2746 = vweird.f32 %v2725
  %vm2747 = vweird.f32 %v2741
  %vm2748 = vmor %vm2746, %vm2747
  %v2749 = vsel %vm2748, %v2741, %v2745
  %v2750 = vand.u32 2147483647, %v2725
  %vm2751 = vcmp.eq.f32.partialorder %v2750, 8.507059e+37
  %v2752 = vand.u32 %v2725, 2147483648
  %v2753 = vor.u32 1.1754944e-38, %v2752
  %v2754 = vsel %vm2751, %v2753, %v2749
  %v2755 = vmul.f32 %v2658, %v2754
  %v2756 = vrcp.pop %v2726
  %v2757 = vmul.f32 %v2726, %v2756
  %v2758 = vsub.f32 1.0, %v2757
  %v2759 = vmul.f32 %v2756, %v2758
  %v2760 = vadd.f32 %v2756, %v2759
  %vm2761 = vweird.f32 %v2726
  %vm2762 = vweird.f32 %v2756
  %vm2763 = vmor %vm2761, %vm2762
  %v2764 = vsel %vm2763, %v2756, %v2760
  %v2765 = vand.u32 2147483647, %v2726
  %vm2766 = vcmp.eq.f32.partialorder %v2765, 8.507059e+37
  %v2767 = vand.u32 %v2726, 2147483648
  %v2768 = vor.u32 1.1754944e-38, %v2767
  %v2769 = vsel %vm2766, %v2768, %v2764
  %v2770 = vmul.f32 %v2660, %v2769
  %v2771 = vrcp.pop %v2727
  %v2772 = vmul.f32 %v2727, %v2771
  %v2773 = vsub.f32 1.0, %v2772
  %v2774 = vmul.f32 %v2771, %v2773
  %v2775 = vadd.f32 %v2771, %v2774
  %vm2776 = vweird.f32 %v2727
  %vm2777 = vweird.f32 %v2771
  %vm2778 = vmor %vm2776, %vm2777
  %v2779 = vsel %vm2778, %v2771, %v2775
  %v2780 = vand.u32 2147483647, %v2727
  %vm2781 = vcmp.eq.f32.partialorder %v2780, 8.507059e+37
  %v2782 = vand.u32 %v2727, 2147483648
  %v2783 = vor.u32 1.1754944e-38, %v2782
  %v2784 = vsel %vm2781, %v2783, %v2779
  %v2785 = vmul.f32 %v2662, %v2784
  %v2786 = vrcp.pop %v2728
  %v2787 = vmul.f32 %v2728, %v2786
  %v2788 = vsub.f32 1.0, %v2787
  %v2789 = vmul.f32 %v2786, %v2788
  %v2790 = vadd.f32 %v2786, %v2789
  %vm2791 = vweird.f32 %v2728
  %vm2792 = vweird.f32 %v2786
  %vm2793 = vmor %vm2791, %vm2792
  %v2794 = vsel %vm2793, %v2786, %v2790
  %v2795 = vand.u32 2147483647, %v2728
  %vm2796 = vcmp.eq.f32.partialorder %v2795, 8.507059e+37
  %v2797 = vand.u32 %v2728, 2147483648
  %v2798 = vor.u32 1.1754944e-38, %v2797
  %v2799 = vsel %vm2796, %v2798, %v2794
  %v2800 = vmul.f32 %v2664, %v2799
  %v2801 = vrcp.pop %v2729
  %v2802 = vmul.f32 %v2729, %v2801
  %v2803 = vsub.f32 1.0, %v2802
  %v2804 = vmul.f32 %v2801, %v2803
  %v2805 = vadd.f32 %v2801, %v2804
  %vm2806 = vweird.f32 %v2729
  %vm2807 = vweird.f32 %v2801
  %vm2808 = vmor %vm2806, %vm2807
  %v2809 = vsel %vm2808, %v2801, %v2805
  %v2810 = vand.u32 2147483647, %v2729
  %vm2811 = vcmp.eq.f32.partialorder %v2810, 8.507059e+37
  %v2812 = vand.u32 %v2729, 2147483648
  %v2813 = vor.u32 1.1754944e-38, %v2812
  %v2814 = vsel %vm2811, %v2813, %v2809
  %v2815 = vmul.f32 %v2666, %v2814
  %v2816 = vrcp.pop %v2730
  %v2817 = vmul.f32 %v2730, %v2816
  %v2818 = vsub.f32 1.0, %v2817
  %v2819 = vmul.f32 %v2816, %v2818
  %v2820 = vadd.f32 %v2816, %v2819
  %vm2821 = vweird.f32 %v2730
  %vm2822 = vweird.f32 %v2816
  %vm2823 = vmor %vm2821, %vm2822
  %v2824 = vsel %vm2823, %v2816, %v2820
  %v2825 = vand.u32 2147483647, %v2730
  %vm2826 = vcmp.eq.f32.partialorder %v2825, 8.507059e+37
  %v2827 = vand.u32 %v2730, 2147483648
  %v2828 = vor.u32 1.1754944e-38, %v2827
  %v2829 = vsel %vm2826, %v2828, %v2824
  %v2830 = vmul.f32 %v2668, %v2829
  %v2831 = vrcp.pop %v2731
  %v2832 = vmul.f32 %v2731, %v2831
  %v2833 = vsub.f32 1.0, %v2832
  %v2834 = vmul.f32 %v2831, %v2833
  %v2835 = vadd.f32 %v2831, %v2834
  %vm2836 = vweird.f32 %v2731
  %vm2837 = vweird.f32 %v2831
  %vm2838 = vmor %vm2836, %vm2837
  %v2839 = vsel %vm2838, %v2831, %v2835
  %v2840 = vand.u32 2147483647, %v2731
  %vm2841 = vcmp.eq.f32.partialorder %v2840, 8.507059e+37
  %v2842 = vand.u32 %v2731, 2147483648
  %v2843 = vor.u32 1.1754944e-38, %v2842
  %v2844 = vsel %vm2841, %v2843, %v2839
  %v2845 = vmul.f32 %v2670, %v2844
  %v2846 = vrcp.pop %v2732
  %v2847 = vmul.f32 %v2732, %v2846
  %v2848 = vsub.f32 1.0, %v2847
  %v2849 = vmul.f32 %v2846, %v2848
  %v2850 = vadd.f32 %v2846, %v2849
  %vm2851 = vweird.f32 %v2732
  %vm2852 = vweird.f32 %v2846
  %vm2853 = vmor %vm2851, %vm2852
  %v2854 = vsel %vm2853, %v2846, %v2850
  %v2855 = vand.u32 2147483647, %v2732
  %vm2856 = vcmp.eq.f32.partialorder %v2855, 8.507059e+37
  %v2857 = vand.u32 %v2732, 2147483648
  %v2858 = vor.u32 1.1754944e-38, %v2857
  %v2859 = vsel %vm2856, %v2858, %v2854
  %v2860 = vmul.f32 %v2672, %v2859
  %2862 = vset.pattern.permute.xlu0 0
  %2863 = vperm.xlu0 %2862, %v2755
  %v2864 = vpop.permute.xlu0 %2863
  %2867 = vset.pattern.permute.xlu0 0
  %2868 = vperm.xlu0 %2867, %v2770
  %v2869 = vpop.permute.xlu0 %2868
  %2872 = vset.pattern.permute.xlu0 0
  %2873 = vperm.xlu0 %2872, %v2785
  %v2874 = vpop.permute.xlu0 %2873
  %2877 = vset.pattern.permute.xlu0 0
  %2878 = vperm.xlu0 %2877, %v2800
  %v2879 = vpop.permute.xlu0 %2878
  %2882 = vset.pattern.permute.xlu0 0
  %2883 = vperm.xlu0 %2882, %v2815
  %v2884 = vpop.permute.xlu0 %2883
  %2887 = vset.pattern.permute.xlu0 0
  %2888 = vperm.xlu0 %2887, %v2830
  %v2889 = vpop.permute.xlu0 %2888
  %2892 = vset.pattern.permute.xlu0 0
  %2893 = vperm.xlu0 %2892, %v2845
  %v2894 = vpop.permute.xlu0 %2893
  %2897 = vset.pattern.permute.xlu0 0
  %2898 = vperm.xlu0 %2897, %v2860
  %v2899 = vpop.permute.xlu0 %2898
  %v2901 = vmul.f32 %v2864, %v98
  %v2902 = vmul.f32 %v2869, %v99
  %v2903 = vmul.f32 %v2874, %v100
  %v2904 = vmul.f32 %v2879, %v101
  %v2905 = vmul.f32 %v2884, %v102
  %v2906 = vmul.f32 %v2889, %v103
  %v2907 = vmul.f32 %v2894, %v104
  %v2908 = vmul.f32 %v2899, %v105
  %v2909 = vsel %vm285, %v2901, 0.0
  %v2910 = vrot.slane %v2909, 4
  %v2911 = vadd.f32 %v2909, %v2910
  %v2912 = vrot.slane %v2911, 2
  %v2913 = vadd.f32 %v2911, %v2912
  %v2914 = vrot.slane %v2913, 1
  %v2915 = vadd.f32 %v2913, %v2914
  %v2916 = vsel %vm285, %v2902, 0.0
  %v2917 = vrot.slane %v2916, 4
  %v2918 = vadd.f32 %v2916, %v2917
  %v2919 = vrot.slane %v2918, 2
  %v2920 = vadd.f32 %v2918, %v2919
  %v2921 = vrot.slane %v2920, 1
  %v2922 = vadd.f32 %v2920, %v2921
  %v2923 = vsel %vm285, %v2903, 0.0
  %v2924 = vrot.slane %v2923, 4
  %v2925 = vadd.f32 %v2923, %v2924
  %v2926 = vrot.slane %v2925, 2
  %v2927 = vadd.f32 %v2925, %v2926
  %v2928 = vrot.slane %v2927, 1
  %v2929 = vadd.f32 %v2927, %v2928
  %v2930 = vsel %vm285, %v2904, 0.0
  %v2931 = vrot.slane %v2930, 4
  %v2932 = vadd.f32 %v2930, %v2931
  %v2933 = vrot.slane %v2932, 2
  %v2934 = vadd.f32 %v2932, %v2933
  %v2935 = vrot.slane %v2934, 1
  %v2936 = vadd.f32 %v2934, %v2935
  %v2937 = vsel %vm285, %v2905, 0.0
  %v2938 = vrot.slane %v2937, 4
  %v2939 = vadd.f32 %v2937, %v2938
  %v2940 = vrot.slane %v2939, 2
  %v2941 = vadd.f32 %v2939, %v2940
  %v2942 = vrot.slane %v2941, 1
  %v2943 = vadd.f32 %v2941, %v2942
  %v2944 = vsel %vm285, %v2906, 0.0
  %v2945 = vrot.slane %v2944, 4
  %v2946 = vadd.f32 %v2944, %v2945
  %v2947 = vrot.slane %v2946, 2
  %v2948 = vadd.f32 %v2946, %v2947
  %v2949 = vrot.slane %v2948, 1
  %v2950 = vadd.f32 %v2948, %v2949
  %v2951 = vsel %vm285, %v2907, 0.0
  %v2952 = vrot.slane %v2951, 4
  %v2953 = vadd.f32 %v2951, %v2952
  %v2954 = vrot.slane %v2953, 2
  %v2955 = vadd.f32 %v2953, %v2954
  %v2956 = vrot.slane %v2955, 1
  %v2957 = vadd.f32 %v2955, %v2956
  %v2958 = vsel %vm285, %v2908, 0.0
  %v2959 = vrot.slane %v2958, 4
  %v2960 = vadd.f32 %v2958, %v2959
  %v2961 = vrot.slane %v2960, 2
  %v2962 = vadd.f32 %v2960, %v2961
  %v2963 = vrot.slane %v2962, 1
  %v2964 = vadd.f32 %v2962, %v2963
  %v2973 = vsel %vm328, %v2922, %v2915
  %v2974 = vsel %vm330, %v2929, %v2973
  %v2975 = vsel %vm332, %v2936, %v2974
  %v2976 = vsel %vm334, %v2943, %v2975
  %v2977 = vsel %vm336, %v2950, %v2976
  %v2978 = vsel %vm338, %v2957, %v2977
  %v2979 = vsel %vm340, %v2964, %v2978
  %v2980 = vsel %vm285, %v2979, 0
  %2982 = vmatpush.msra.mxu0 0.0
  %2983 = vmatpush.msra.mxu0 0.0
  %2984 = vmatpush.msra.mxu0 0.0
  %2985 = vmatpush.msra.mxu0 0.0
  %2986 = vmatpush.msra.mxu0 0.0
  %2987 = vmatpush.msra.mxu0 0.0
  %2988 = vmatpush.msra.mxu0 0.0
  %2989 = vmatpush.msra.mxu0 0.0
  %2990 = vmatpush.msra.mxu0 0.0
  %2991 = vmatpush.msra.mxu0 0.0
  %2992 = vmatpush.msra.mxu0 0.0
  %2993 = vmatpush.msra.mxu0 0.0
  %2994 = vmatpush.msra.mxu0 %v247
  %2995 = vmatpush.msra.mxu0 %v246
  %2996 = vmatpush.msra.mxu0 %v245
  %2997 = vmatpush.msra.mxu0 %v244
  %2998 = vmatmul.f32.gmra.mxu0 %v2980
  %v2999 = vpop.f32.mrf.mxu0
  %v3000 = vadd.f32 0.0, %v2999
  %3001 = vdwg.mxu0
  %v3002 = vadd.f32 %v179, %v3000
  %v3003 = vadd.f32 %v3002, %v250
  %s3004 = scalar_lea.vmem %s8, 48
  %3005 = vst [vmem:[%s3004] sm:$0xff] %v3003
  %v3007 = vrot.slane %v243, 1
  %v3008 = vrot.slane %v243, 2
  %v3009 = vrot.slane %v243, 3
  %v3010 = vrot.slane %v243, 4
  %v3011 = vrot.slane %v243, 5
  %v3012 = vrot.slane %v243, 6
  %v3013 = vrot.slane %v243, 7
  %v3014 = vperm.slane %v243, 0
  %v3015 = vperm.slane %v3007, 0
  %v3016 = vperm.slane %v3008, 0
  %v3017 = vperm.slane %v3009, 0
  %v3018 = vperm.slane %v3010, 0
  %v3019 = vperm.slane %v3011, 0
  %v3020 = vperm.slane %v3012, 0
  %v3021 = vperm.slane %v3013, 0
  %v3030 = vmul.f32 %v3014, %v98
  %v3031 = vmul.f32 %v3015, %v99
  %v3032 = vmul.f32 %v3016, %v100
  %v3033 = vmul.f32 %v3017, %v101
  %v3034 = vmul.f32 %v3018, %v102
  %v3035 = vmul.f32 %v3019, %v103
  %v3036 = vmul.f32 %v3020, %v104
  %v3037 = vmul.f32 %v3021, %v105
  %v3038 = vsel %vm285, %v3030, 0.0
  %3039 = vadd.xlane.f32.xlu0 %v3038
  %v3040 = vpop.xlane.xlu0 %3039
  %v3041 = vsel %vm285, %v3031, 0.0
  %3042 = vadd.xlane.f32.xlu0 %v3041
  %v3043 = vpop.xlane.xlu0 %3042
  %v3044 = vsel %vm285, %v3032, 0.0
  %3045 = vadd.xlane.f32.xlu0 %v3044
  %v3046 = vpop.xlane.xlu0 %3045
  %v3047 = vsel %vm285, %v3033, 0.0
  %3048 = vadd.xlane.f32.xlu0 %v3047
  %v3049 = vpop.xlane.xlu0 %3048
  %v3050 = vsel %vm285, %v3034, 0.0
  %3051 = vadd.xlane.f32.xlu0 %v3050
  %v3052 = vpop.xlane.xlu0 %3051
  %v3053 = vsel %vm285, %v3035, 0.0
  %3054 = vadd.xlane.f32.xlu0 %v3053
  %v3055 = vpop.xlane.xlu0 %3054
  %v3056 = vsel %vm285, %v3036, 0.0
  %3057 = vadd.xlane.f32.xlu0 %v3056
  %v3058 = vpop.xlane.xlu0 %3057
  %v3059 = vsel %vm285, %v3037, 0.0
  %3060 = vadd.xlane.f32.xlu0 %v3059
  %v3061 = vpop.xlane.xlu0 %3060
  %v3070 = vperm.slane %v3040, %v319
  %v3071 = vperm.slane %v3043, %v319
  %v3072 = vperm.slane %v3046, %v319
  %v3073 = vperm.slane %v3049, %v319
  %v3074 = vperm.slane %v3052, %v319
  %v3075 = vperm.slane %v3055, %v319
  %v3076 = vperm.slane %v3058, %v319
  %v3077 = vperm.slane %v3061, %v319
  %v3078 = vsel %vm328, %v3071, %v3070
  %v3079 = vsel %vm330, %v3072, %v3078
  %v3080 = vsel %vm332, %v3073, %v3079
  %v3081 = vsel %vm334, %v3074, %v3080
  %v3082 = vsel %vm336, %v3075, %v3081
  %v3083 = vsel %vm338, %v3076, %v3082
  %v3084 = vsel %vm340, %v3077, %v3083
  %v3086 = vsel %vm343, %v3084, -inf
  %3087 = vmax.xlane.f32.xlu0 %v3086
  %v3088 = vpop.xlane.xlu0 %3087
  %v3090 = vperm.slane %v3088, 0
  %v3091 = vperm.slane %v3088, 1
  %v3092 = vperm.slane %v3088, 2
  %v3093 = vperm.slane %v3088, 3
  %v3094 = vperm.slane %v3088, 4
  %v3095 = vperm.slane %v3088, 5
  %v3096 = vperm.slane %v3088, 6
  %v3097 = vperm.slane %v3088, 7
  %v3106 = vsub.f32 %v3040, %v3090
  %v3107 = vsub.f32 %v3043, %v3091
  %v3108 = vsub.f32 %v3046, %v3092
  %v3109 = vsub.f32 %v3049, %v3093
  %v3110 = vsub.f32 %v3052, %v3094
  %v3111 = vsub.f32 %v3055, %v3095
  %v3112 = vsub.f32 %v3058, %v3096
  %v3113 = vsub.f32 %v3061, %v3097
  %v3114 = vmul.f32 %v3106, 1.442695
  %v3115 = vpow.pop %v3114
  %v3116 = vmul.f32 %v3107, 1.442695
  %v3117 = vpow.pop %v3116
  %v3118 = vmul.f32 %v3108, 1.442695
  %v3119 = vpow.pop %v3118
  %v3120 = vmul.f32 %v3109, 1.442695
  %v3121 = vpow.pop %v3120
  %v3122 = vmul.f32 %v3110, 1.442695
  %v3123 = vpow.pop %v3122
  %v3124 = vmul.f32 %v3111, 1.442695
  %v3125 = vpow.pop %v3124
  %v3126 = vmul.f32 %v3112, 1.442695
  %v3127 = vpow.pop %v3126
  %v3128 = vmul.f32 %v3113, 1.442695
  %v3129 = vpow.pop %v3128
  %3138 = vset.pattern.permute.xlu0 0
  %3139 = vperm.xlu0 %3138, %v3115
  %v3140 = vpop.permute.xlu0 %3139
  %3141 = vset.pattern.permute.xlu0 0
  %3142 = vperm.xlu0 %3141, %v3117
  %v3143 = vpop.permute.xlu0 %3142
  %3144 = vset.pattern.permute.xlu0 0
  %3145 = vperm.xlu0 %3144, %v3119
  %v3146 = vpop.permute.xlu0 %3145
  %3147 = vset.pattern.permute.xlu0 0
  %3148 = vperm.xlu0 %3147, %v3121
  %v3149 = vpop.permute.xlu0 %3148
  %3150 = vset.pattern.permute.xlu0 0
  %3151 = vperm.xlu0 %3150, %v3123
  %v3152 = vpop.permute.xlu0 %3151
  %3153 = vset.pattern.permute.xlu0 0
  %3154 = vperm.xlu0 %3153, %v3125
  %v3155 = vpop.permute.xlu0 %3154
  %3156 = vset.pattern.permute.xlu0 0
  %3157 = vperm.xlu0 %3156, %v3127
  %v3158 = vpop.permute.xlu0 %3157
  %3159 = vset.pattern.permute.xlu0 0
  %3160 = vperm.xlu0 %3159, %v3129
  %v3161 = vpop.permute.xlu0 %3160
  %v3162 = vperm.slane %v3140, %v319
  %v3163 = vperm.slane %v3143, %v319
  %v3164 = vperm.slane %v3146, %v319
  %v3165 = vperm.slane %v3149, %v319
  %v3166 = vperm.slane %v3152, %v319
  %v3167 = vperm.slane %v3155, %v319
  %v3168 = vperm.slane %v3158, %v319
  %v3169 = vperm.slane %v3161, %v319
  %v3170 = vsel %vm328, %v3163, %v3162
  %v3171 = vsel %vm330, %v3164, %v3170
  %v3172 = vsel %vm332, %v3165, %v3171
  %v3173 = vsel %vm334, %v3166, %v3172
  %v3174 = vsel %vm336, %v3167, %v3173
  %v3175 = vsel %vm338, %v3168, %v3174
  %v3176 = vsel %vm340, %v3169, %v3175
  %v3178 = vsel %vm343, %v3176, 0.0
  %3179 = vadd.xlane.f32.xlu0 %v3178
  %v3180 = vpop.xlane.xlu0 %3179
  %v3182 = vperm.slane %v3180, 0
  %v3183 = vperm.slane %v3180, 1
  %v3184 = vperm.slane %v3180, 2
  %v3185 = vperm.slane %v3180, 3
  %v3186 = vperm.slane %v3180, 4
  %v3187 = vperm.slane %v3180, 5
  %v3188 = vperm.slane %v3180, 6
  %v3189 = vperm.slane %v3180, 7
  %v3198 = vrcp.pop %v3182
  %v3199 = vmul.f32 %v3182, %v3198
  %v3200 = vsub.f32 1.0, %v3199
  %v3201 = vmul.f32 %v3198, %v3200
  %v3202 = vadd.f32 %v3198, %v3201
  %vm3203 = vweird.f32 %v3182
  %vm3204 = vweird.f32 %v3198
  %vm3205 = vmor %vm3203, %vm3204
  %v3206 = vsel %vm3205, %v3198, %v3202
  %v3207 = vand.u32 2147483647, %v3182
  %vm3208 = vcmp.eq.f32.partialorder %v3207, 8.507059e+37
  %v3209 = vand.u32 %v3182, 2147483648
  %v3210 = vor.u32 1.1754944e-38, %v3209
  %v3211 = vsel %vm3208, %v3210, %v3206
  %v3212 = vmul.f32 %v3115, %v3211
  %v3213 = vrcp.pop %v3183
  %v3214 = vmul.f32 %v3183, %v3213
  %v3215 = vsub.f32 1.0, %v3214
  %v3216 = vmul.f32 %v3213, %v3215
  %v3217 = vadd.f32 %v3213, %v3216
  %vm3218 = vweird.f32 %v3183
  %vm3219 = vweird.f32 %v3213
  %vm3220 = vmor %vm3218, %vm3219
  %v3221 = vsel %vm3220, %v3213, %v3217
  %v3222 = vand.u32 2147483647, %v3183
  %vm3223 = vcmp.eq.f32.partialorder %v3222, 8.507059e+37
  %v3224 = vand.u32 %v3183, 2147483648
  %v3225 = vor.u32 1.1754944e-38, %v3224
  %v3226 = vsel %vm3223, %v3225, %v3221
  %v3227 = vmul.f32 %v3117, %v3226
  %v3228 = vrcp.pop %v3184
  %v3229 = vmul.f32 %v3184, %v3228
  %v3230 = vsub.f32 1.0, %v3229
  %v3231 = vmul.f32 %v3228, %v3230
  %v3232 = vadd.f32 %v3228, %v3231
  %vm3233 = vweird.f32 %v3184
  %vm3234 = vweird.f32 %v3228
  %vm3235 = vmor %vm3233, %vm3234
  %v3236 = vsel %vm3235, %v3228, %v3232
  %v3237 = vand.u32 2147483647, %v3184
  %vm3238 = vcmp.eq.f32.partialorder %v3237, 8.507059e+37
  %v3239 = vand.u32 %v3184, 2147483648
  %v3240 = vor.u32 1.1754944e-38, %v3239
  %v3241 = vsel %vm3238, %v3240, %v3236
  %v3242 = vmul.f32 %v3119, %v3241
  %v3243 = vrcp.pop %v3185
  %v3244 = vmul.f32 %v3185, %v3243
  %v3245 = vsub.f32 1.0, %v3244
  %v3246 = vmul.f32 %v3243, %v3245
  %v3247 = vadd.f32 %v3243, %v3246
  %vm3248 = vweird.f32 %v3185
  %vm3249 = vweird.f32 %v3243
  %vm3250 = vmor %vm3248, %vm3249
  %v3251 = vsel %vm3250, %v3243, %v3247
  %v3252 = vand.u32 2147483647, %v3185
  %vm3253 = vcmp.eq.f32.partialorder %v3252, 8.507059e+37
  %v3254 = vand.u32 %v3185, 2147483648
  %v3255 = vor.u32 1.1754944e-38, %v3254
  %v3256 = vsel %vm3253, %v3255, %v3251
  %v3257 = vmul.f32 %v3121, %v3256
  %v3258 = vrcp.pop %v3186
  %v3259 = vmul.f32 %v3186, %v3258
  %v3260 = vsub.f32 1.0, %v3259
  %v3261 = vmul.f32 %v3258, %v3260
  %v3262 = vadd.f32 %v3258, %v3261
  %vm3263 = vweird.f32 %v3186
  %vm3264 = vweird.f32 %v3258
  %vm3265 = vmor %vm3263, %vm3264
  %v3266 = vsel %vm3265, %v3258, %v3262
  %v3267 = vand.u32 2147483647, %v3186
  %vm3268 = vcmp.eq.f32.partialorder %v3267, 8.507059e+37
  %v3269 = vand.u32 %v3186, 2147483648
  %v3270 = vor.u32 1.1754944e-38, %v3269
  %v3271 = vsel %vm3268, %v3270, %v3266
  %v3272 = vmul.f32 %v3123, %v3271
  %v3273 = vrcp.pop %v3187
  %v3274 = vmul.f32 %v3187, %v3273
  %v3275 = vsub.f32 1.0, %v3274
  %v3276 = vmul.f32 %v3273, %v3275
  %v3277 = vadd.f32 %v3273, %v3276
  %vm3278 = vweird.f32 %v3187
  %vm3279 = vweird.f32 %v3273
  %vm3280 = vmor %vm3278, %vm3279
  %v3281 = vsel %vm3280, %v3273, %v3277
  %v3282 = vand.u32 2147483647, %v3187
  %vm3283 = vcmp.eq.f32.partialorder %v3282, 8.507059e+37
  %v3284 = vand.u32 %v3187, 2147483648
  %v3285 = vor.u32 1.1754944e-38, %v3284
  %v3286 = vsel %vm3283, %v3285, %v3281
  %v3287 = vmul.f32 %v3125, %v3286
  %v3288 = vrcp.pop %v3188
  %v3289 = vmul.f32 %v3188, %v3288
  %v3290 = vsub.f32 1.0, %v3289
  %v3291 = vmul.f32 %v3288, %v3290
  %v3292 = vadd.f32 %v3288, %v3291
  %vm3293 = vweird.f32 %v3188
  %vm3294 = vweird.f32 %v3288
  %vm3295 = vmor %vm3293, %vm3294
  %v3296 = vsel %vm3295, %v3288, %v3292
  %v3297 = vand.u32 2147483647, %v3188
  %vm3298 = vcmp.eq.f32.partialorder %v3297, 8.507059e+37
  %v3299 = vand.u32 %v3188, 2147483648
  %v3300 = vor.u32 1.1754944e-38, %v3299
  %v3301 = vsel %vm3298, %v3300, %v3296
  %v3302 = vmul.f32 %v3127, %v3301
  %v3303 = vrcp.pop %v3189
  %v3304 = vmul.f32 %v3189, %v3303
  %v3305 = vsub.f32 1.0, %v3304
  %v3306 = vmul.f32 %v3303, %v3305
  %v3307 = vadd.f32 %v3303, %v3306
  %vm3308 = vweird.f32 %v3189
  %vm3309 = vweird.f32 %v3303
  %vm3310 = vmor %vm3308, %vm3309
  %v3311 = vsel %vm3310, %v3303, %v3307
  %v3312 = vand.u32 2147483647, %v3189
  %vm3313 = vcmp.eq.f32.partialorder %v3312, 8.507059e+37
  %v3314 = vand.u32 %v3189, 2147483648
  %v3315 = vor.u32 1.1754944e-38, %v3314
  %v3316 = vsel %vm3313, %v3315, %v3311
  %v3317 = vmul.f32 %v3129, %v3316
  %3319 = vset.pattern.permute.xlu0 0
  %3320 = vperm.xlu0 %3319, %v3212
  %v3321 = vpop.permute.xlu0 %3320
  %3324 = vset.pattern.permute.xlu0 0
  %3325 = vperm.xlu0 %3324, %v3227
  %v3326 = vpop.permute.xlu0 %3325
  %3329 = vset.pattern.permute.xlu0 0
  %3330 = vperm.xlu0 %3329, %v3242
  %v3331 = vpop.permute.xlu0 %3330
  %3334 = vset.pattern.permute.xlu0 0
  %3335 = vperm.xlu0 %3334, %v3257
  %v3336 = vpop.permute.xlu0 %3335
  %3339 = vset.pattern.permute.xlu0 0
  %3340 = vperm.xlu0 %3339, %v3272
  %v3341 = vpop.permute.xlu0 %3340
  %3344 = vset.pattern.permute.xlu0 0
  %3345 = vperm.xlu0 %3344, %v3287
  %v3346 = vpop.permute.xlu0 %3345
  %3349 = vset.pattern.permute.xlu0 0
  %3350 = vperm.xlu0 %3349, %v3302
  %v3351 = vpop.permute.xlu0 %3350
  %3354 = vset.pattern.permute.xlu0 0
  %3355 = vperm.xlu0 %3354, %v3317
  %v3356 = vpop.permute.xlu0 %3355
  %v3358 = vmul.f32 %v3321, %v98
  %v3359 = vmul.f32 %v3326, %v99
  %v3360 = vmul.f32 %v3331, %v100
  %v3361 = vmul.f32 %v3336, %v101
  %v3362 = vmul.f32 %v3341, %v102
  %v3363 = vmul.f32 %v3346, %v103
  %v3364 = vmul.f32 %v3351, %v104
  %v3365 = vmul.f32 %v3356, %v105
  %v3366 = vsel %vm285, %v3358, 0.0
  %v3367 = vrot.slane %v3366, 4
  %v3368 = vadd.f32 %v3366, %v3367
  %v3369 = vrot.slane %v3368, 2
  %v3370 = vadd.f32 %v3368, %v3369
  %v3371 = vrot.slane %v3370, 1
  %v3372 = vadd.f32 %v3370, %v3371
  %v3373 = vsel %vm285, %v3359, 0.0
  %v3374 = vrot.slane %v3373, 4
  %v3375 = vadd.f32 %v3373, %v3374
  %v3376 = vrot.slane %v3375, 2
  %v3377 = vadd.f32 %v3375, %v3376
  %v3378 = vrot.slane %v3377, 1
  %v3379 = vadd.f32 %v3377, %v3378
  %v3380 = vsel %vm285, %v3360, 0.0
  %v3381 = vrot.slane %v3380, 4
  %v3382 = vadd.f32 %v3380, %v3381
  %v3383 = vrot.slane %v3382, 2
  %v3384 = vadd.f32 %v3382, %v3383
  %v3385 = vrot.slane %v3384, 1
  %v3386 = vadd.f32 %v3384, %v3385
  %v3387 = vsel %vm285, %v3361, 0.0
  %v3388 = vrot.slane %v3387, 4
  %v3389 = vadd.f32 %v3387, %v3388
  %v3390 = vrot.slane %v3389, 2
  %v3391 = vadd.f32 %v3389, %v3390
  %v3392 = vrot.slane %v3391, 1
  %v3393 = vadd.f32 %v3391, %v3392
  %v3394 = vsel %vm285, %v3362, 0.0
  %v3395 = vrot.slane %v3394, 4
  %v3396 = vadd.f32 %v3394, %v3395
  %v3397 = vrot.slane %v3396, 2
  %v3398 = vadd.f32 %v3396, %v3397
  %v3399 = vrot.slane %v3398, 1
  %v3400 = vadd.f32 %v3398, %v3399
  %v3401 = vsel %vm285, %v3363, 0.0
  %v3402 = vrot.slane %v3401, 4
  %v3403 = vadd.f32 %v3401, %v3402
  %v3404 = vrot.slane %v3403, 2
  %v3405 = vadd.f32 %v3403, %v3404
  %v3406 = vrot.slane %v3405, 1
  %v3407 = vadd.f32 %v3405, %v3406
  %v3408 = vsel %vm285, %v3364, 0.0
  %v3409 = vrot.slane %v3408, 4
  %v3410 = vadd.f32 %v3408, %v3409
  %v3411 = vrot.slane %v3410, 2
  %v3412 = vadd.f32 %v3410, %v3411
  %v3413 = vrot.slane %v3412, 1
  %v3414 = vadd.f32 %v3412, %v3413
  %v3415 = vsel %vm285, %v3365, 0.0
  %v3416 = vrot.slane %v3415, 4
  %v3417 = vadd.f32 %v3415, %v3416
  %v3418 = vrot.slane %v3417, 2
  %v3419 = vadd.f32 %v3417, %v3418
  %v3420 = vrot.slane %v3419, 1
  %v3421 = vadd.f32 %v3419, %v3420
  %v3430 = vsel %vm328, %v3379, %v3372
  %v3431 = vsel %vm330, %v3386, %v3430
  %v3432 = vsel %vm332, %v3393, %v3431
  %v3433 = vsel %vm334, %v3400, %v3432
  %v3434 = vsel %vm336, %v3407, %v3433
  %v3435 = vsel %vm338, %v3414, %v3434
  %v3436 = vsel %vm340, %v3421, %v3435
  %v3437 = vsel %vm285, %v3436, 0
  %3439 = vmatpush.msra.mxu0 0.0
  %3440 = vmatpush.msra.mxu0 0.0
  %3441 = vmatpush.msra.mxu0 0.0
  %3442 = vmatpush.msra.mxu0 0.0
  %3443 = vmatpush.msra.mxu0 0.0
  %3444 = vmatpush.msra.mxu0 0.0
  %3445 = vmatpush.msra.mxu0 0.0
  %3446 = vmatpush.msra.mxu0 0.0
  %3447 = vmatpush.msra.mxu0 0.0
  %3448 = vmatpush.msra.mxu0 0.0
  %3449 = vmatpush.msra.mxu0 0.0
  %3450 = vmatpush.msra.mxu0 0.0
  %3451 = vmatpush.msra.mxu0 %v247
  %3452 = vmatpush.msra.mxu0 %v246
  %3453 = vmatpush.msra.mxu0 %v245
  %3454 = vmatpush.msra.mxu0 %v244
  %3455 = vmatmul.f32.gmra.mxu0 %v3437
  %v3456 = vpop.f32.mrf.mxu0
  %v3457 = vadd.f32 0.0, %v3456
  %3458 = vdwg.mxu0
  %v3459 = vadd.f32 %v182, %v3457
  %v3460 = vadd.f32 %v3459, %v250
  %s3461 = scalar_lea.vmem %s8, 56
  %3462 = vst [vmem:[%s3461] sm:$0xff] %v3460
  // Predicated region
  $region34: #{_fused_forward.1} parent=0 // pred_check
    _
  $region35: #{_fused_forward.1} parent=0 // pred_check_branch
    %3464 = sbr.rel (0) target = $region37
  $region36: #{_fused_forward.1} parent=0 // pred_region
    _
  $region37: #{_fused_forward.1} parent=0 // pred_fallthru
    _
  // Predicated region
  $region38: #{_fused_forward.1} parent=0 // pred_check
    _
  $region39: #{_fused_forward.1} parent=0 // pred_check_branch
    %3466 = sbr.rel (0) target = $region41
  $region40: #{_fused_forward.1} parent=0 // pred_region
    _
  $region41: #{_fused_forward.1} parent=0 // pred_fallthru
    _

</llo_original>
